<compile_context>
chip_gen: v6e
topology: v6e:2x2x1
jax: 0.10.0
libtpu: 0.0.40
codegen_flags: <defaults>
</compile_context>

<pallas_src>
import functools

import numpy as np

import jax
import jax.numpy as jnp
from jax.experimental import pallas as pl
from jax.experimental.pallas import tpu as pltpu

EPS = 1e-5


def _new_features_kernel(x_ref, we_ref, wd_ref, mask_ref, ws_ref, o_ref, *, W):
    """Whole block in one kernel (channel-major layout, fits easily in VMEM).

    x_ref   : (Cin, M)   input, M = N*H*W (n-major, then h, then w)
    we_ref  : (C, Cin)   1x1 expand weight
    wd_ref  : (C, 9)     depthwise 3x3 weights, tap k = dy*3 + dx
    mask_ref: (8, M)     0/1 in-bounds masks for the 8 non-center taps
    ws_ref  : (G, C)     1x1 shrink weight
    o_ref   : (G, M)     output (lane-dense; wrapper reshapes to NCHW)
    """
    Cin, M = x_ref.shape

    def bn_relu6(h):
        # Training-mode BatchNorm: biased batch stats over M per channel,
        # gamma=1, beta=0; one-pass statistics (var = E[h^2] - mean^2); ReLU6.
        inv_m = 1.0 / h.shape[1]
        mean = jnp.sum(h, axis=1, keepdims=True) * inv_m
        var = jnp.sum(h * h, axis=1, keepdims=True) * inv_m - mean * mean
        return jnp.clip((h - mean) * jax.lax.rsqrt(var + EPS), 0.0, 6.0)

    # ---- stage 1: 1x1 expand conv. Cin is tiny -> Cin broadcast FMAs on the
    # VPU (no K=4 MXU matmul, no in-kernel reshape). Conv bias is dead math.
    x = x_ref[...]                                       # (Cin, M)
    we = we_ref[...]                                     # (C, Cin)
    h1 = we[:, 0:1] * x[0:1, :]
    for ci in range(1, Cin):
        h1 = h1 + we[:, ci:ci + 1] * x[ci:ci + 1, :]
    h1 = bn_relu6(h1)                                    # (C, M)

    # ---- stage 2: depthwise 3x3 conv, padding=1. Each tap is a lane-roll of
    # the flattened n*H*W axis (XLU) times a precomputed 0/1 boundary mask;
    # every roll wrap-around lands on a masked (out-of-bounds) position.
    wd = wd_ref[...]                                     # (C, 9)
    acc = h1 * wd[:, 4:5]                                # center tap (dy=1, dx=1)
    tap_i = 0
    for dy in range(3):
        for dx in range(3):
            if dy == 1 and dx == 1:
                continue
            k = dy * 3 + dx
            # out[p] needs in[p + (dy-1)*W + (dx-1)]  ->  roll by the negative.
            shift = (-((dy - 1) * W + (dx - 1))) % M
            t = pltpu.roll(h1, shift, axis=1)
            t = t * mask_ref[tap_i:tap_i + 1, :]
            acc = acc + t * wd[:, k:k + 1]
            tap_i += 1
    h2 = bn_relu6(acc)                                   # (C, M)

    # ---- stage 3: 1x1 shrink conv as (G, C) @ (C, M): full-K MXU matmul with a
    # lane-dense (G, M) result, so BN/ReLU6 and the stores use full 128-lane vregs.
    h3 = jnp.dot(ws_ref[...], h2, preferred_element_type=jnp.float32)
    o_ref[...] = bn_relu6(h3)                            # (G, M)


def _tap_masks(N, H, W):
    """0/1 in-bounds masks, one row per non-center 3x3 tap, over flat N*H*W."""
    hw = np.arange(H * W)
    h_idx, w_idx = hw // W, hw % W
    rows = []
    for dy in range(3):
        for dx in range(3):
            if dy == 1 and dx == 1:
                continue
            ok = np.ones((H * W,), dtype=bool)
            if dy == 0:
                ok &= h_idx > 0
            if dy == 2:
                ok &= h_idx < H - 1
            if dx == 0:
                ok &= w_idx > 0
            if dx == 2:
                ok &= w_idx < W - 1
            rows.append(np.tile(ok, N))
    return np.stack(rows, 0).astype(np.float32)          # (8, N*H*W)


@jax.jit
def new_features_forward(x_nchw, w_expand, w_dwise, w_shrink):
    N, Cin, H, W = x_nchw.shape
    G = w_shrink.shape[0]
    M = N * H * W

    # Lane-dense input slab: NCHW -> (Cin, N*H*W) is a cheap leading-axis swap
    # (the minor spatial axis is untouched) instead of a full NHWC transpose.
    x_t = jnp.transpose(x_nchw.astype(jnp.float32).reshape(N, Cin, H * W),
                        (1, 0, 2)).reshape(Cin, M)
    tap_mask = _tap_masks(N, H, W)                        # trace-time constant

    out_gm = pl.pallas_call(
        functools.partial(_new_features_kernel, W=W),
        out_shape=jax.ShapeDtypeStruct((G, M), jnp.float32),
        in_specs=[pl.BlockSpec(memory_space=pltpu.MemorySpace.VMEM)] * 5,
        out_specs=pl.BlockSpec(memory_space=pltpu.MemorySpace.VMEM),
    )(x_t, w_expand, w_dwise, tap_mask, w_shrink)

    # (G, M) -> NCHW is a pure leading-axis permutation of a tiny tensor.
    return jnp.transpose(out_gm.reshape(G, N, H, W), (1, 0, 2, 3))


def init_params(key, in_channels, growth_rate=32, expansion=4):
    """Deterministic parameter init matching the PyTorch __init__ recipe."""
    channels = expansion * growth_rate
    k_e, k_d, k_s = jax.random.split(key, 3)

    def kaiming_uniform(k, shape, fan_in):
        bound = (6.0 / fan_in) ** 0.5          # gain=sqrt(2), fan_in mode, 'relu'
        return jax.random.uniform(k, shape, jnp.float32, -bound, bound)

    # conv_expand: torch weight (C, Cin, 1, 1) -> (C, Cin); fan_in = Cin
    w_expand = kaiming_uniform(k_e, (channels, in_channels), in_channels)
    # conv_dwise: torch weight (C, 1, 3, 3) -> (C, 9), k = dy*3+dx; fan_in = 9
    w_dwise = kaiming_uniform(k_d, (channels, 9), 9)
    # conv_shrink: torch weight (G, C, 1, 1) -> (G, C); fan_in = C
    w_shrink = kaiming_uniform(k_s, (growth_rate, channels), channels)
    # Conv biases are zero and, being per-channel constants before train-mode
    # BN, cancel exactly -> omitted.  BN gamma=1, beta=0 -> pure normalization.
    return w_expand, w_dwise, w_shrink


def reference_forward(x_nchw, w_expand, w_dwise, w_shrink):
    """Pure-JAX reference (same math) for a sanity check."""
    x = jnp.transpose(x_nchw, (0, 2, 3, 1)).astype(jnp.float32)   # NHWC
    N, H, W, _ = x.shape

    def bn_relu6(h):
        mean = h.mean(axis=(0, 1, 2), keepdims=True)
        var = ((h - mean) ** 2).mean(axis=(0, 1, 2), keepdims=True)
        return jnp.clip((h - mean) * jax.lax.rsqrt(var + EPS), 0.0, 6.0)

    h = bn_relu6(jnp.einsum('nhwc,dc->nhwd', x, w_expand))
    hp = jnp.pad(h, ((0, 0), (1, 1), (1, 1), (0, 0)))
    acc = sum(hp[:, dy:dy + H, dx:dx + W, :]
              * w_dwise[:, dy * 3 + dx][None, None, None, :]
              for dy in range(3) for dx in range(3))
    h = bn_relu6(acc)
    h = bn_relu6(jnp.einsum('nhwc,gc->nhwg', h, w_shrink))
    return jnp.transpose(h, (0, 3, 1, 2))


if __name__ == "__main__":
    key = jax.random.PRNGKey(0)
    k_x, k_p = jax.random.split(key)

    N, Cin, H, W = 2, 4, 16, 16            # small shapes consistent with the module
    growth_rate, expansion = 32, 4         # channels = 128, output channels = 32

    x = jax.random.normal(k_x, (N, Cin, H, W), jnp.float32)
    params = init_params(k_p, Cin, growth_rate, expansion)

    out = jax.block_until_ready(new_features_forward(x, *params))
    assert out.shape == (N, growth_rate, H, W), out.shape

    ref = jax.block_until_ready(reference_forward(x, *params))
    assert jnp.allclose(out, ref, rtol=1e-3, atol=1e-3), \
        float(jnp.max(jnp.abs(out - ref)))

    print("KERNEL_OK")
</pallas_src>

<mosaic_0001>
module attributes {stable_mosaic.version = 11 : i64} {
  func.func @_new_features_kernel(%arg0: memref<4x512xf32, #tpu.memory_space<vmem>>, %arg1: memref<128x4xf32, #tpu.memory_space<vmem>>, %arg2: memref<128x9xf32, #tpu.memory_space<vmem>>, %arg3: memref<8x512xf32, #tpu.memory_space<vmem>>, %arg4: memref<32x128xf32, #tpu.memory_space<vmem>>, %arg5: memref<32x512xf32, #tpu.memory_space<vmem>>) attributes {dimension_semantics = [], scalar_prefetch = 0 : i64, scratch_operands = 0 : i64, tpu.core_type = #tpu.core_type<tc>} {
    %c0 = arith.constant 0 : index
    %c0_0 = arith.constant 0 : index
    %0 = vector.load %arg0[%c0, %c0_0] : memref<4x512xf32, #tpu.memory_space<vmem>>, vector<4x512xf32>
    %c0_1 = arith.constant 0 : index
    %c0_2 = arith.constant 0 : index
    %1 = vector.load %arg1[%c0_1, %c0_2] : memref<128x4xf32, #tpu.memory_space<vmem>>, vector<128x4xf32>
    %2 = vector.extract_strided_slice %1 {offsets = [0, 0], sizes = [128, 1], strides = [1, 1]} : vector<128x4xf32> to vector<128x1xf32>
    %3 = vector.extract_strided_slice %0 {offsets = [0, 0], sizes = [1, 512], strides = [1, 1]} : vector<4x512xf32> to vector<1x512xf32>
    %4 = vector.broadcast %2 : vector<128x1xf32> to vector<128x512xf32>
    %5 = vector.broadcast %3 : vector<1x512xf32> to vector<128x512xf32>
    %6 = arith.mulf %4, %5 : vector<128x512xf32>
    %7 = vector.extract_strided_slice %1 {offsets = [0, 1], sizes = [128, 1], strides = [1, 1]} : vector<128x4xf32> to vector<128x1xf32>
    %8 = vector.extract_strided_slice %0 {offsets = [1, 0], sizes = [1, 512], strides = [1, 1]} : vector<4x512xf32> to vector<1x512xf32>
    %9 = vector.broadcast %7 : vector<128x1xf32> to vector<128x512xf32>
    %10 = vector.broadcast %8 : vector<1x512xf32> to vector<128x512xf32>
    %11 = arith.mulf %9, %10 : vector<128x512xf32>
    %12 = arith.addf %6, %11 : vector<128x512xf32>
    %13 = vector.extract_strided_slice %1 {offsets = [0, 2], sizes = [128, 1], strides = [1, 1]} : vector<128x4xf32> to vector<128x1xf32>
    %14 = vector.extract_strided_slice %0 {offsets = [2, 0], sizes = [1, 512], strides = [1, 1]} : vector<4x512xf32> to vector<1x512xf32>
    %15 = vector.broadcast %13 : vector<128x1xf32> to vector<128x512xf32>
    %16 = vector.broadcast %14 : vector<1x512xf32> to vector<128x512xf32>
    %17 = arith.mulf %15, %16 : vector<128x512xf32>
    %18 = arith.addf %12, %17 : vector<128x512xf32>
    %19 = vector.extract_strided_slice %1 {offsets = [0, 3], sizes = [128, 1], strides = [1, 1]} : vector<128x4xf32> to vector<128x1xf32>
    %20 = vector.extract_strided_slice %0 {offsets = [3, 0], sizes = [1, 512], strides = [1, 1]} : vector<4x512xf32> to vector<1x512xf32>
    %21 = vector.broadcast %19 : vector<128x1xf32> to vector<128x512xf32>
    %22 = vector.broadcast %20 : vector<1x512xf32> to vector<128x512xf32>
    %23 = arith.mulf %21, %22 : vector<128x512xf32>
    %24 = arith.addf %18, %23 : vector<128x512xf32>
    %cst = arith.constant dense<0.000000e+00> : vector<128xf32>
    %25 = vector.multi_reduction <add>, %24, %cst [1] : vector<128x512xf32> to vector<128xf32>
    %26 = vector.shape_cast %25 : vector<128xf32> to vector<128x1xf32>
    %cst_3 = arith.constant 0.001953125 : f32
    %27 = vector.broadcast %cst_3 : f32 to vector<128x1xf32>
    %28 = arith.mulf %26, %27 : vector<128x1xf32>
    %29 = arith.mulf %24, %24 : vector<128x512xf32>
    %cst_4 = arith.constant dense<0.000000e+00> : vector<128xf32>
    %30 = vector.multi_reduction <add>, %29, %cst_4 [1] : vector<128x512xf32> to vector<128xf32>
    %31 = vector.shape_cast %30 : vector<128xf32> to vector<128x1xf32>
    %cst_5 = arith.constant 0.001953125 : f32
    %32 = vector.broadcast %cst_5 : f32 to vector<128x1xf32>
    %33 = arith.mulf %31, %32 : vector<128x1xf32>
    %34 = arith.mulf %28, %28 : vector<128x1xf32>
    %35 = arith.subf %33, %34 : vector<128x1xf32>
    %36 = vector.broadcast %28 : vector<128x1xf32> to vector<128x512xf32>
    %37 = arith.subf %24, %36 : vector<128x512xf32>
    %cst_6 = arith.constant 9.99999974E-6 : f32
    %38 = vector.broadcast %cst_6 : f32 to vector<128x1xf32>
    %39 = arith.addf %35, %38 : vector<128x1xf32>
    %40 = math.rsqrt %39 : vector<128x1xf32>
    %41 = vector.broadcast %40 : vector<128x1xf32> to vector<128x512xf32>
    %42 = arith.mulf %37, %41 : vector<128x512xf32>
    %cst_7 = arith.constant 0.000000e+00 : f32
    %cst_8 = arith.constant 6.000000e+00 : f32
    %43 = vector.broadcast %cst_7 : f32 to vector<128x512xf32>
    %44 = arith.maximumf %43, %42 : vector<128x512xf32>
    %45 = vector.broadcast %cst_8 : f32 to vector<128x512xf32>
    %46 = arith.minimumf %45, %44 : vector<128x512xf32>
    %c0_9 = arith.constant 0 : index
    %c0_10 = arith.constant 0 : index
    %47 = vector.load %arg2[%c0_9, %c0_10] : memref<128x9xf32, #tpu.memory_space<vmem>>, vector<128x9xf32>
    %48 = vector.extract_strided_slice %47 {offsets = [0, 4], sizes = [128, 1], strides = [1, 1]} : vector<128x9xf32> to vector<128x1xf32>
    %49 = vector.broadcast %48 : vector<128x1xf32> to vector<128x512xf32>
    %50 = arith.mulf %46, %49 : vector<128x512xf32>
    %c17_i32 = arith.constant 17 : i32
    %51 = tpu.dynamic_rotate %46 by %c17_i32 dim 1 : vector<128x512xf32>, i32 -> vector<128x512xf32>
    %c0_11 = arith.constant 0 : index
    %c0_12 = arith.constant 0 : index
    %52 = vector.load %arg3[%c0_11, %c0_12] : memref<8x512xf32, #tpu.memory_space<vmem>>, vector<1x512xf32>
    %53 = vector.broadcast %52 : vector<1x512xf32> to vector<128x512xf32>
    %54 = arith.mulf %51, %53 : vector<128x512xf32>
    %55 = vector.extract_strided_slice %47 {offsets = [0, 0], sizes = [128, 1], strides = [1, 1]} : vector<128x9xf32> to vector<128x1xf32>
    %56 = vector.broadcast %55 : vector<128x1xf32> to vector<128x512xf32>
    %57 = arith.mulf %54, %56 : vector<128x512xf32>
    %58 = arith.addf %50, %57 : vector<128x512xf32>
    %c16_i32 = arith.constant 16 : i32
    %59 = tpu.dynamic_rotate %46 by %c16_i32 dim 1 : vector<128x512xf32>, i32 -> vector<128x512xf32>
    %c1 = arith.constant 1 : index
    %c0_13 = arith.constant 0 : index
    %60 = vector.load %arg3[%c1, %c0_13] : memref<8x512xf32, #tpu.memory_space<vmem>>, vector<1x512xf32>
    %61 = vector.broadcast %60 : vector<1x512xf32> to vector<128x512xf32>
    %62 = arith.mulf %59, %61 : vector<128x512xf32>
    %63 = vector.extract_strided_slice %47 {offsets = [0, 1], sizes = [128, 1], strides = [1, 1]} : vector<128x9xf32> to vector<128x1xf32>
    %64 = vector.broadcast %63 : vector<128x1xf32> to vector<128x512xf32>
    %65 = arith.mulf %62, %64 : vector<128x512xf32>
    %66 = arith.addf %58, %65 : vector<128x512xf32>
    %c15_i32 = arith.constant 15 : i32
    %67 = tpu.dynamic_rotate %46 by %c15_i32 dim 1 : vector<128x512xf32>, i32 -> vector<128x512xf32>
    %c2 = arith.constant 2 : index
    %c0_14 = arith.constant 0 : index
    %68 = vector.load %arg3[%c2, %c0_14] : memref<8x512xf32, #tpu.memory_space<vmem>>, vector<1x512xf32>
    %69 = vector.broadcast %68 : vector<1x512xf32> to vector<128x512xf32>
    %70 = arith.mulf %67, %69 : vector<128x512xf32>
    %71 = vector.extract_strided_slice %47 {offsets = [0, 2], sizes = [128, 1], strides = [1, 1]} : vector<128x9xf32> to vector<128x1xf32>
    %72 = vector.broadcast %71 : vector<128x1xf32> to vector<128x512xf32>
    %73 = arith.mulf %70, %72 : vector<128x512xf32>
    %74 = arith.addf %66, %73 : vector<128x512xf32>
    %c1_i32 = arith.constant 1 : i32
    %75 = tpu.dynamic_rotate %46 by %c1_i32 dim 1 : vector<128x512xf32>, i32 -> vector<128x512xf32>
    %c3 = arith.constant 3 : index
    %c0_15 = arith.constant 0 : index
    %76 = vector.load %arg3[%c3, %c0_15] : memref<8x512xf32, #tpu.memory_space<vmem>>, vector<1x512xf32>
    %77 = vector.broadcast %76 : vector<1x512xf32> to vector<128x512xf32>
    %78 = arith.mulf %75, %77 : vector<128x512xf32>
    %79 = vector.extract_strided_slice %47 {offsets = [0, 3], sizes = [128, 1], strides = [1, 1]} : vector<128x9xf32> to vector<128x1xf32>
    %80 = vector.broadcast %79 : vector<128x1xf32> to vector<128x512xf32>
    %81 = arith.mulf %78, %80 : vector<128x512xf32>
    %82 = arith.addf %74, %81 : vector<128x512xf32>
    %c511_i32 = arith.constant 511 : i32
    %83 = tpu.dynamic_rotate %46 by %c511_i32 dim 1 : vector<128x512xf32>, i32 -> vector<128x512xf32>
    %c4 = arith.constant 4 : index
    %c0_16 = arith.constant 0 : index
    %84 = vector.load %arg3[%c4, %c0_16] : memref<8x512xf32, #tpu.memory_space<vmem>>, vector<1x512xf32>
    %85 = vector.broadcast %84 : vector<1x512xf32> to vector<128x512xf32>
    %86 = arith.mulf %83, %85 : vector<128x512xf32>
    %87 = vector.extract_strided_slice %47 {offsets = [0, 5], sizes = [128, 1], strides = [1, 1]} : vector<128x9xf32> to vector<128x1xf32>
    %88 = vector.broadcast %87 : vector<128x1xf32> to vector<128x512xf32>
    %89 = arith.mulf %86, %88 : vector<128x512xf32>
    %90 = arith.addf %82, %89 : vector<128x512xf32>
    %c497_i32 = arith.constant 497 : i32
    %91 = tpu.dynamic_rotate %46 by %c497_i32 dim 1 : vector<128x512xf32>, i32 -> vector<128x512xf32>
    %c5 = arith.constant 5 : index
    %c0_17 = arith.constant 0 : index
    %92 = vector.load %arg3[%c5, %c0_17] : memref<8x512xf32, #tpu.memory_space<vmem>>, vector<1x512xf32>
    %93 = vector.broadcast %92 : vector<1x512xf32> to vector<128x512xf32>
    %94 = arith.mulf %91, %93 : vector<128x512xf32>
    %95 = vector.extract_strided_slice %47 {offsets = [0, 6], sizes = [128, 1], strides = [1, 1]} : vector<128x9xf32> to vector<128x1xf32>
    %96 = vector.broadcast %95 : vector<128x1xf32> to vector<128x512xf32>
    %97 = arith.mulf %94, %96 : vector<128x512xf32>
    %98 = arith.addf %90, %97 : vector<128x512xf32>
    %c496_i32 = arith.constant 496 : i32
    %99 = tpu.dynamic_rotate %46 by %c496_i32 dim 1 : vector<128x512xf32>, i32 -> vector<128x512xf32>
    %c6 = arith.constant 6 : index
    %c0_18 = arith.constant 0 : index
    %100 = vector.load %arg3[%c6, %c0_18] : memref<8x512xf32, #tpu.memory_space<vmem>>, vector<1x512xf32>
    %101 = vector.broadcast %100 : vector<1x512xf32> to vector<128x512xf32>
    %102 = arith.mulf %99, %101 : vector<128x512xf32>
    %103 = vector.extract_strided_slice %47 {offsets = [0, 7], sizes = [128, 1], strides = [1, 1]} : vector<128x9xf32> to vector<128x1xf32>
    %104 = vector.broadcast %103 : vector<128x1xf32> to vector<128x512xf32>
    %105 = arith.mulf %102, %104 : vector<128x512xf32>
    %106 = arith.addf %98, %105 : vector<128x512xf32>
    %c495_i32 = arith.constant 495 : i32
    %107 = tpu.dynamic_rotate %46 by %c495_i32 dim 1 : vector<128x512xf32>, i32 -> vector<128x512xf32>
    %c7 = arith.constant 7 : index
    %c0_19 = arith.constant 0 : index
    %108 = vector.load %arg3[%c7, %c0_19] : memref<8x512xf32, #tpu.memory_space<vmem>>, vector<1x512xf32>
    %109 = vector.broadcast %108 : vector<1x512xf32> to vector<128x512xf32>
    %110 = arith.mulf %107, %109 : vector<128x512xf32>
    %111 = vector.extract_strided_slice %47 {offsets = [0, 8], sizes = [128, 1], strides = [1, 1]} : vector<128x9xf32> to vector<128x1xf32>
    %112 = vector.broadcast %111 : vector<128x1xf32> to vector<128x512xf32>
    %113 = arith.mulf %110, %112 : vector<128x512xf32>
    %114 = arith.addf %106, %113 : vector<128x512xf32>
    %cst_20 = arith.constant dense<0.000000e+00> : vector<128xf32>
    %115 = vector.multi_reduction <add>, %114, %cst_20 [1] : vector<128x512xf32> to vector<128xf32>
    %116 = vector.shape_cast %115 : vector<128xf32> to vector<128x1xf32>
    %cst_21 = arith.constant 0.001953125 : f32
    %117 = vector.broadcast %cst_21 : f32 to vector<128x1xf32>
    %118 = arith.mulf %116, %117 : vector<128x1xf32>
    %119 = arith.mulf %114, %114 : vector<128x512xf32>
    %cst_22 = arith.constant dense<0.000000e+00> : vector<128xf32>
    %120 = vector.multi_reduction <add>, %119, %cst_22 [1] : vector<128x512xf32> to vector<128xf32>
    %121 = vector.shape_cast %120 : vector<128xf32> to vector<128x1xf32>
    %cst_23 = arith.constant 0.001953125 : f32
    %122 = vector.broadcast %cst_23 : f32 to vector<128x1xf32>
    %123 = arith.mulf %121, %122 : vector<128x1xf32>
    %124 = arith.mulf %118, %118 : vector<128x1xf32>
    %125 = arith.subf %123, %124 : vector<128x1xf32>
    %126 = vector.broadcast %118 : vector<128x1xf32> to vector<128x512xf32>
    %127 = arith.subf %114, %126 : vector<128x512xf32>
    %cst_24 = arith.constant 9.99999974E-6 : f32
    %128 = vector.broadcast %cst_24 : f32 to vector<128x1xf32>
    %129 = arith.addf %125, %128 : vector<128x1xf32>
    %130 = math.rsqrt %129 : vector<128x1xf32>
    %131 = vector.broadcast %130 : vector<128x1xf32> to vector<128x512xf32>
    %132 = arith.mulf %127, %131 : vector<128x512xf32>
    %cst_25 = arith.constant 0.000000e+00 : f32
    %cst_26 = arith.constant 6.000000e+00 : f32
    %133 = vector.broadcast %cst_25 : f32 to vector<128x512xf32>
    %134 = arith.maximumf %133, %132 : vector<128x512xf32>
    %135 = vector.broadcast %cst_26 : f32 to vector<128x512xf32>
    %136 = arith.minimumf %135, %134 : vector<128x512xf32>
    %c0_27 = arith.constant 0 : index
    %c0_28 = arith.constant 0 : index
    %137 = vector.load %arg4[%c0_27, %c0_28] : memref<32x128xf32, #tpu.memory_space<vmem>>, vector<32x128xf32>
    %cst_29 = arith.constant dense<0.000000e+00> : vector<32x512xf32>
    %138 = tpu.matmul %137, %136, %cst_29 {dimension_numbers = #tpu.dot_dimension_numbers<[1], [0], [0], [1], [0, 0, 1, 1], [], []>} : vector<32x128xf32>, vector<128x512xf32>, vector<32x512xf32> -> vector<32x512xf32>
    %cst_30 = arith.constant dense<0.000000e+00> : vector<32xf32>
    %139 = vector.multi_reduction <add>, %138, %cst_30 [1] : vector<32x512xf32> to vector<32xf32>
    %140 = vector.shape_cast %139 : vector<32xf32> to vector<32x1xf32>
    %cst_31 = arith.constant 0.001953125 : f32
    %141 = vector.broadcast %cst_31 : f32 to vector<32x1xf32>
    %142 = arith.mulf %140, %141 : vector<32x1xf32>
    %143 = arith.mulf %138, %138 : vector<32x512xf32>
    %cst_32 = arith.constant dense<0.000000e+00> : vector<32xf32>
    %144 = vector.multi_reduction <add>, %143, %cst_32 [1] : vector<32x512xf32> to vector<32xf32>
    %145 = vector.shape_cast %144 : vector<32xf32> to vector<32x1xf32>
    %cst_33 = arith.constant 0.001953125 : f32
    %146 = vector.broadcast %cst_33 : f32 to vector<32x1xf32>
    %147 = arith.mulf %145, %146 : vector<32x1xf32>
    %148 = arith.mulf %142, %142 : vector<32x1xf32>
    %149 = arith.subf %147, %148 : vector<32x1xf32>
    %150 = vector.broadcast %142 : vector<32x1xf32> to vector<32x512xf32>
    %151 = arith.subf %138, %150 : vector<32x512xf32>
    %cst_34 = arith.constant 9.99999974E-6 : f32
    %152 = vector.broadcast %cst_34 : f32 to vector<32x1xf32>
    %153 = arith.addf %149, %152 : vector<32x1xf32>
    %154 = math.rsqrt %153 : vector<32x1xf32>
    %155 = vector.broadcast %154 : vector<32x1xf32> to vector<32x512xf32>
    %156 = arith.mulf %151, %155 : vector<32x512xf32>
    %cst_35 = arith.constant 0.000000e+00 : f32
    %cst_36 = arith.constant 6.000000e+00 : f32
    %157 = vector.broadcast %cst_35 : f32 to vector<32x512xf32>
    %158 = arith.maximumf %157, %156 : vector<32x512xf32>
    %159 = vector.broadcast %cst_36 : f32 to vector<32x512xf32>
    %160 = arith.minimumf %159, %158 : vector<32x512xf32>
    %c0_37 = arith.constant 0 : index
    %c0_38 = arith.constant 0 : index
    %161 = vector.load %arg5[%c0_37, %c0_38] : memref<32x512xf32, #tpu.memory_space<vmem>>, vector<32x512xf32>
    tpu.vector_store %arg5[%c0_37, %c0_38], %160 {strides = array<i32>} : memref<32x512xf32, #tpu.memory_space<vmem>>, vector<32x512xf32>,
    return
  }
}

</mosaic_0001>

<llo_original>
// kernel: new_features_forward.1
$region0: #{new_features_forward.1}
  #allocation0 [shape = 'u32[]', space=smem, size = 0x4, offset = 0x4, fixed_abs, tag = 'smem constant byte address 0x4 - core index']
  #allocation1 [shape = 'u32[144,128]{1,0:T(1,128)}', space=vmem, size = 0x12000, scoped, tag = 'internal scratch']
  %s0 = inlined_call_operand.vmem [shape: f32[4,512], index: 0, kind: input, shape index: {}]
  %s1 = inlined_call_operand.vmem [shape: f32[128,4], index: 1, kind: input, shape index: {}]
  %s2 = inlined_call_operand.vmem [shape: f32[128,9], index: 2, kind: input, shape index: {}]
  %s3 = inlined_call_operand.vmem [shape: f32[8,512], index: 3, kind: input, shape index: {}]
  %s4 = inlined_call_operand.vmem [shape: f32[32,128], index: 4, kind: input, shape index: {}]
  %s5 = inlined_call_operand.vmem [shape: f32[32,512], index: 5, kind: output, shape index: {}]
  %s6 = sld [smem:[#allocation0]]
  $region30: #{new_features_forward.1} parent=0
    _
  %s8 = ssub.s32 1, %s6
  %s9 = scalar_select 0, %s8, %s6
  // Predicated region
  $region2: #{new_features_forward.1} parent=0 // pred_check
    _
  $region3: #{new_features_forward.1} parent=0 // pred_check_branch
    %11 = sbr.rel (0) target = $region5
  $region4: #{new_features_forward.1} parent=0 // pred_region
    _
  $region5: #{new_features_forward.1} parent=0 // pred_fallthru
    _
  // Predicated region
  $region6: #{new_features_forward.1} parent=0 // pred_check
    _
  $region7: #{new_features_forward.1} parent=0 // pred_check_branch
    %13 = sbr.rel (0) target = $region9
  $region8: #{new_features_forward.1} parent=0 // pred_region
    _
  $region9: #{new_features_forward.1} parent=0 // pred_fallthru
    _
  // Predicated region
  $region10: #{new_features_forward.1} parent=0 // pred_check
    _
  $region11: #{new_features_forward.1} parent=0 // pred_check_branch
    %15 = sbr.rel (0) target = $region13
  $region12: #{new_features_forward.1} parent=0 // pred_region
    _
  $region13: #{new_features_forward.1} parent=0 // pred_fallthru
    _
  // Predicated region
  $region14: #{new_features_forward.1} parent=0 // pred_check
    _
  $region15: #{new_features_forward.1} parent=0 // pred_check_branch
    %17 = sbr.rel (0) target = $region17
  $region16: #{new_features_forward.1} parent=0 // pred_region
    _
  $region17: #{new_features_forward.1} parent=0 // pred_fallthru
    _
  // Predicated region
  $region18: #{new_features_forward.1} parent=0 // pred_check
    _
  $region19: #{new_features_forward.1} parent=0 // pred_check_branch
    %19 = sbr.rel (0) target = $region21
  $region20: #{new_features_forward.1} parent=0 // pred_region
    _
  $region21: #{new_features_forward.1} parent=0 // pred_fallthru
    _
  %v20 = vld [vmem:[%s0] sm:$0xff]
  %v21 = vld [vmem:[%s0 + $0x8] sm:$0xff]
  %v22 = vld [vmem:[%s1] sm:$0xff]
  %v23 = vld [vmem:[%s1 + $0x8] sm:$0xff]
  %v24 = vld [vmem:[%s1 + $0x10] sm:$0xff]
  %v25 = vld [vmem:[%s1 + $0x18] sm:$0xff]
  %v26 = vld [vmem:[%s1 + $0x20] sm:$0xff]
  %v27 = vld [vmem:[%s1 + $0x28] sm:$0xff]
  %v28 = vld [vmem:[%s1 + $0x30] sm:$0xff]
  %v29 = vld [vmem:[%s1 + $0x38] sm:$0xff]
  %v30 = vld [vmem:[%s1 + $0x40] sm:$0xff]
  %v31 = vld [vmem:[%s1 + $0x48] sm:$0xff]
  %v32 = vld [vmem:[%s1 + $0x50] sm:$0xff]
  %v33 = vld [vmem:[%s1 + $0x58] sm:$0xff]
  %v34 = vld [vmem:[%s1 + $0x60] sm:$0xff]
  %v35 = vld [vmem:[%s1 + $0x68] sm:$0xff]
  %v36 = vld [vmem:[%s1 + $0x70] sm:$0xff]
  %v37 = vld [vmem:[%s1 + $0x78] sm:$0xff]
  %39 = vset.pattern.permute.xlu0 0
  %40 = vperm.xlu0 %39, %v22
  %v41 = vpop.permute.xlu0 %40
  %44 = vset.pattern.permute.xlu0 0
  %45 = vperm.xlu0 %44, %v23
  %v46 = vpop.permute.xlu0 %45
  %49 = vset.pattern.permute.xlu0 0
  %50 = vperm.xlu0 %49, %v24
  %v51 = vpop.permute.xlu0 %50
  %54 = vset.pattern.permute.xlu0 0
  %55 = vperm.xlu0 %54, %v25
  %v56 = vpop.permute.xlu0 %55
  %59 = vset.pattern.permute.xlu0 0
  %60 = vperm.xlu0 %59, %v26
  %v61 = vpop.permute.xlu0 %60
  %64 = vset.pattern.permute.xlu0 0
  %65 = vperm.xlu0 %64, %v27
  %v66 = vpop.permute.xlu0 %65
  %69 = vset.pattern.permute.xlu0 0
  %70 = vperm.xlu0 %69, %v28
  %v71 = vpop.permute.xlu0 %70
  %74 = vset.pattern.permute.xlu0 0
  %75 = vperm.xlu0 %74, %v29
  %v76 = vpop.permute.xlu0 %75
  %79 = vset.pattern.permute.xlu0 0
  %80 = vperm.xlu0 %79, %v30
  %v81 = vpop.permute.xlu0 %80
  %84 = vset.pattern.permute.xlu0 0
  %85 = vperm.xlu0 %84, %v31
  %v86 = vpop.permute.xlu0 %85
  %89 = vset.pattern.permute.xlu0 0
  %90 = vperm.xlu0 %89, %v32
  %v91 = vpop.permute.xlu0 %90
  %94 = vset.pattern.permute.xlu0 0
  %95 = vperm.xlu0 %94, %v33
  %v96 = vpop.permute.xlu0 %95
  %99 = vset.pattern.permute.xlu0 0
  %100 = vperm.xlu0 %99, %v34
  %v101 = vpop.permute.xlu0 %100
  %104 = vset.pattern.permute.xlu0 0
  %105 = vperm.xlu0 %104, %v35
  %v106 = vpop.permute.xlu0 %105
  %109 = vset.pattern.permute.xlu0 0
  %110 = vperm.xlu0 %109, %v36
  %v111 = vpop.permute.xlu0 %110
  %114 = vset.pattern.permute.xlu0 0
  %115 = vperm.xlu0 %114, %v37
  %v116 = vpop.permute.xlu0 %115
  %v120 = vlaneseq
  %v121 = vshrl.u32 %v120, 7
  %v122 = vsub.s32 0, %v121
  %v123 = vrot.slane %v20, %v122
  %v124 = vlaneseq
  %v125 = vshrl.u32 %v124, 7
  %v126 = vsub.s32 4, %v125
  %v127 = vrot.slane %v20, %v126
  %v128 = vlaneseq
  %v129 = vshrl.u32 %v128, 7
  %v130 = vsub.s32 0, %v129
  %v131 = vrot.slane %v21, %v130
  %v132 = vlaneseq
  %v133 = vshrl.u32 %v132, 7
  %v134 = vsub.s32 4, %v133
  %v135 = vrot.slane %v21, %v134
  %v140 = vlaneseq
  %v141 = vshrl.u32 %v140, 7
  %v142 = vsub.s32 0, %v141
  %v143 = vrot.slane %v123, %v142
  %v144 = vlaneseq
  %v145 = vshrl.u32 %v144, 7
  %v146 = vsub.s32 0, %v145
  %v147 = vrot.slane %v127, %v146
  %v148 = vlaneseq
  %v149 = vshrl.u32 %v148, 7
  %v150 = vsub.s32 0, %v149
  %v151 = vrot.slane %v131, %v150
  %v152 = vlaneseq
  %v153 = vshrl.u32 %v152, 7
  %v154 = vsub.s32 0, %v153
  %v155 = vrot.slane %v135, %v154
  %v156 = vmul.f32 %v41, %v143
  %v157 = vmul.f32 %v41, %v147
  %v158 = vmul.f32 %v41, %v151
  %v159 = vmul.f32 %v41, %v155
  %v160 = vmul.f32 %v46, %v143
  %v161 = vmul.f32 %v46, %v147
  %v162 = vmul.f32 %v46, %v151
  %v163 = vmul.f32 %v46, %v155
  %v164 = vmul.f32 %v51, %v143
  %v165 = vmul.f32 %v51, %v147
  %v166 = vmul.f32 %v51, %v151
  %v167 = vmul.f32 %v51, %v155
  %v168 = vmul.f32 %v56, %v143
  %v169 = vmul.f32 %v56, %v147
  %v170 = vmul.f32 %v56, %v151
  %v171 = vmul.f32 %v56, %v155
  %v172 = vmul.f32 %v61, %v143
  %v173 = vmul.f32 %v61, %v147
  %v174 = vmul.f32 %v61, %v151
  %v175 = vmul.f32 %v61, %v155
  %v176 = vmul.f32 %v66, %v143
  %v177 = vmul.f32 %v66, %v147
  %v178 = vmul.f32 %v66, %v151
  %v179 = vmul.f32 %v66, %v155
  %v180 = vmul.f32 %v71, %v143
  %v181 = vmul.f32 %v71, %v147
  %v182 = vmul.f32 %v71, %v151
  %v183 = vmul.f32 %v71, %v155
  %v184 = vmul.f32 %v76, %v143
  %v185 = vmul.f32 %v76, %v147
  %v186 = vmul.f32 %v76, %v151
  %v187 = vmul.f32 %v76, %v155
  %v188 = vmul.f32 %v81, %v143
  %v189 = vmul.f32 %v81, %v147
  %v190 = vmul.f32 %v81, %v151
  %v191 = vmul.f32 %v81, %v155
  %v192 = vmul.f32 %v86, %v143
  %v193 = vmul.f32 %v86, %v147
  %v194 = vmul.f32 %v86, %v151
  %v195 = vmul.f32 %v86, %v155
  %v196 = vmul.f32 %v91, %v143
  %v197 = vmul.f32 %v91, %v147
  %v198 = vmul.f32 %v91, %v151
  %v199 = vmul.f32 %v91, %v155
  %v200 = vmul.f32 %v96, %v143
  %v201 = vmul.f32 %v96, %v147
  %v202 = vmul.f32 %v96, %v151
  %v203 = vmul.f32 %v96, %v155
  %v204 = vmul.f32 %v101, %v143
  %v205 = vmul.f32 %v101, %v147
  %v206 = vmul.f32 %v101, %v151
  %v207 = vmul.f32 %v101, %v155
  %v208 = vmul.f32 %v106, %v143
  %v209 = vmul.f32 %v106, %v147
  %v210 = vmul.f32 %v106, %v151
  %v211 = vmul.f32 %v106, %v155
  %v212 = vmul.f32 %v111, %v143
  %v213 = vmul.f32 %v111, %v147
  %v214 = vmul.f32 %v111, %v151
  %v215 = vmul.f32 %v111, %v155
  %v216 = vmul.f32 %v116, %v143
  %v217 = vmul.f32 %v116, %v147
  %v218 = vmul.f32 %v116, %v151
  %v219 = vmul.f32 %v116, %v155
  %220 = vset.pattern.permute.xlu0 1
  %221 = vperm.xlu0 %220, %v22
  %v222 = vpop.permute.xlu0 %221
  %224 = vset.pattern.permute.xlu0 1
  %225 = vperm.xlu0 %224, %v23
  %v226 = vpop.permute.xlu0 %225
  %228 = vset.pattern.permute.xlu0 1
  %229 = vperm.xlu0 %228, %v24
  %v230 = vpop.permute.xlu0 %229
  %232 = vset.pattern.permute.xlu0 1
  %233 = vperm.xlu0 %232, %v25
  %v234 = vpop.permute.xlu0 %233
  %236 = vset.pattern.permute.xlu0 1
  %237 = vperm.xlu0 %236, %v26
  %v238 = vpop.permute.xlu0 %237
  %240 = vset.pattern.permute.xlu0 1
  %241 = vperm.xlu0 %240, %v27
  %v242 = vpop.permute.xlu0 %241
  %244 = vset.pattern.permute.xlu0 1
  %245 = vperm.xlu0 %244, %v28
  %v246 = vpop.permute.xlu0 %245
  %248 = vset.pattern.permute.xlu0 1
  %249 = vperm.xlu0 %248, %v29
  %v250 = vpop.permute.xlu0 %249
  %252 = vset.pattern.permute.xlu0 1
  %253 = vperm.xlu0 %252, %v30
  %v254 = vpop.permute.xlu0 %253
  %256 = vset.pattern.permute.xlu0 1
  %257 = vperm.xlu0 %256, %v31
  %v258 = vpop.permute.xlu0 %257
  %260 = vset.pattern.permute.xlu0 1
  %261 = vperm.xlu0 %260, %v32
  %v262 = vpop.permute.xlu0 %261
  %264 = vset.pattern.permute.xlu0 1
  %265 = vperm.xlu0 %264, %v33
  %v266 = vpop.permute.xlu0 %265
  %268 = vset.pattern.permute.xlu0 1
  %269 = vperm.xlu0 %268, %v34
  %v270 = vpop.permute.xlu0 %269
  %272 = vset.pattern.permute.xlu0 1
  %273 = vperm.xlu0 %272, %v35
  %v274 = vpop.permute.xlu0 %273
  %276 = vset.pattern.permute.xlu0 1
  %277 = vperm.xlu0 %276, %v36
  %v278 = vpop.permute.xlu0 %277
  %280 = vset.pattern.permute.xlu0 1
  %281 = vperm.xlu0 %280, %v37
  %v282 = vpop.permute.xlu0 %281
  %v284 = vlaneseq
  %v285 = vshrl.u32 %v284, 7
  %v286 = vsub.s32 1, %v285
  %v287 = vrot.slane %v20, %v286
  %v288 = vlaneseq
  %v289 = vshrl.u32 %v288, 7
  %v290 = vsub.s32 5, %v289
  %v291 = vrot.slane %v20, %v290
  %v292 = vlaneseq
  %v293 = vshrl.u32 %v292, 7
  %v294 = vsub.s32 1, %v293
  %v295 = vrot.slane %v21, %v294
  %v296 = vlaneseq
  %v297 = vshrl.u32 %v296, 7
  %v298 = vsub.s32 5, %v297
  %v299 = vrot.slane %v21, %v298
  %v304 = vlaneseq
  %v305 = vshrl.u32 %v304, 7
  %v306 = vsub.s32 1, %v305
  %v307 = vrot.slane %v287, %v306
  %v308 = vlaneseq
  %v309 = vshrl.u32 %v308, 7
  %v310 = vsub.s32 1, %v309
  %v311 = vrot.slane %v291, %v310
  %v312 = vlaneseq
  %v313 = vshrl.u32 %v312, 7
  %v314 = vsub.s32 1, %v313
  %v315 = vrot.slane %v295, %v314
  %v316 = vlaneseq
  %v317 = vshrl.u32 %v316, 7
  %v318 = vsub.s32 1, %v317
  %v319 = vrot.slane %v299, %v318
  %v320 = vmul.f32 %v222, %v307
  %v321 = vmul.f32 %v222, %v311
  %v322 = vmul.f32 %v222, %v315
  %v323 = vmul.f32 %v222, %v319
  %v324 = vmul.f32 %v226, %v307
  %v325 = vmul.f32 %v226, %v311
  %v326 = vmul.f32 %v226, %v315
  %v327 = vmul.f32 %v226, %v319
  %v328 = vmul.f32 %v230, %v307
  %v329 = vmul.f32 %v230, %v311
  %v330 = vmul.f32 %v230, %v315
  %v331 = vmul.f32 %v230, %v319
  %v332 = vmul.f32 %v234, %v307
  %v333 = vmul.f32 %v234, %v311
  %v334 = vmul.f32 %v234, %v315
  %v335 = vmul.f32 %v234, %v319
  %v336 = vmul.f32 %v238, %v307
  %v337 = vmul.f32 %v238, %v311
  %v338 = vmul.f32 %v238, %v315
  %v339 = vmul.f32 %v238, %v319
  %v340 = vmul.f32 %v242, %v307
  %v341 = vmul.f32 %v242, %v311
  %v342 = vmul.f32 %v242, %v315
  %v343 = vmul.f32 %v242, %v319
  %v344 = vmul.f32 %v246, %v307
  %v345 = vmul.f32 %v246, %v311
  %v346 = vmul.f32 %v246, %v315
  %v347 = vmul.f32 %v246, %v319
  %v348 = vmul.f32 %v250, %v307
  %v349 = vmul.f32 %v250, %v311
  %v350 = vmul.f32 %v250, %v315
  %v351 = vmul.f32 %v250, %v319
  %v352 = vmul.f32 %v254, %v307
  %v353 = vmul.f32 %v254, %v311
  %v354 = vmul.f32 %v254, %v315
  %v355 = vmul.f32 %v254, %v319
  %v356 = vmul.f32 %v258, %v307
  %v357 = vmul.f32 %v258, %v311
  %v358 = vmul.f32 %v258, %v315
  %v359 = vmul.f32 %v258, %v319
  %v360 = vmul.f32 %v262, %v307
  %v361 = vmul.f32 %v262, %v311
  %v362 = vmul.f32 %v262, %v315
  %v363 = vmul.f32 %v262, %v319
  %v364 = vmul.f32 %v266, %v307
  %v365 = vmul.f32 %v266, %v311
  %v366 = vmul.f32 %v266, %v315
  %v367 = vmul.f32 %v266, %v319
  %v368 = vmul.f32 %v270, %v307
  %v369 = vmul.f32 %v270, %v311
  %v370 = vmul.f32 %v270, %v315
  %v371 = vmul.f32 %v270, %v319
  %v372 = vmul.f32 %v274, %v307
  %v373 = vmul.f32 %v274, %v311
  %v374 = vmul.f32 %v274, %v315
  %v375 = vmul.f32 %v274, %v319
  %v376 = vmul.f32 %v278, %v307
  %v377 = vmul.f32 %v278, %v311
  %v378 = vmul.f32 %v278, %v315
  %v379 = vmul.f32 %v278, %v319
  %v380 = vmul.f32 %v282, %v307
  %v381 = vmul.f32 %v282, %v311
  %v382 = vmul.f32 %v282, %v315
  %v383 = vmul.f32 %v282, %v319
  %v384 = vadd.f32 %v156, %v320
  %v385 = vadd.f32 %v157, %v321
  %v386 = vadd.f32 %v158, %v322
  %v387 = vadd.f32 %v159, %v323
  %v388 = vadd.f32 %v160, %v324
  %v389 = vadd.f32 %v161, %v325
  %v390 = vadd.f32 %v162, %v326
  %v391 = vadd.f32 %v163, %v327
  %v392 = vadd.f32 %v164, %v328
  %v393 = vadd.f32 %v165, %v329
  %v394 = vadd.f32 %v166, %v330
  %v395 = vadd.f32 %v167, %v331
  %v396 = vadd.f32 %v168, %v332
  %v397 = vadd.f32 %v169, %v333
  %v398 = vadd.f32 %v170, %v334
  %v399 = vadd.f32 %v171, %v335
  %v400 = vadd.f32 %v172, %v336
  %v401 = vadd.f32 %v173, %v337
  %v402 = vadd.f32 %v174, %v338
  %v403 = vadd.f32 %v175, %v339
  %v404 = vadd.f32 %v176, %v340
  %v405 = vadd.f32 %v177, %v341
  %v406 = vadd.f32 %v178, %v342
  %v407 = vadd.f32 %v179, %v343
  %v408 = vadd.f32 %v180, %v344
  %v409 = vadd.f32 %v181, %v345
  %v410 = vadd.f32 %v182, %v346
  %v411 = vadd.f32 %v183, %v347
  %v412 = vadd.f32 %v184, %v348
  %v413 = vadd.f32 %v185, %v349
  %v414 = vadd.f32 %v186, %v350
  %v415 = vadd.f32 %v187, %v351
  %v416 = vadd.f32 %v188, %v352
  %v417 = vadd.f32 %v189, %v353
  %v418 = vadd.f32 %v190, %v354
  %v419 = vadd.f32 %v191, %v355
  %v420 = vadd.f32 %v192, %v356
  %v421 = vadd.f32 %v193, %v357
  %v422 = vadd.f32 %v194, %v358
  %v423 = vadd.f32 %v195, %v359
  %v424 = vadd.f32 %v196, %v360
  %v425 = vadd.f32 %v197, %v361
  %v426 = vadd.f32 %v198, %v362
  %v427 = vadd.f32 %v199, %v363
  %v428 = vadd.f32 %v200, %v364
  %v429 = vadd.f32 %v201, %v365
  %v430 = vadd.f32 %v202, %v366
  %v431 = vadd.f32 %v203, %v367
  %v432 = vadd.f32 %v204, %v368
  %v433 = vadd.f32 %v205, %v369
  %v434 = vadd.f32 %v206, %v370
  %v435 = vadd.f32 %v207, %v371
  %v436 = vadd.f32 %v208, %v372
  %v437 = vadd.f32 %v209, %v373
  %v438 = vadd.f32 %v210, %v374
  %v439 = vadd.f32 %v211, %v375
  %v440 = vadd.f32 %v212, %v376
  %v441 = vadd.f32 %v213, %v377
  %v442 = vadd.f32 %v214, %v378
  %v443 = vadd.f32 %v215, %v379
  %v444 = vadd.f32 %v216, %v380
  %v445 = vadd.f32 %v217, %v381
  %v446 = vadd.f32 %v218, %v382
  %v447 = vadd.f32 %v219, %v383
  %448 = vset.pattern.permute.xlu0 2
  %449 = vperm.xlu0 %448, %v22
  %v450 = vpop.permute.xlu0 %449
  %452 = vset.pattern.permute.xlu0 2
  %453 = vperm.xlu0 %452, %v23
  %v454 = vpop.permute.xlu0 %453
  %456 = vset.pattern.permute.xlu0 2
  %457 = vperm.xlu0 %456, %v24
  %v458 = vpop.permute.xlu0 %457
  %460 = vset.pattern.permute.xlu0 2
  %461 = vperm.xlu0 %460, %v25
  %v462 = vpop.permute.xlu0 %461
  %464 = vset.pattern.permute.xlu0 2
  %465 = vperm.xlu0 %464, %v26
  %v466 = vpop.permute.xlu0 %465
  %468 = vset.pattern.permute.xlu0 2
  %469 = vperm.xlu0 %468, %v27
  %v470 = vpop.permute.xlu0 %469
  %472 = vset.pattern.permute.xlu0 2
  %473 = vperm.xlu0 %472, %v28
  %v474 = vpop.permute.xlu0 %473
  %476 = vset.pattern.permute.xlu0 2
  %477 = vperm.xlu0 %476, %v29
  %v478 = vpop.permute.xlu0 %477
  %480 = vset.pattern.permute.xlu0 2
  %481 = vperm.xlu0 %480, %v30
  %v482 = vpop.permute.xlu0 %481
  %484 = vset.pattern.permute.xlu0 2
  %485 = vperm.xlu0 %484, %v31
  %v486 = vpop.permute.xlu0 %485
  %488 = vset.pattern.permute.xlu0 2
  %489 = vperm.xlu0 %488, %v32
  %v490 = vpop.permute.xlu0 %489
  %492 = vset.pattern.permute.xlu0 2
  %493 = vperm.xlu0 %492, %v33
  %v494 = vpop.permute.xlu0 %493
  %496 = vset.pattern.permute.xlu0 2
  %497 = vperm.xlu0 %496, %v34
  %v498 = vpop.permute.xlu0 %497
  %500 = vset.pattern.permute.xlu0 2
  %501 = vperm.xlu0 %500, %v35
  %v502 = vpop.permute.xlu0 %501
  %504 = vset.pattern.permute.xlu0 2
  %505 = vperm.xlu0 %504, %v36
  %v506 = vpop.permute.xlu0 %505
  %508 = vset.pattern.permute.xlu0 2
  %509 = vperm.xlu0 %508, %v37
  %v510 = vpop.permute.xlu0 %509
  %v512 = vlaneseq
  %v513 = vshrl.u32 %v512, 7
  %v514 = vsub.s32 2, %v513
  %v515 = vrot.slane %v20, %v514
  %v516 = vlaneseq
  %v517 = vshrl.u32 %v516, 7
  %v518 = vsub.s32 6, %v517
  %v519 = vrot.slane %v20, %v518
  %v520 = vlaneseq
  %v521 = vshrl.u32 %v520, 7
  %v522 = vsub.s32 2, %v521
  %v523 = vrot.slane %v21, %v522
  %v524 = vlaneseq
  %v525 = vshrl.u32 %v524, 7
  %v526 = vsub.s32 6, %v525
  %v527 = vrot.slane %v21, %v526
  %v532 = vlaneseq
  %v533 = vshrl.u32 %v532, 7
  %v534 = vsub.s32 2, %v533
  %v535 = vrot.slane %v515, %v534
  %v536 = vlaneseq
  %v537 = vshrl.u32 %v536, 7
  %v538 = vsub.s32 2, %v537
  %v539 = vrot.slane %v519, %v538
  %v540 = vlaneseq
  %v541 = vshrl.u32 %v540, 7
  %v542 = vsub.s32 2, %v541
  %v543 = vrot.slane %v523, %v542
  %v544 = vlaneseq
  %v545 = vshrl.u32 %v544, 7
  %v546 = vsub.s32 2, %v545
  %v547 = vrot.slane %v527, %v546
  %v548 = vmul.f32 %v450, %v535
  %v549 = vmul.f32 %v450, %v539
  %v550 = vmul.f32 %v450, %v543
  %v551 = vmul.f32 %v450, %v547
  %v552 = vmul.f32 %v454, %v535
  %v553 = vmul.f32 %v454, %v539
  %v554 = vmul.f32 %v454, %v543
  %v555 = vmul.f32 %v454, %v547
  %v556 = vmul.f32 %v458, %v535
  %v557 = vmul.f32 %v458, %v539
  %v558 = vmul.f32 %v458, %v543
  %v559 = vmul.f32 %v458, %v547
  %v560 = vmul.f32 %v462, %v535
  %v561 = vmul.f32 %v462, %v539
  %v562 = vmul.f32 %v462, %v543
  %v563 = vmul.f32 %v462, %v547
  %v564 = vmul.f32 %v466, %v535
  %v565 = vmul.f32 %v466, %v539
  %v566 = vmul.f32 %v466, %v543
  %v567 = vmul.f32 %v466, %v547
  %v568 = vmul.f32 %v470, %v535
  %v569 = vmul.f32 %v470, %v539
  %v570 = vmul.f32 %v470, %v543
  %v571 = vmul.f32 %v470, %v547
  %v572 = vmul.f32 %v474, %v535
  %v573 = vmul.f32 %v474, %v539
  %v574 = vmul.f32 %v474, %v543
  %v575 = vmul.f32 %v474, %v547
  %v576 = vmul.f32 %v478, %v535
  %v577 = vmul.f32 %v478, %v539
  %v578 = vmul.f32 %v478, %v543
  %v579 = vmul.f32 %v478, %v547
  %v580 = vmul.f32 %v482, %v535
  %v581 = vmul.f32 %v482, %v539
  %v582 = vmul.f32 %v482, %v543
  %v583 = vmul.f32 %v482, %v547
  %v584 = vmul.f32 %v486, %v535
  %v585 = vmul.f32 %v486, %v539
  %v586 = vmul.f32 %v486, %v543
  %v587 = vmul.f32 %v486, %v547
  %v588 = vmul.f32 %v490, %v535
  %v589 = vmul.f32 %v490, %v539
  %v590 = vmul.f32 %v490, %v543
  %v591 = vmul.f32 %v490, %v547
  %v592 = vmul.f32 %v494, %v535
  %v593 = vmul.f32 %v494, %v539
  %v594 = vmul.f32 %v494, %v543
  %v595 = vmul.f32 %v494, %v547
  %v596 = vmul.f32 %v498, %v535
  %v597 = vmul.f32 %v498, %v539
  %v598 = vmul.f32 %v498, %v543
  %v599 = vmul.f32 %v498, %v547
  %v600 = vmul.f32 %v502, %v535
  %v601 = vmul.f32 %v502, %v539
  %v602 = vmul.f32 %v502, %v543
  %v603 = vmul.f32 %v502, %v547
  %v604 = vmul.f32 %v506, %v535
  %v605 = vmul.f32 %v506, %v539
  %v606 = vmul.f32 %v506, %v543
  %v607 = vmul.f32 %v506, %v547
  %v608 = vmul.f32 %v510, %v535
  %v609 = vmul.f32 %v510, %v539
  %v610 = vmul.f32 %v510, %v543
  %v611 = vmul.f32 %v510, %v547
  %v612 = vadd.f32 %v384, %v548
  %v613 = vadd.f32 %v385, %v549
  %v614 = vadd.f32 %v386, %v550
  %v615 = vadd.f32 %v387, %v551
  %v616 = vadd.f32 %v388, %v552
  %v617 = vadd.f32 %v389, %v553
  %v618 = vadd.f32 %v390, %v554
  %v619 = vadd.f32 %v391, %v555
  %v620 = vadd.f32 %v392, %v556
  %v621 = vadd.f32 %v393, %v557
  %v622 = vadd.f32 %v394, %v558
  %v623 = vadd.f32 %v395, %v559
  %v624 = vadd.f32 %v396, %v560
  %v625 = vadd.f32 %v397, %v561
  %v626 = vadd.f32 %v398, %v562
  %v627 = vadd.f32 %v399, %v563
  %v628 = vadd.f32 %v400, %v564
  %v629 = vadd.f32 %v401, %v565
  %v630 = vadd.f32 %v402, %v566
  %v631 = vadd.f32 %v403, %v567
  %v632 = vadd.f32 %v404, %v568
  %v633 = vadd.f32 %v405, %v569
  %v634 = vadd.f32 %v406, %v570
  %v635 = vadd.f32 %v407, %v571
  %v636 = vadd.f32 %v408, %v572
  %v637 = vadd.f32 %v409, %v573
  %v638 = vadd.f32 %v410, %v574
  %v639 = vadd.f32 %v411, %v575
  %v640 = vadd.f32 %v412, %v576
  %v641 = vadd.f32 %v413, %v577
  %v642 = vadd.f32 %v414, %v578
  %v643 = vadd.f32 %v415, %v579
  %v644 = vadd.f32 %v416, %v580
  %v645 = vadd.f32 %v417, %v581
  %v646 = vadd.f32 %v418, %v582
  %v647 = vadd.f32 %v419, %v583
  %v648 = vadd.f32 %v420, %v584
  %v649 = vadd.f32 %v421, %v585
  %v650 = vadd.f32 %v422, %v586
  %v651 = vadd.f32 %v423, %v587
  %v652 = vadd.f32 %v424, %v588
  %v653 = vadd.f32 %v425, %v589
  %v654 = vadd.f32 %v426, %v590
  %v655 = vadd.f32 %v427, %v591
  %v656 = vadd.f32 %v428, %v592
  %v657 = vadd.f32 %v429, %v593
  %v658 = vadd.f32 %v430, %v594
  %v659 = vadd.f32 %v431, %v595
  %v660 = vadd.f32 %v432, %v596
  %v661 = vadd.f32 %v433, %v597
  %v662 = vadd.f32 %v434, %v598
  %v663 = vadd.f32 %v435, %v599
  %v664 = vadd.f32 %v436, %v600
  %v665 = vadd.f32 %v437, %v601
  %v666 = vadd.f32 %v438, %v602
  %v667 = vadd.f32 %v439, %v603
  %v668 = vadd.f32 %v440, %v604
  %v669 = vadd.f32 %v441, %v605
  %v670 = vadd.f32 %v442, %v606
  %v671 = vadd.f32 %v443, %v607
  %v672 = vadd.f32 %v444, %v608
  %v673 = vadd.f32 %v445, %v609
  %v674 = vadd.f32 %v446, %v610
  %v675 = vadd.f32 %v447, %v611
  %676 = vset.pattern.permute.xlu0 3
  %677 = vperm.xlu0 %676, %v22
  %v678 = vpop.permute.xlu0 %677
  %680 = vset.pattern.permute.xlu0 3
  %681 = vperm.xlu0 %680, %v23
  %v682 = vpop.permute.xlu0 %681
  %684 = vset.pattern.permute.xlu0 3
  %685 = vperm.xlu0 %684, %v24
  %v686 = vpop.permute.xlu0 %685
  %688 = vset.pattern.permute.xlu0 3
  %689 = vperm.xlu0 %688, %v25
  %v690 = vpop.permute.xlu0 %689
  %692 = vset.pattern.permute.xlu0 3
  %693 = vperm.xlu0 %692, %v26
  %v694 = vpop.permute.xlu0 %693
  %696 = vset.pattern.permute.xlu0 3
  %697 = vperm.xlu0 %696, %v27
  %v698 = vpop.permute.xlu0 %697
  %700 = vset.pattern.permute.xlu0 3
  %701 = vperm.xlu0 %700, %v28
  %v702 = vpop.permute.xlu0 %701
  %704 = vset.pattern.permute.xlu0 3
  %705 = vperm.xlu0 %704, %v29
  %v706 = vpop.permute.xlu0 %705
  %708 = vset.pattern.permute.xlu0 3
  %709 = vperm.xlu0 %708, %v30
  %v710 = vpop.permute.xlu0 %709
  %712 = vset.pattern.permute.xlu0 3
  %713 = vperm.xlu0 %712, %v31
  %v714 = vpop.permute.xlu0 %713
  %716 = vset.pattern.permute.xlu0 3
  %717 = vperm.xlu0 %716, %v32
  %v718 = vpop.permute.xlu0 %717
  %720 = vset.pattern.permute.xlu0 3
  %721 = vperm.xlu0 %720, %v33
  %v722 = vpop.permute.xlu0 %721
  %724 = vset.pattern.permute.xlu0 3
  %725 = vperm.xlu0 %724, %v34
  %v726 = vpop.permute.xlu0 %725
  %728 = vset.pattern.permute.xlu0 3
  %729 = vperm.xlu0 %728, %v35
  %v730 = vpop.permute.xlu0 %729
  %732 = vset.pattern.permute.xlu0 3
  %733 = vperm.xlu0 %732, %v36
  %v734 = vpop.permute.xlu0 %733
  %736 = vset.pattern.permute.xlu0 3
  %737 = vperm.xlu0 %736, %v37
  %v738 = vpop.permute.xlu0 %737
  %v740 = vlaneseq
  %v741 = vshrl.u32 %v740, 7
  %v742 = vsub.s32 3, %v741
  %v743 = vrot.slane %v20, %v742
  %v744 = vlaneseq
  %v745 = vshrl.u32 %v744, 7
  %v746 = vsub.s32 7, %v745
  %v747 = vrot.slane %v20, %v746
  %v748 = vlaneseq
  %v749 = vshrl.u32 %v748, 7
  %v750 = vsub.s32 3, %v749
  %v751 = vrot.slane %v21, %v750
  %v752 = vlaneseq
  %v753 = vshrl.u32 %v752, 7
  %v754 = vsub.s32 7, %v753
  %v755 = vrot.slane %v21, %v754
  %v760 = vlaneseq
  %v761 = vshrl.u32 %v760, 7
  %v762 = vsub.s32 3, %v761
  %v763 = vrot.slane %v743, %v762
  %v764 = vlaneseq
  %v765 = vshrl.u32 %v764, 7
  %v766 = vsub.s32 3, %v765
  %v767 = vrot.slane %v747, %v766
  %v768 = vlaneseq
  %v769 = vshrl.u32 %v768, 7
  %v770 = vsub.s32 3, %v769
  %v771 = vrot.slane %v751, %v770
  %v772 = vlaneseq
  %v773 = vshrl.u32 %v772, 7
  %v774 = vsub.s32 3, %v773
  %v775 = vrot.slane %v755, %v774
  %v776 = vmul.f32 %v678, %v763
  %v777 = vmul.f32 %v678, %v767
  %v778 = vmul.f32 %v678, %v771
  %v779 = vmul.f32 %v678, %v775
  %v780 = vmul.f32 %v682, %v763
  %v781 = vmul.f32 %v682, %v767
  %v782 = vmul.f32 %v682, %v771
  %v783 = vmul.f32 %v682, %v775
  %v784 = vmul.f32 %v686, %v763
  %v785 = vmul.f32 %v686, %v767
  %v786 = vmul.f32 %v686, %v771
  %v787 = vmul.f32 %v686, %v775
  %v788 = vmul.f32 %v690, %v763
  %v789 = vmul.f32 %v690, %v767
  %v790 = vmul.f32 %v690, %v771
  %v791 = vmul.f32 %v690, %v775
  %v792 = vmul.f32 %v694, %v763
  %v793 = vmul.f32 %v694, %v767
  %v794 = vmul.f32 %v694, %v771
  %v795 = vmul.f32 %v694, %v775
  %v796 = vmul.f32 %v698, %v763
  %v797 = vmul.f32 %v698, %v767
  %v798 = vmul.f32 %v698, %v771
  %v799 = vmul.f32 %v698, %v775
  %v800 = vmul.f32 %v702, %v763
  %v801 = vmul.f32 %v702, %v767
  %v802 = vmul.f32 %v702, %v771
  %v803 = vmul.f32 %v702, %v775
  %v804 = vmul.f32 %v706, %v763
  %v805 = vmul.f32 %v706, %v767
  %v806 = vmul.f32 %v706, %v771
  %v807 = vmul.f32 %v706, %v775
  %v808 = vmul.f32 %v710, %v763
  %v809 = vmul.f32 %v710, %v767
  %v810 = vmul.f32 %v710, %v771
  %v811 = vmul.f32 %v710, %v775
  %v812 = vmul.f32 %v714, %v763
  %v813 = vmul.f32 %v714, %v767
  %v814 = vmul.f32 %v714, %v771
  %v815 = vmul.f32 %v714, %v775
  %v816 = vmul.f32 %v718, %v763
  %v817 = vmul.f32 %v718, %v767
  %v818 = vmul.f32 %v718, %v771
  %v819 = vmul.f32 %v718, %v775
  %v820 = vmul.f32 %v722, %v763
  %v821 = vmul.f32 %v722, %v767
  %v822 = vmul.f32 %v722, %v771
  %v823 = vmul.f32 %v722, %v775
  %v824 = vmul.f32 %v726, %v763
  %v825 = vmul.f32 %v726, %v767
  %v826 = vmul.f32 %v726, %v771
  %v827 = vmul.f32 %v726, %v775
  %v828 = vmul.f32 %v730, %v763
  %v829 = vmul.f32 %v730, %v767
  %v830 = vmul.f32 %v730, %v771
  %v831 = vmul.f32 %v730, %v775
  %v832 = vmul.f32 %v734, %v763
  %v833 = vmul.f32 %v734, %v767
  %v834 = vmul.f32 %v734, %v771
  %v835 = vmul.f32 %v734, %v775
  %v836 = vmul.f32 %v738, %v763
  %v837 = vmul.f32 %v738, %v767
  %v838 = vmul.f32 %v738, %v771
  %v839 = vmul.f32 %v738, %v775
  %v840 = vadd.f32 %v612, %v776
  %v841 = vadd.f32 %v613, %v777
  %v842 = vadd.f32 %v614, %v778
  %v843 = vadd.f32 %v615, %v779
  %v844 = vadd.f32 %v616, %v780
  %v845 = vadd.f32 %v617, %v781
  %v846 = vadd.f32 %v618, %v782
  %v847 = vadd.f32 %v619, %v783
  %v848 = vadd.f32 %v620, %v784
  %v849 = vadd.f32 %v621, %v785
  %v850 = vadd.f32 %v622, %v786
  %v851 = vadd.f32 %v623, %v787
  %v852 = vadd.f32 %v624, %v788
  %v853 = vadd.f32 %v625, %v789
  %v854 = vadd.f32 %v626, %v790
  %v855 = vadd.f32 %v627, %v791
  %v856 = vadd.f32 %v628, %v792
  %v857 = vadd.f32 %v629, %v793
  %v858 = vadd.f32 %v630, %v794
  %v859 = vadd.f32 %v631, %v795
  %v860 = vadd.f32 %v632, %v796
  %v861 = vadd.f32 %v633, %v797
  %v862 = vadd.f32 %v634, %v798
  %v863 = vadd.f32 %v635, %v799
  %v864 = vadd.f32 %v636, %v800
  %v865 = vadd.f32 %v637, %v801
  %v866 = vadd.f32 %v638, %v802
  %v867 = vadd.f32 %v639, %v803
  %v868 = vadd.f32 %v640, %v804
  %v869 = vadd.f32 %v641, %v805
  %v870 = vadd.f32 %v642, %v806
  %v871 = vadd.f32 %v643, %v807
  %v872 = vadd.f32 %v644, %v808
  %v873 = vadd.f32 %v645, %v809
  %v874 = vadd.f32 %v646, %v810
  %v875 = vadd.f32 %v647, %v811
  %v876 = vadd.f32 %v648, %v812
  %v877 = vadd.f32 %v649, %v813
  %v878 = vadd.f32 %v650, %v814
  %v879 = vadd.f32 %v651, %v815
  %v880 = vadd.f32 %v652, %v816
  %v881 = vadd.f32 %v653, %v817
  %v882 = vadd.f32 %v654, %v818
  %v883 = vadd.f32 %v655, %v819
  %v884 = vadd.f32 %v656, %v820
  %v885 = vadd.f32 %v657, %v821
  %v886 = vadd.f32 %v658, %v822
  %v887 = vadd.f32 %v659, %v823
  %v888 = vadd.f32 %v660, %v824
  %v889 = vadd.f32 %v661, %v825
  %v890 = vadd.f32 %v662, %v826
  %v891 = vadd.f32 %v663, %v827
  %v892 = vadd.f32 %v664, %v828
  %v893 = vadd.f32 %v665, %v829
  %v894 = vadd.f32 %v666, %v830
  %v895 = vadd.f32 %v667, %v831
  %v896 = vadd.f32 %v668, %v832
  %v897 = vadd.f32 %v669, %v833
  %v898 = vadd.f32 %v670, %v834
  %v899 = vadd.f32 %v671, %v835
  %v900 = vadd.f32 %v672, %v836
  %v901 = vadd.f32 %v673, %v837
  %v902 = vadd.f32 %v674, %v838
  %v903 = vadd.f32 %v675, %v839
  %v904 = vadd.f32 %v840, %v841
  %v905 = vadd.f32 %v904, %v842
  %v906 = vadd.f32 %v905, %v843
  %907 = vadd.xlane.f32.xlu0 %v906
  %v908 = vpop.xlane.xlu0 %907
  %v909 = vadd.f32 %v844, %v845
  %v910 = vadd.f32 %v909, %v846
  %v911 = vadd.f32 %v910, %v847
  %912 = vadd.xlane.f32.xlu0 %v911
  %v913 = vpop.xlane.xlu0 %912
  %v914 = vadd.f32 %v848, %v849
  %v915 = vadd.f32 %v914, %v850
  %v916 = vadd.f32 %v915, %v851
  %917 = vadd.xlane.f32.xlu0 %v916
  %v918 = vpop.xlane.xlu0 %917
  %v919 = vadd.f32 %v852, %v853
  %v920 = vadd.f32 %v919, %v854
  %v921 = vadd.f32 %v920, %v855
  %922 = vadd.xlane.f32.xlu0 %v921
  %v923 = vpop.xlane.xlu0 %922
  %v924 = vadd.f32 %v856, %v857
  %v925 = vadd.f32 %v924, %v858
  %v926 = vadd.f32 %v925, %v859
  %927 = vadd.xlane.f32.xlu0 %v926
  %v928 = vpop.xlane.xlu0 %927
  %v929 = vadd.f32 %v860, %v861
  %v930 = vadd.f32 %v929, %v862
  %v931 = vadd.f32 %v930, %v863
  %932 = vadd.xlane.f32.xlu0 %v931
  %v933 = vpop.xlane.xlu0 %932
  %v934 = vadd.f32 %v864, %v865
  %v935 = vadd.f32 %v934, %v866
  %v936 = vadd.f32 %v935, %v867
  %937 = vadd.xlane.f32.xlu0 %v936
  %v938 = vpop.xlane.xlu0 %937
  %v939 = vadd.f32 %v868, %v869
  %v940 = vadd.f32 %v939, %v870
  %v941 = vadd.f32 %v940, %v871
  %942 = vadd.xlane.f32.xlu0 %v941
  %v943 = vpop.xlane.xlu0 %942
  %v944 = vadd.f32 %v872, %v873
  %v945 = vadd.f32 %v944, %v874
  %v946 = vadd.f32 %v945, %v875
  %947 = vadd.xlane.f32.xlu0 %v946
  %v948 = vpop.xlane.xlu0 %947
  %v949 = vadd.f32 %v876, %v877
  %v950 = vadd.f32 %v949, %v878
  %v951 = vadd.f32 %v950, %v879
  %952 = vadd.xlane.f32.xlu0 %v951
  %v953 = vpop.xlane.xlu0 %952
  %v954 = vadd.f32 %v880, %v881
  %v955 = vadd.f32 %v954, %v882
  %v956 = vadd.f32 %v955, %v883
  %957 = vadd.xlane.f32.xlu0 %v956
  %v958 = vpop.xlane.xlu0 %957
  %v959 = vadd.f32 %v884, %v885
  %v960 = vadd.f32 %v959, %v886
  %v961 = vadd.f32 %v960, %v887
  %962 = vadd.xlane.f32.xlu0 %v961
  %v963 = vpop.xlane.xlu0 %962
  %v964 = vadd.f32 %v888, %v889
  %v965 = vadd.f32 %v964, %v890
  %v966 = vadd.f32 %v965, %v891
  %967 = vadd.xlane.f32.xlu0 %v966
  %v968 = vpop.xlane.xlu0 %967
  %v969 = vadd.f32 %v892, %v893
  %v970 = vadd.f32 %v969, %v894
  %v971 = vadd.f32 %v970, %v895
  %972 = vadd.xlane.f32.xlu0 %v971
  %v973 = vpop.xlane.xlu0 %972
  %v974 = vadd.f32 %v896, %v897
  %v975 = vadd.f32 %v974, %v898
  %v976 = vadd.f32 %v975, %v899
  %977 = vadd.xlane.f32.xlu0 %v976
  %v978 = vpop.xlane.xlu0 %977
  %v979 = vadd.f32 %v900, %v901
  %v980 = vadd.f32 %v979, %v902
  %v981 = vadd.f32 %v980, %v903
  %982 = vadd.xlane.f32.xlu0 %v981
  %v983 = vpop.xlane.xlu0 %982
  %v984 = vmul.f32 %v908, 0.001953125
  %v985 = vmul.f32 %v913, 0.001953125
  %v986 = vmul.f32 %v918, 0.001953125
  %v987 = vmul.f32 %v923, 0.001953125
  %v988 = vmul.f32 %v928, 0.001953125
  %v989 = vmul.f32 %v933, 0.001953125
  %v990 = vmul.f32 %v938, 0.001953125
  %v991 = vmul.f32 %v943, 0.001953125
  %v992 = vmul.f32 %v948, 0.001953125
  %v993 = vmul.f32 %v953, 0.001953125
  %v994 = vmul.f32 %v958, 0.001953125
  %v995 = vmul.f32 %v963, 0.001953125
  %v996 = vmul.f32 %v968, 0.001953125
  %v997 = vmul.f32 %v973, 0.001953125
  %v998 = vmul.f32 %v978, 0.001953125
  %v999 = vmul.f32 %v983, 0.001953125
  %v1000 = vmul.f32 %v840, %v840
  %v1001 = vmul.f32 %v841, %v841
  %v1002 = vmul.f32 %v842, %v842
  %v1003 = vmul.f32 %v843, %v843
  %v1004 = vmul.f32 %v844, %v844
  %v1005 = vmul.f32 %v845, %v845
  %v1006 = vmul.f32 %v846, %v846
  %v1007 = vmul.f32 %v847, %v847
  %v1008 = vmul.f32 %v848, %v848
  %v1009 = vmul.f32 %v849, %v849
  %v1010 = vmul.f32 %v850, %v850
  %v1011 = vmul.f32 %v851, %v851
  %v1012 = vmul.f32 %v852, %v852
  %v1013 = vmul.f32 %v853, %v853
  %v1014 = vmul.f32 %v854, %v854
  %v1015 = vmul.f32 %v855, %v855
  %v1016 = vmul.f32 %v856, %v856
  %v1017 = vmul.f32 %v857, %v857
  %v1018 = vmul.f32 %v858, %v858
  %v1019 = vmul.f32 %v859, %v859
  %v1020 = vmul.f32 %v860, %v860
  %v1021 = vmul.f32 %v861, %v861
  %v1022 = vmul.f32 %v862, %v862
  %v1023 = vmul.f32 %v863, %v863
  %v1024 = vmul.f32 %v864, %v864
  %v1025 = vmul.f32 %v865, %v865
  %v1026 = vmul.f32 %v866, %v866
  %v1027 = vmul.f32 %v867, %v867
  %v1028 = vmul.f32 %v868, %v868
  %v1029 = vmul.f32 %v869, %v869
  %v1030 = vmul.f32 %v870, %v870
  %v1031 = vmul.f32 %v871, %v871
  %v1032 = vmul.f32 %v872, %v872
  %v1033 = vmul.f32 %v873, %v873
  %v1034 = vmul.f32 %v874, %v874
  %v1035 = vmul.f32 %v875, %v875
  %v1036 = vmul.f32 %v876, %v876
  %v1037 = vmul.f32 %v877, %v877
  %v1038 = vmul.f32 %v878, %v878
  %v1039 = vmul.f32 %v879, %v879
  %v1040 = vmul.f32 %v880, %v880
  %v1041 = vmul.f32 %v881, %v881
  %v1042 = vmul.f32 %v882, %v882
  %v1043 = vmul.f32 %v883, %v883
  %v1044 = vmul.f32 %v884, %v884
  %v1045 = vmul.f32 %v885, %v885
  %v1046 = vmul.f32 %v886, %v886
  %v1047 = vmul.f32 %v887, %v887
  %v1048 = vmul.f32 %v888, %v888
  %v1049 = vmul.f32 %v889, %v889
  %v1050 = vmul.f32 %v890, %v890
  %v1051 = vmul.f32 %v891, %v891
  %v1052 = vmul.f32 %v892, %v892
  %v1053 = vmul.f32 %v893, %v893
  %v1054 = vmul.f32 %v894, %v894
  %v1055 = vmul.f32 %v895, %v895
  %v1056 = vmul.f32 %v896, %v896
  %v1057 = vmul.f32 %v897, %v897
  %v1058 = vmul.f32 %v898, %v898
  %v1059 = vmul.f32 %v899, %v899
  %v1060 = vmul.f32 %v900, %v900
  %v1061 = vmul.f32 %v901, %v901
  %v1062 = vmul.f32 %v902, %v902
  %v1063 = vmul.f32 %v903, %v903
  %v1064 = vadd.f32 %v1000, %v1001
  %v1065 = vadd.f32 %v1064, %v1002
  %v1066 = vadd.f32 %v1065, %v1003
  %1067 = vadd.xlane.f32.xlu0 %v1066
  %v1068 = vpop.xlane.xlu0 %1067
  %v1069 = vadd.f32 %v1004, %v1005
  %v1070 = vadd.f32 %v1069, %v1006
  %v1071 = vadd.f32 %v1070, %v1007
  %1072 = vadd.xlane.f32.xlu0 %v1071
  %v1073 = vpop.xlane.xlu0 %1072
  %v1074 = vadd.f32 %v1008, %v1009
  %v1075 = vadd.f32 %v1074, %v1010
  %v1076 = vadd.f32 %v1075, %v1011
  %1077 = vadd.xlane.f32.xlu0 %v1076
  %v1078 = vpop.xlane.xlu0 %1077
  %v1079 = vadd.f32 %v1012, %v1013
  %v1080 = vadd.f32 %v1079, %v1014
  %v1081 = vadd.f32 %v1080, %v1015
  %1082 = vadd.xlane.f32.xlu0 %v1081
  %v1083 = vpop.xlane.xlu0 %1082
  %v1084 = vadd.f32 %v1016, %v1017
  %v1085 = vadd.f32 %v1084, %v1018
  %v1086 = vadd.f32 %v1085, %v1019
  %1087 = vadd.xlane.f32.xlu0 %v1086
  %v1088 = vpop.xlane.xlu0 %1087
  %v1089 = vadd.f32 %v1020, %v1021
  %v1090 = vadd.f32 %v1089, %v1022
  %v1091 = vadd.f32 %v1090, %v1023
  %1092 = vadd.xlane.f32.xlu0 %v1091
  %v1093 = vpop.xlane.xlu0 %1092
  %v1094 = vadd.f32 %v1024, %v1025
  %v1095 = vadd.f32 %v1094, %v1026
  %v1096 = vadd.f32 %v1095, %v1027
  %1097 = vadd.xlane.f32.xlu0 %v1096
  %v1098 = vpop.xlane.xlu0 %1097
  %v1099 = vadd.f32 %v1028, %v1029
  %v1100 = vadd.f32 %v1099, %v1030
  %v1101 = vadd.f32 %v1100, %v1031
  %1102 = vadd.xlane.f32.xlu0 %v1101
  %v1103 = vpop.xlane.xlu0 %1102
  %v1104 = vadd.f32 %v1032, %v1033
  %v1105 = vadd.f32 %v1104, %v1034
  %v1106 = vadd.f32 %v1105, %v1035
  %1107 = vadd.xlane.f32.xlu0 %v1106
  %v1108 = vpop.xlane.xlu0 %1107
  %v1109 = vadd.f32 %v1036, %v1037
  %v1110 = vadd.f32 %v1109, %v1038
  %v1111 = vadd.f32 %v1110, %v1039
  %1112 = vadd.xlane.f32.xlu0 %v1111
  %v1113 = vpop.xlane.xlu0 %1112
  %v1114 = vadd.f32 %v1040, %v1041
  %v1115 = vadd.f32 %v1114, %v1042
  %v1116 = vadd.f32 %v1115, %v1043
  %1117 = vadd.xlane.f32.xlu0 %v1116
  %v1118 = vpop.xlane.xlu0 %1117
  %v1119 = vadd.f32 %v1044, %v1045
  %v1120 = vadd.f32 %v1119, %v1046
  %v1121 = vadd.f32 %v1120, %v1047
  %1122 = vadd.xlane.f32.xlu0 %v1121
  %v1123 = vpop.xlane.xlu0 %1122
  %v1124 = vadd.f32 %v1048, %v1049
  %v1125 = vadd.f32 %v1124, %v1050
  %v1126 = vadd.f32 %v1125, %v1051
  %1127 = vadd.xlane.f32.xlu0 %v1126
  %v1128 = vpop.xlane.xlu0 %1127
  %v1129 = vadd.f32 %v1052, %v1053
  %v1130 = vadd.f32 %v1129, %v1054
  %v1131 = vadd.f32 %v1130, %v1055
  %1132 = vadd.xlane.f32.xlu0 %v1131
  %v1133 = vpop.xlane.xlu0 %1132
  %v1134 = vadd.f32 %v1056, %v1057
  %v1135 = vadd.f32 %v1134, %v1058
  %v1136 = vadd.f32 %v1135, %v1059
  %1137 = vadd.xlane.f32.xlu0 %v1136
  %v1138 = vpop.xlane.xlu0 %1137
  %v1139 = vadd.f32 %v1060, %v1061
  %v1140 = vadd.f32 %v1139, %v1062
  %v1141 = vadd.f32 %v1140, %v1063
  %1142 = vadd.xlane.f32.xlu0 %v1141
  %v1143 = vpop.xlane.xlu0 %1142
  %v1144 = vmul.f32 %v1068, 0.001953125
  %v1145 = vmul.f32 %v1073, 0.001953125
  %v1146 = vmul.f32 %v1078, 0.001953125
  %v1147 = vmul.f32 %v1083, 0.001953125
  %v1148 = vmul.f32 %v1088, 0.001953125
  %v1149 = vmul.f32 %v1093, 0.001953125
  %v1150 = vmul.f32 %v1098, 0.001953125
  %v1151 = vmul.f32 %v1103, 0.001953125
  %v1152 = vmul.f32 %v1108, 0.001953125
  %v1153 = vmul.f32 %v1113, 0.001953125
  %v1154 = vmul.f32 %v1118, 0.001953125
  %v1155 = vmul.f32 %v1123, 0.001953125
  %v1156 = vmul.f32 %v1128, 0.001953125
  %v1157 = vmul.f32 %v1133, 0.001953125
  %v1158 = vmul.f32 %v1138, 0.001953125
  %v1159 = vmul.f32 %v1143, 0.001953125
  %v1160 = vmul.f32 %v984, %v984
  %v1161 = vmul.f32 %v985, %v985
  %v1162 = vmul.f32 %v986, %v986
  %v1163 = vmul.f32 %v987, %v987
  %v1164 = vmul.f32 %v988, %v988
  %v1165 = vmul.f32 %v989, %v989
  %v1166 = vmul.f32 %v990, %v990
  %v1167 = vmul.f32 %v991, %v991
  %v1168 = vmul.f32 %v992, %v992
  %v1169 = vmul.f32 %v993, %v993
  %v1170 = vmul.f32 %v994, %v994
  %v1171 = vmul.f32 %v995, %v995
  %v1172 = vmul.f32 %v996, %v996
  %v1173 = vmul.f32 %v997, %v997
  %v1174 = vmul.f32 %v998, %v998
  %v1175 = vmul.f32 %v999, %v999
  %v1176 = vsub.f32 %v1144, %v1160
  %v1177 = vsub.f32 %v1145, %v1161
  %v1178 = vsub.f32 %v1146, %v1162
  %v1179 = vsub.f32 %v1147, %v1163
  %v1180 = vsub.f32 %v1148, %v1164
  %v1181 = vsub.f32 %v1149, %v1165
  %v1182 = vsub.f32 %v1150, %v1166
  %v1183 = vsub.f32 %v1151, %v1167
  %v1184 = vsub.f32 %v1152, %v1168
  %v1185 = vsub.f32 %v1153, %v1169
  %v1186 = vsub.f32 %v1154, %v1170
  %v1187 = vsub.f32 %v1155, %v1171
  %v1188 = vsub.f32 %v1156, %v1172
  %v1189 = vsub.f32 %v1157, %v1173
  %v1190 = vsub.f32 %v1158, %v1174
  %v1191 = vsub.f32 %v1159, %v1175
  %v1192 = vsub.f32 %v840, %v984
  %v1193 = vsub.f32 %v841, %v984
  %v1194 = vsub.f32 %v842, %v984
  %v1195 = vsub.f32 %v843, %v984
  %v1196 = vsub.f32 %v844, %v985
  %v1197 = vsub.f32 %v845, %v985
  %v1198 = vsub.f32 %v846, %v985
  %v1199 = vsub.f32 %v847, %v985
  %v1200 = vsub.f32 %v848, %v986
  %v1201 = vsub.f32 %v849, %v986
  %v1202 = vsub.f32 %v850, %v986
  %v1203 = vsub.f32 %v851, %v986
  %v1204 = vsub.f32 %v852, %v987
  %v1205 = vsub.f32 %v853, %v987
  %v1206 = vsub.f32 %v854, %v987
  %v1207 = vsub.f32 %v855, %v987
  %v1208 = vsub.f32 %v856, %v988
  %v1209 = vsub.f32 %v857, %v988
  %v1210 = vsub.f32 %v858, %v988
  %v1211 = vsub.f32 %v859, %v988
  %v1212 = vsub.f32 %v860, %v989
  %v1213 = vsub.f32 %v861, %v989
  %v1214 = vsub.f32 %v862, %v989
  %v1215 = vsub.f32 %v863, %v989
  %v1216 = vsub.f32 %v864, %v990
  %v1217 = vsub.f32 %v865, %v990
  %v1218 = vsub.f32 %v866, %v990
  %v1219 = vsub.f32 %v867, %v990
  %v1220 = vsub.f32 %v868, %v991
  %v1221 = vsub.f32 %v869, %v991
  %v1222 = vsub.f32 %v870, %v991
  %v1223 = vsub.f32 %v871, %v991
  %v1224 = vsub.f32 %v872, %v992
  %v1225 = vsub.f32 %v873, %v992
  %v1226 = vsub.f32 %v874, %v992
  %v1227 = vsub.f32 %v875, %v992
  %v1228 = vsub.f32 %v876, %v993
  %v1229 = vsub.f32 %v877, %v993
  %v1230 = vsub.f32 %v878, %v993
  %v1231 = vsub.f32 %v879, %v993
  %v1232 = vsub.f32 %v880, %v994
  %v1233 = vsub.f32 %v881, %v994
  %v1234 = vsub.f32 %v882, %v994
  %v1235 = vsub.f32 %v883, %v994
  %v1236 = vsub.f32 %v884, %v995
  %v1237 = vsub.f32 %v885, %v995
  %v1238 = vsub.f32 %v886, %v995
  %v1239 = vsub.f32 %v887, %v995
  %v1240 = vsub.f32 %v888, %v996
  %v1241 = vsub.f32 %v889, %v996
  %v1242 = vsub.f32 %v890, %v996
  %v1243 = vsub.f32 %v891, %v996
  %v1244 = vsub.f32 %v892, %v997
  %v1245 = vsub.f32 %v893, %v997
  %v1246 = vsub.f32 %v894, %v997
  %v1247 = vsub.f32 %v895, %v997
  %v1248 = vsub.f32 %v896, %v998
  %v1249 = vsub.f32 %v897, %v998
  %v1250 = vsub.f32 %v898, %v998
  %v1251 = vsub.f32 %v899, %v998
  %v1252 = vsub.f32 %v900, %v999
  %v1253 = vsub.f32 %v901, %v999
  %v1254 = vsub.f32 %v902, %v999
  %v1255 = vsub.f32 %v903, %v999
  %v1256 = vadd.f32 %v1176, 1e-05
  %v1257 = vadd.f32 %v1177, 1e-05
  %v1258 = vadd.f32 %v1178, 1e-05
  %v1259 = vadd.f32 %v1179, 1e-05
  %v1260 = vadd.f32 %v1180, 1e-05
  %v1261 = vadd.f32 %v1181, 1e-05
  %v1262 = vadd.f32 %v1182, 1e-05
  %v1263 = vadd.f32 %v1183, 1e-05
  %v1264 = vadd.f32 %v1184, 1e-05
  %v1265 = vadd.f32 %v1185, 1e-05
  %v1266 = vadd.f32 %v1186, 1e-05
  %v1267 = vadd.f32 %v1187, 1e-05
  %v1268 = vadd.f32 %v1188, 1e-05
  %v1269 = vadd.f32 %v1189, 1e-05
  %v1270 = vadd.f32 %v1190, 1e-05
  %v1271 = vadd.f32 %v1191, 1e-05
  %v1272 = vrsqrt.pop %v1256
  %v1273 = vrsqrt.pop %v1257
  %v1274 = vrsqrt.pop %v1258
  %v1275 = vrsqrt.pop %v1259
  %v1276 = vrsqrt.pop %v1260
  %v1277 = vrsqrt.pop %v1261
  %v1278 = vrsqrt.pop %v1262
  %v1279 = vrsqrt.pop %v1263
  %v1280 = vrsqrt.pop %v1264
  %v1281 = vrsqrt.pop %v1265
  %v1282 = vrsqrt.pop %v1266
  %v1283 = vrsqrt.pop %v1267
  %v1284 = vrsqrt.pop %v1268
  %v1285 = vrsqrt.pop %v1269
  %v1286 = vrsqrt.pop %v1270
  %v1287 = vrsqrt.pop %v1271
  %v1288 = vmul.f32 %v1192, %v1272
  %v1289 = vmul.f32 %v1193, %v1272
  %v1290 = vmul.f32 %v1194, %v1272
  %v1291 = vmul.f32 %v1195, %v1272
  %v1292 = vmul.f32 %v1196, %v1273
  %v1293 = vmul.f32 %v1197, %v1273
  %v1294 = vmul.f32 %v1198, %v1273
  %v1295 = vmul.f32 %v1199, %v1273
  %v1296 = vmul.f32 %v1200, %v1274
  %v1297 = vmul.f32 %v1201, %v1274
  %v1298 = vmul.f32 %v1202, %v1274
  %v1299 = vmul.f32 %v1203, %v1274
  %v1300 = vmul.f32 %v1204, %v1275
  %v1301 = vmul.f32 %v1205, %v1275
  %v1302 = vmul.f32 %v1206, %v1275
  %v1303 = vmul.f32 %v1207, %v1275
  %v1304 = vmul.f32 %v1208, %v1276
  %v1305 = vmul.f32 %v1209, %v1276
  %v1306 = vmul.f32 %v1210, %v1276
  %v1307 = vmul.f32 %v1211, %v1276
  %v1308 = vmul.f32 %v1212, %v1277
  %v1309 = vmul.f32 %v1213, %v1277
  %v1310 = vmul.f32 %v1214, %v1277
  %v1311 = vmul.f32 %v1215, %v1277
  %v1312 = vmul.f32 %v1216, %v1278
  %v1313 = vmul.f32 %v1217, %v1278
  %v1314 = vmul.f32 %v1218, %v1278
  %v1315 = vmul.f32 %v1219, %v1278
  %v1316 = vmul.f32 %v1220, %v1279
  %v1317 = vmul.f32 %v1221, %v1279
  %v1318 = vmul.f32 %v1222, %v1279
  %v1319 = vmul.f32 %v1223, %v1279
  %v1320 = vmul.f32 %v1224, %v1280
  %v1321 = vmul.f32 %v1225, %v1280
  %v1322 = vmul.f32 %v1226, %v1280
  %v1323 = vmul.f32 %v1227, %v1280
  %v1324 = vmul.f32 %v1228, %v1281
  %v1325 = vmul.f32 %v1229, %v1281
  %v1326 = vmul.f32 %v1230, %v1281
  %v1327 = vmul.f32 %v1231, %v1281
  %v1328 = vmul.f32 %v1232, %v1282
  %v1329 = vmul.f32 %v1233, %v1282
  %v1330 = vmul.f32 %v1234, %v1282
  %v1331 = vmul.f32 %v1235, %v1282
  %v1332 = vmul.f32 %v1236, %v1283
  %v1333 = vmul.f32 %v1237, %v1283
  %v1334 = vmul.f32 %v1238, %v1283
  %v1335 = vmul.f32 %v1239, %v1283
  %v1336 = vmul.f32 %v1240, %v1284
  %v1337 = vmul.f32 %v1241, %v1284
  %v1338 = vmul.f32 %v1242, %v1284
  %v1339 = vmul.f32 %v1243, %v1284
  %v1340 = vmul.f32 %v1244, %v1285
  %v1341 = vmul.f32 %v1245, %v1285
  %v1342 = vmul.f32 %v1246, %v1285
  %v1343 = vmul.f32 %v1247, %v1285
  %v1344 = vmul.f32 %v1248, %v1286
  %v1345 = vmul.f32 %v1249, %v1286
  %v1346 = vmul.f32 %v1250, %v1286
  %v1347 = vmul.f32 %v1251, %v1286
  %v1348 = vmul.f32 %v1252, %v1287
  %v1349 = vmul.f32 %v1253, %v1287
  %v1350 = vmul.f32 %v1254, %v1287
  %v1351 = vmul.f32 %v1255, %v1287
  %v1352 = vmax.f32 %v1288, 0.0
  %v1353 = vmax.f32 %v1289, 0.0
  %v1354 = vmax.f32 %v1290, 0.0
  %v1355 = vmax.f32 %v1291, 0.0
  %v1356 = vmax.f32 %v1292, 0.0
  %v1357 = vmax.f32 %v1293, 0.0
  %v1358 = vmax.f32 %v1294, 0.0
  %v1359 = vmax.f32 %v1295, 0.0
  %v1360 = vmax.f32 %v1296, 0.0
  %v1361 = vmax.f32 %v1297, 0.0
  %v1362 = vmax.f32 %v1298, 0.0
  %v1363 = vmax.f32 %v1299, 0.0
  %v1364 = vmax.f32 %v1300, 0.0
  %v1365 = vmax.f32 %v1301, 0.0
  %v1366 = vmax.f32 %v1302, 0.0
  %v1367 = vmax.f32 %v1303, 0.0
  %v1368 = vmax.f32 %v1304, 0.0
  %v1369 = vmax.f32 %v1305, 0.0
  %v1370 = vmax.f32 %v1306, 0.0
  %v1371 = vmax.f32 %v1307, 0.0
  %v1372 = vmax.f32 %v1308, 0.0
  %v1373 = vmax.f32 %v1309, 0.0
  %v1374 = vmax.f32 %v1310, 0.0
  %v1375 = vmax.f32 %v1311, 0.0
  %v1376 = vmax.f32 %v1312, 0.0
  %v1377 = vmax.f32 %v1313, 0.0
  %v1378 = vmax.f32 %v1314, 0.0
  %v1379 = vmax.f32 %v1315, 0.0
  %v1380 = vmax.f32 %v1316, 0.0
  %v1381 = vmax.f32 %v1317, 0.0
  %v1382 = vmax.f32 %v1318, 0.0
  %v1383 = vmax.f32 %v1319, 0.0
  %v1384 = vmax.f32 %v1320, 0.0
  %v1385 = vmax.f32 %v1321, 0.0
  %v1386 = vmax.f32 %v1322, 0.0
  %v1387 = vmax.f32 %v1323, 0.0
  %v1388 = vmax.f32 %v1324, 0.0
  %v1389 = vmax.f32 %v1325, 0.0
  %v1390 = vmax.f32 %v1326, 0.0
  %v1391 = vmax.f32 %v1327, 0.0
  %v1392 = vmax.f32 %v1328, 0.0
  %v1393 = vmax.f32 %v1329, 0.0
  %v1394 = vmax.f32 %v1330, 0.0
  %v1395 = vmax.f32 %v1331, 0.0
  %v1396 = vmax.f32 %v1332, 0.0
  %v1397 = vmax.f32 %v1333, 0.0
  %v1398 = vmax.f32 %v1334, 0.0
  %v1399 = vmax.f32 %v1335, 0.0
  %v1400 = vmax.f32 %v1336, 0.0
  %v1401 = vmax.f32 %v1337, 0.0
  %v1402 = vmax.f32 %v1338, 0.0
  %v1403 = vmax.f32 %v1339, 0.0
  %v1404 = vmax.f32 %v1340, 0.0
  %v1405 = vmax.f32 %v1341, 0.0
  %v1406 = vmax.f32 %v1342, 0.0
  %v1407 = vmax.f32 %v1343, 0.0
  %v1408 = vmax.f32 %v1344, 0.0
  %v1409 = vmax.f32 %v1345, 0.0
  %v1410 = vmax.f32 %v1346, 0.0
  %v1411 = vmax.f32 %v1347, 0.0
  %v1412 = vmax.f32 %v1348, 0.0
  %v1413 = vmax.f32 %v1349, 0.0
  %v1414 = vmax.f32 %v1350, 0.0
  %v1415 = vmax.f32 %v1351, 0.0
  %v1416 = vmin.f32 %v1352, 6.0
  %v1417 = vmin.f32 %v1353, 6.0
  %v1418 = vmin.f32 %v1354, 6.0
  %v1419 = vmin.f32 %v1355, 6.0
  %v1420 = vmin.f32 %v1356, 6.0
  %v1421 = vmin.f32 %v1357, 6.0
  %v1422 = vmin.f32 %v1358, 6.0
  %v1423 = vmin.f32 %v1359, 6.0
  %v1424 = vmin.f32 %v1360, 6.0
  %v1425 = vmin.f32 %v1361, 6.0
  %v1426 = vmin.f32 %v1362, 6.0
  %v1427 = vmin.f32 %v1363, 6.0
  %v1428 = vmin.f32 %v1364, 6.0
  %v1429 = vmin.f32 %v1365, 6.0
  %v1430 = vmin.f32 %v1366, 6.0
  %v1431 = vmin.f32 %v1367, 6.0
  %v1432 = vmin.f32 %v1368, 6.0
  %v1433 = vmin.f32 %v1369, 6.0
  %v1434 = vmin.f32 %v1370, 6.0
  %v1435 = vmin.f32 %v1371, 6.0
  %v1436 = vmin.f32 %v1372, 6.0
  %v1437 = vmin.f32 %v1373, 6.0
  %v1438 = vmin.f32 %v1374, 6.0
  %v1439 = vmin.f32 %v1375, 6.0
  %v1440 = vmin.f32 %v1376, 6.0
  %v1441 = vmin.f32 %v1377, 6.0
  %v1442 = vmin.f32 %v1378, 6.0
  %v1443 = vmin.f32 %v1379, 6.0
  %v1444 = vmin.f32 %v1380, 6.0
  %v1445 = vmin.f32 %v1381, 6.0
  %v1446 = vmin.f32 %v1382, 6.0
  %v1447 = vmin.f32 %v1383, 6.0
  %v1448 = vmin.f32 %v1384, 6.0
  %v1449 = vmin.f32 %v1385, 6.0
  %v1450 = vmin.f32 %v1386, 6.0
  %v1451 = vmin.f32 %v1387, 6.0
  %v1452 = vmin.f32 %v1388, 6.0
  %v1453 = vmin.f32 %v1389, 6.0
  %v1454 = vmin.f32 %v1390, 6.0
  %v1455 = vmin.f32 %v1391, 6.0
  %v1456 = vmin.f32 %v1392, 6.0
  %v1457 = vmin.f32 %v1393, 6.0
  %v1458 = vmin.f32 %v1394, 6.0
  %v1459 = vmin.f32 %v1395, 6.0
  %v1460 = vmin.f32 %v1396, 6.0
  %v1461 = vmin.f32 %v1397, 6.0
  %v1462 = vmin.f32 %v1398, 6.0
  %v1463 = vmin.f32 %v1399, 6.0
  %v1464 = vmin.f32 %v1400, 6.0
  %v1465 = vmin.f32 %v1401, 6.0
  %v1466 = vmin.f32 %v1402, 6.0
  %v1467 = vmin.f32 %v1403, 6.0
  %v1468 = vmin.f32 %v1404, 6.0
  %v1469 = vmin.f32 %v1405, 6.0
  %v1470 = vmin.f32 %v1406, 6.0
  %v1471 = vmin.f32 %v1407, 6.0
  %v1472 = vmin.f32 %v1408, 6.0
  %v1473 = vmin.f32 %v1409, 6.0
  %v1474 = vmin.f32 %v1410, 6.0
  %v1475 = vmin.f32 %v1411, 6.0
  %v1476 = vmin.f32 %v1412, 6.0
  %v1477 = vmin.f32 %v1413, 6.0
  %v1478 = vmin.f32 %v1414, 6.0
  %v1479 = vmin.f32 %v1415, 6.0
  %v1480 = vld [vmem:[%s2] sm:$0xff]
  %v1481 = vld [vmem:[%s2 + $0x8] sm:$0xff]
  %v1482 = vld [vmem:[%s2 + $0x10] sm:$0xff]
  %v1483 = vld [vmem:[%s2 + $0x18] sm:$0xff]
  %v1484 = vld [vmem:[%s2 + $0x20] sm:$0xff]
  %v1485 = vld [vmem:[%s2 + $0x28] sm:$0xff]
  %v1486 = vld [vmem:[%s2 + $0x30] sm:$0xff]
  %v1487 = vld [vmem:[%s2 + $0x38] sm:$0xff]
  %v1488 = vld [vmem:[%s2 + $0x40] sm:$0xff]
  %v1489 = vld [vmem:[%s2 + $0x48] sm:$0xff]
  %v1490 = vld [vmem:[%s2 + $0x50] sm:$0xff]
  %v1491 = vld [vmem:[%s2 + $0x58] sm:$0xff]
  %v1492 = vld [vmem:[%s2 + $0x60] sm:$0xff]
  %v1493 = vld [vmem:[%s2 + $0x68] sm:$0xff]
  %v1494 = vld [vmem:[%s2 + $0x70] sm:$0xff]
  %v1495 = vld [vmem:[%s2 + $0x78] sm:$0xff]
  %1497 = vset.pattern.permute.xlu0 4
  %1498 = vperm.xlu0 %1497, %v1480
  %v1499 = vpop.permute.xlu0 %1498
  %1502 = vset.pattern.permute.xlu0 4
  %1503 = vperm.xlu0 %1502, %v1481
  %v1504 = vpop.permute.xlu0 %1503
  %1507 = vset.pattern.permute.xlu0 4
  %1508 = vperm.xlu0 %1507, %v1482
  %v1509 = vpop.permute.xlu0 %1508
  %1512 = vset.pattern.permute.xlu0 4
  %1513 = vperm.xlu0 %1512, %v1483
  %v1514 = vpop.permute.xlu0 %1513
  %1517 = vset.pattern.permute.xlu0 4
  %1518 = vperm.xlu0 %1517, %v1484
  %v1519 = vpop.permute.xlu0 %1518
  %1522 = vset.pattern.permute.xlu0 4
  %1523 = vperm.xlu0 %1522, %v1485
  %v1524 = vpop.permute.xlu0 %1523
  %1527 = vset.pattern.permute.xlu0 4
  %1528 = vperm.xlu0 %1527, %v1486
  %v1529 = vpop.permute.xlu0 %1528
  %1532 = vset.pattern.permute.xlu0 4
  %1533 = vperm.xlu0 %1532, %v1487
  %v1534 = vpop.permute.xlu0 %1533
  %1537 = vset.pattern.permute.xlu0 4
  %1538 = vperm.xlu0 %1537, %v1488
  %v1539 = vpop.permute.xlu0 %1538
  %1542 = vset.pattern.permute.xlu0 4
  %1543 = vperm.xlu0 %1542, %v1489
  %v1544 = vpop.permute.xlu0 %1543
  %1547 = vset.pattern.permute.xlu0 4
  %1548 = vperm.xlu0 %1547, %v1490
  %v1549 = vpop.permute.xlu0 %1548
  %1552 = vset.pattern.permute.xlu0 4
  %1553 = vperm.xlu0 %1552, %v1491
  %v1554 = vpop.permute.xlu0 %1553
  %1557 = vset.pattern.permute.xlu0 4
  %1558 = vperm.xlu0 %1557, %v1492
  %v1559 = vpop.permute.xlu0 %1558
  %1562 = vset.pattern.permute.xlu0 4
  %1563 = vperm.xlu0 %1562, %v1493
  %v1564 = vpop.permute.xlu0 %1563
  %1567 = vset.pattern.permute.xlu0 4
  %1568 = vperm.xlu0 %1567, %v1494
  %v1569 = vpop.permute.xlu0 %1568
  %1572 = vset.pattern.permute.xlu0 4
  %1573 = vperm.xlu0 %1572, %v1495
  %v1574 = vpop.permute.xlu0 %1573
  %v1576 = vmul.f32 %v1416, %v1499
  %v1577 = vmul.f32 %v1417, %v1499
  %v1578 = vmul.f32 %v1418, %v1499
  %v1579 = vmul.f32 %v1419, %v1499
  %v1580 = vmul.f32 %v1420, %v1504
  %v1581 = vmul.f32 %v1421, %v1504
  %v1582 = vmul.f32 %v1422, %v1504
  %v1583 = vmul.f32 %v1423, %v1504
  %v1584 = vmul.f32 %v1424, %v1509
  %v1585 = vmul.f32 %v1425, %v1509
  %v1586 = vmul.f32 %v1426, %v1509
  %v1587 = vmul.f32 %v1427, %v1509
  %v1588 = vmul.f32 %v1428, %v1514
  %v1589 = vmul.f32 %v1429, %v1514
  %v1590 = vmul.f32 %v1430, %v1514
  %v1591 = vmul.f32 %v1431, %v1514
  %v1592 = vmul.f32 %v1432, %v1519
  %v1593 = vmul.f32 %v1433, %v1519
  %v1594 = vmul.f32 %v1434, %v1519
  %v1595 = vmul.f32 %v1435, %v1519
  %v1596 = vmul.f32 %v1436, %v1524
  %v1597 = vmul.f32 %v1437, %v1524
  %v1598 = vmul.f32 %v1438, %v1524
  %v1599 = vmul.f32 %v1439, %v1524
  %v1600 = vmul.f32 %v1440, %v1529
  %v1601 = vmul.f32 %v1441, %v1529
  %v1602 = vmul.f32 %v1442, %v1529
  %v1603 = vmul.f32 %v1443, %v1529
  %v1604 = vmul.f32 %v1444, %v1534
  %v1605 = vmul.f32 %v1445, %v1534
  %v1606 = vmul.f32 %v1446, %v1534
  %v1607 = vmul.f32 %v1447, %v1534
  %v1608 = vmul.f32 %v1448, %v1539
  %v1609 = vmul.f32 %v1449, %v1539
  %v1610 = vmul.f32 %v1450, %v1539
  %v1611 = vmul.f32 %v1451, %v1539
  %v1612 = vmul.f32 %v1452, %v1544
  %v1613 = vmul.f32 %v1453, %v1544
  %v1614 = vmul.f32 %v1454, %v1544
  %v1615 = vmul.f32 %v1455, %v1544
  %v1616 = vmul.f32 %v1456, %v1549
  %v1617 = vmul.f32 %v1457, %v1549
  %v1618 = vmul.f32 %v1458, %v1549
  %v1619 = vmul.f32 %v1459, %v1549
  %v1620 = vmul.f32 %v1460, %v1554
  %v1621 = vmul.f32 %v1461, %v1554
  %v1622 = vmul.f32 %v1462, %v1554
  %v1623 = vmul.f32 %v1463, %v1554
  %v1624 = vmul.f32 %v1464, %v1559
  %v1625 = vmul.f32 %v1465, %v1559
  %v1626 = vmul.f32 %v1466, %v1559
  %v1627 = vmul.f32 %v1467, %v1559
  %v1628 = vmul.f32 %v1468, %v1564
  %v1629 = vmul.f32 %v1469, %v1564
  %v1630 = vmul.f32 %v1470, %v1564
  %v1631 = vmul.f32 %v1471, %v1564
  %v1632 = vmul.f32 %v1472, %v1569
  %v1633 = vmul.f32 %v1473, %v1569
  %v1634 = vmul.f32 %v1474, %v1569
  %v1635 = vmul.f32 %v1475, %v1569
  %v1636 = vmul.f32 %v1476, %v1574
  %v1637 = vmul.f32 %v1477, %v1574
  %v1638 = vmul.f32 %v1478, %v1574
  %v1639 = vmul.f32 %v1479, %v1574
  %1640 = vrot.lane.b32.xlu0 %v1416, 17
  %v1641 = vpop.permute.xlu0 %1640
  %1642 = vrot.lane.b32.xlu0 %v1420, 17
  %v1643 = vpop.permute.xlu0 %1642
  %1644 = vrot.lane.b32.xlu0 %v1424, 17
  %v1645 = vpop.permute.xlu0 %1644
  %1646 = vrot.lane.b32.xlu0 %v1428, 17
  %v1647 = vpop.permute.xlu0 %1646
  %1648 = vrot.lane.b32.xlu0 %v1432, 17
  %v1649 = vpop.permute.xlu0 %1648
  %1650 = vrot.lane.b32.xlu0 %v1436, 17
  %v1651 = vpop.permute.xlu0 %1650
  %1652 = vrot.lane.b32.xlu0 %v1440, 17
  %v1653 = vpop.permute.xlu0 %1652
  %1654 = vrot.lane.b32.xlu0 %v1444, 17
  %v1655 = vpop.permute.xlu0 %1654
  %1656 = vrot.lane.b32.xlu0 %v1448, 17
  %v1657 = vpop.permute.xlu0 %1656
  %1658 = vrot.lane.b32.xlu0 %v1452, 17
  %v1659 = vpop.permute.xlu0 %1658
  %1660 = vrot.lane.b32.xlu0 %v1456, 17
  %v1661 = vpop.permute.xlu0 %1660
  %1662 = vrot.lane.b32.xlu0 %v1460, 17
  %v1663 = vpop.permute.xlu0 %1662
  %1664 = vrot.lane.b32.xlu0 %v1464, 17
  %v1665 = vpop.permute.xlu0 %1664
  %1666 = vrot.lane.b32.xlu0 %v1468, 17
  %v1667 = vpop.permute.xlu0 %1666
  %1668 = vrot.lane.b32.xlu0 %v1472, 17
  %v1669 = vpop.permute.xlu0 %1668
  %1670 = vrot.lane.b32.xlu0 %v1476, 17
  %v1671 = vpop.permute.xlu0 %1670
  %1672 = vrot.lane.b32.xlu0 %v1417, 17
  %v1673 = vpop.permute.xlu0 %1672
  %1674 = vrot.lane.b32.xlu0 %v1421, 17
  %v1675 = vpop.permute.xlu0 %1674
  %1676 = vrot.lane.b32.xlu0 %v1425, 17
  %v1677 = vpop.permute.xlu0 %1676
  %1678 = vrot.lane.b32.xlu0 %v1429, 17
  %v1679 = vpop.permute.xlu0 %1678
  %1680 = vrot.lane.b32.xlu0 %v1433, 17
  %v1681 = vpop.permute.xlu0 %1680
  %1682 = vrot.lane.b32.xlu0 %v1437, 17
  %v1683 = vpop.permute.xlu0 %1682
  %1684 = vrot.lane.b32.xlu0 %v1441, 17
  %v1685 = vpop.permute.xlu0 %1684
  %1686 = vrot.lane.b32.xlu0 %v1445, 17
  %v1687 = vpop.permute.xlu0 %1686
  %1688 = vrot.lane.b32.xlu0 %v1449, 17
  %v1689 = vpop.permute.xlu0 %1688
  %1690 = vrot.lane.b32.xlu0 %v1453, 17
  %v1691 = vpop.permute.xlu0 %1690
  %1692 = vrot.lane.b32.xlu0 %v1457, 17
  %v1693 = vpop.permute.xlu0 %1692
  %1694 = vrot.lane.b32.xlu0 %v1461, 17
  %v1695 = vpop.permute.xlu0 %1694
  %1696 = vrot.lane.b32.xlu0 %v1465, 17
  %v1697 = vpop.permute.xlu0 %1696
  %1698 = vrot.lane.b32.xlu0 %v1469, 17
  %v1699 = vpop.permute.xlu0 %1698
  %1700 = vrot.lane.b32.xlu0 %v1473, 17
  %v1701 = vpop.permute.xlu0 %1700
  %1702 = vrot.lane.b32.xlu0 %v1477, 17
  %v1703 = vpop.permute.xlu0 %1702
  %1704 = vrot.lane.b32.xlu0 %v1418, 17
  %v1705 = vpop.permute.xlu0 %1704
  %1706 = vrot.lane.b32.xlu0 %v1422, 17
  %v1707 = vpop.permute.xlu0 %1706
  %1708 = vrot.lane.b32.xlu0 %v1426, 17
  %v1709 = vpop.permute.xlu0 %1708
  %1710 = vrot.lane.b32.xlu0 %v1430, 17
  %v1711 = vpop.permute.xlu0 %1710
  %1712 = vrot.lane.b32.xlu0 %v1434, 17
  %v1713 = vpop.permute.xlu0 %1712
  %1714 = vrot.lane.b32.xlu0 %v1438, 17
  %v1715 = vpop.permute.xlu0 %1714
  %1716 = vrot.lane.b32.xlu0 %v1442, 17
  %v1717 = vpop.permute.xlu0 %1716
  %1718 = vrot.lane.b32.xlu0 %v1446, 17
  %v1719 = vpop.permute.xlu0 %1718
  %1720 = vrot.lane.b32.xlu0 %v1450, 17
  %v1721 = vpop.permute.xlu0 %1720
  %1722 = vrot.lane.b32.xlu0 %v1454, 17
  %v1723 = vpop.permute.xlu0 %1722
  %1724 = vrot.lane.b32.xlu0 %v1458, 17
  %v1725 = vpop.permute.xlu0 %1724
  %1726 = vrot.lane.b32.xlu0 %v1462, 17
  %v1727 = vpop.permute.xlu0 %1726
  %1728 = vrot.lane.b32.xlu0 %v1466, 17
  %v1729 = vpop.permute.xlu0 %1728
  %1730 = vrot.lane.b32.xlu0 %v1470, 17
  %v1731 = vpop.permute.xlu0 %1730
  %1732 = vrot.lane.b32.xlu0 %v1474, 17
  %v1733 = vpop.permute.xlu0 %1732
  %1734 = vrot.lane.b32.xlu0 %v1478, 17
  %v1735 = vpop.permute.xlu0 %1734
  %1736 = vrot.lane.b32.xlu0 %v1419, 17
  %v1737 = vpop.permute.xlu0 %1736
  %1738 = vrot.lane.b32.xlu0 %v1423, 17
  %v1739 = vpop.permute.xlu0 %1738
  %1740 = vrot.lane.b32.xlu0 %v1427, 17
  %v1741 = vpop.permute.xlu0 %1740
  %1742 = vrot.lane.b32.xlu0 %v1431, 17
  %v1743 = vpop.permute.xlu0 %1742
  %1744 = vrot.lane.b32.xlu0 %v1435, 17
  %v1745 = vpop.permute.xlu0 %1744
  %1746 = vrot.lane.b32.xlu0 %v1439, 17
  %v1747 = vpop.permute.xlu0 %1746
  %1748 = vrot.lane.b32.xlu0 %v1443, 17
  %v1749 = vpop.permute.xlu0 %1748
  %1750 = vrot.lane.b32.xlu0 %v1447, 17
  %v1751 = vpop.permute.xlu0 %1750
  %1752 = vrot.lane.b32.xlu0 %v1451, 17
  %v1753 = vpop.permute.xlu0 %1752
  %1754 = vrot.lane.b32.xlu0 %v1455, 17
  %v1755 = vpop.permute.xlu0 %1754
  %1756 = vrot.lane.b32.xlu0 %v1459, 17
  %v1757 = vpop.permute.xlu0 %1756
  %1758 = vrot.lane.b32.xlu0 %v1463, 17
  %v1759 = vpop.permute.xlu0 %1758
  %1760 = vrot.lane.b32.xlu0 %v1467, 17
  %v1761 = vpop.permute.xlu0 %1760
  %1762 = vrot.lane.b32.xlu0 %v1471, 17
  %v1763 = vpop.permute.xlu0 %1762
  %1764 = vrot.lane.b32.xlu0 %v1475, 17
  %v1765 = vpop.permute.xlu0 %1764
  %1766 = vrot.lane.b32.xlu0 %v1479, 17
  %v1767 = vpop.permute.xlu0 %1766
  %v1768 = vlaneseq
  %v1769 = vand.u32 %v1768, 127
  %vm1770 = vcmp.lt.s32.totalorder %v1769, 17
  %v1771 = vsel %vm1770, %v1705, %v1737
  %v1772 = vsel %vm1770, %v1707, %v1739
  %v1773 = vsel %vm1770, %v1709, %v1741
  %v1774 = vsel %vm1770, %v1711, %v1743
  %v1775 = vsel %vm1770, %v1713, %v1745
  %v1776 = vsel %vm1770, %v1715, %v1747
  %v1777 = vsel %vm1770, %v1717, %v1749
  %v1778 = vsel %vm1770, %v1719, %v1751
  %v1779 = vsel %vm1770, %v1721, %v1753
  %v1780 = vsel %vm1770, %v1723, %v1755
  %v1781 = vsel %vm1770, %v1725, %v1757
  %v1782 = vsel %vm1770, %v1727, %v1759
  %v1783 = vsel %vm1770, %v1729, %v1761
  %v1784 = vsel %vm1770, %v1731, %v1763
  %v1785 = vsel %vm1770, %v1733, %v1765
  %v1786 = vsel %vm1770, %v1735, %v1767
  %v1787 = vsel %vm1770, %v1673, %v1705
  %v1788 = vsel %vm1770, %v1675, %v1707
  %v1789 = vsel %vm1770, %v1677, %v1709
  %v1790 = vsel %vm1770, %v1679, %v1711
  %v1791 = vsel %vm1770, %v1681, %v1713
  %v1792 = vsel %vm1770, %v1683, %v1715
  %v1793 = vsel %vm1770, %v1685, %v1717
  %v1794 = vsel %vm1770, %v1687, %v1719
  %v1795 = vsel %vm1770, %v1689, %v1721
  %v1796 = vsel %vm1770, %v1691, %v1723
  %v1797 = vsel %vm1770, %v1693, %v1725
  %v1798 = vsel %vm1770, %v1695, %v1727
  %v1799 = vsel %vm1770, %v1697, %v1729
  %v1800 = vsel %vm1770, %v1699, %v1731
  %v1801 = vsel %vm1770, %v1701, %v1733
  %v1802 = vsel %vm1770, %v1703, %v1735
  %v1803 = vsel %vm1770, %v1641, %v1673
  %v1804 = vsel %vm1770, %v1643, %v1675
  %v1805 = vsel %vm1770, %v1645, %v1677
  %v1806 = vsel %vm1770, %v1647, %v1679
  %v1807 = vsel %vm1770, %v1649, %v1681
  %v1808 = vsel %vm1770, %v1651, %v1683
  %v1809 = vsel %vm1770, %v1653, %v1685
  %v1810 = vsel %vm1770, %v1655, %v1687
  %v1811 = vsel %vm1770, %v1657, %v1689
  %v1812 = vsel %vm1770, %v1659, %v1691
  %v1813 = vsel %vm1770, %v1661, %v1693
  %v1814 = vsel %vm1770, %v1663, %v1695
  %v1815 = vsel %vm1770, %v1665, %v1697
  %v1816 = vsel %vm1770, %v1667, %v1699
  %v1817 = vsel %vm1770, %v1669, %v1701
  %v1818 = vsel %vm1770, %v1671, %v1703
  %v1819 = vsel %vm1770, %v1737, %v1641
  %v1820 = vsel %vm1770, %v1739, %v1643
  %v1821 = vsel %vm1770, %v1741, %v1645
  %v1822 = vsel %vm1770, %v1743, %v1647
  %v1823 = vsel %vm1770, %v1745, %v1649
  %v1824 = vsel %vm1770, %v1747, %v1651
  %v1825 = vsel %vm1770, %v1749, %v1653
  %v1826 = vsel %vm1770, %v1751, %v1655
  %v1827 = vsel %vm1770, %v1753, %v1657
  %v1828 = vsel %vm1770, %v1755, %v1659
  %v1829 = vsel %vm1770, %v1757, %v1661
  %v1830 = vsel %vm1770, %v1759, %v1663
  %v1831 = vsel %vm1770, %v1761, %v1665
  %v1832 = vsel %vm1770, %v1763, %v1667
  %v1833 = vsel %vm1770, %v1765, %v1669
  %v1834 = vsel %vm1770, %v1767, %v1671
  %v1835 = vld [vmem:[%s3] ss:$8 sm:$0xf]
  %v1837 = vlaneseq
  %v1838 = vshrl.u32 %v1837, 7
  %v1839 = vsub.s32 0, %v1838
  %v1840 = vrot.slane %v1835, %v1839
  %v1841 = vlaneseq
  %v1842 = vshrl.u32 %v1841, 7
  %v1843 = vsub.s32 1, %v1842
  %v1844 = vrot.slane %v1835, %v1843
  %v1845 = vlaneseq
  %v1846 = vshrl.u32 %v1845, 7
  %v1847 = vsub.s32 2, %v1846
  %v1848 = vrot.slane %v1835, %v1847
  %v1849 = vlaneseq
  %v1850 = vshrl.u32 %v1849, 7
  %v1851 = vsub.s32 3, %v1850
  %v1852 = vrot.slane %v1835, %v1851
  %v1857 = vmul.f32 %v1819, %v1840
  %v1858 = vmul.f32 %v1803, %v1844
  %v1859 = vmul.f32 %v1787, %v1848
  %v1860 = vmul.f32 %v1771, %v1852
  %v1861 = vmul.f32 %v1820, %v1840
  %v1862 = vmul.f32 %v1804, %v1844
  %v1863 = vmul.f32 %v1788, %v1848
  %v1864 = vmul.f32 %v1772, %v1852
  %v1865 = vmul.f32 %v1821, %v1840
  %v1866 = vmul.f32 %v1805, %v1844
  %v1867 = vmul.f32 %v1789, %v1848
  %v1868 = vmul.f32 %v1773, %v1852
  %v1869 = vmul.f32 %v1822, %v1840
  %v1870 = vmul.f32 %v1806, %v1844
  %v1871 = vmul.f32 %v1790, %v1848
  %v1872 = vmul.f32 %v1774, %v1852
  %v1873 = vmul.f32 %v1823, %v1840
  %v1874 = vmul.f32 %v1807, %v1844
  %v1875 = vmul.f32 %v1791, %v1848
  %v1876 = vmul.f32 %v1775, %v1852
  %v1877 = vmul.f32 %v1824, %v1840
  %v1878 = vmul.f32 %v1808, %v1844
  %v1879 = vmul.f32 %v1792, %v1848
  %v1880 = vmul.f32 %v1776, %v1852
  %v1881 = vmul.f32 %v1825, %v1840
  %v1882 = vmul.f32 %v1809, %v1844
  %v1883 = vmul.f32 %v1793, %v1848
  %v1884 = vmul.f32 %v1777, %v1852
  %v1885 = vmul.f32 %v1826, %v1840
  %v1886 = vmul.f32 %v1810, %v1844
  %v1887 = vmul.f32 %v1794, %v1848
  %v1888 = vmul.f32 %v1778, %v1852
  %v1889 = vmul.f32 %v1827, %v1840
  %v1890 = vmul.f32 %v1811, %v1844
  %v1891 = vmul.f32 %v1795, %v1848
  %v1892 = vmul.f32 %v1779, %v1852
  %v1893 = vmul.f32 %v1828, %v1840
  %v1894 = vmul.f32 %v1812, %v1844
  %v1895 = vmul.f32 %v1796, %v1848
  %v1896 = vmul.f32 %v1780, %v1852
  %v1897 = vmul.f32 %v1829, %v1840
  %v1898 = vmul.f32 %v1813, %v1844
  %v1899 = vmul.f32 %v1797, %v1848
  %v1900 = vmul.f32 %v1781, %v1852
  %v1901 = vmul.f32 %v1830, %v1840
  %v1902 = vmul.f32 %v1814, %v1844
  %v1903 = vmul.f32 %v1798, %v1848
  %v1904 = vmul.f32 %v1782, %v1852
  %v1905 = vmul.f32 %v1831, %v1840
  %v1906 = vmul.f32 %v1815, %v1844
  %v1907 = vmul.f32 %v1799, %v1848
  %v1908 = vmul.f32 %v1783, %v1852
  %v1909 = vmul.f32 %v1832, %v1840
  %v1910 = vmul.f32 %v1816, %v1844
  %v1911 = vmul.f32 %v1800, %v1848
  %v1912 = vmul.f32 %v1784, %v1852
  %v1913 = vmul.f32 %v1833, %v1840
  %v1914 = vmul.f32 %v1817, %v1844
  %v1915 = vmul.f32 %v1801, %v1848
  %v1916 = vmul.f32 %v1785, %v1852
  %v1917 = vmul.f32 %v1834, %v1840
  %v1918 = vmul.f32 %v1818, %v1844
  %v1919 = vmul.f32 %v1802, %v1848
  %v1920 = vmul.f32 %v1786, %v1852
  %1921 = vset.pattern.permute.xlu0 0
  %1922 = vperm.xlu0 %1921, %v1480
  %v1923 = vpop.permute.xlu0 %1922
  %1925 = vset.pattern.permute.xlu0 0
  %1926 = vperm.xlu0 %1925, %v1481
  %v1927 = vpop.permute.xlu0 %1926
  %1929 = vset.pattern.permute.xlu0 0
  %1930 = vperm.xlu0 %1929, %v1482
  %v1931 = vpop.permute.xlu0 %1930
  %1933 = vset.pattern.permute.xlu0 0
  %1934 = vperm.xlu0 %1933, %v1483
  %v1935 = vpop.permute.xlu0 %1934
  %1937 = vset.pattern.permute.xlu0 0
  %1938 = vperm.xlu0 %1937, %v1484
  %v1939 = vpop.permute.xlu0 %1938
  %1941 = vset.pattern.permute.xlu0 0
  %1942 = vperm.xlu0 %1941, %v1485
  %v1943 = vpop.permute.xlu0 %1942
  %1945 = vset.pattern.permute.xlu0 0
  %1946 = vperm.xlu0 %1945, %v1486
  %v1947 = vpop.permute.xlu0 %1946
  %1949 = vset.pattern.permute.xlu0 0
  %1950 = vperm.xlu0 %1949, %v1487
  %v1951 = vpop.permute.xlu0 %1950
  %1953 = vset.pattern.permute.xlu0 0
  %1954 = vperm.xlu0 %1953, %v1488
  %v1955 = vpop.permute.xlu0 %1954
  %1957 = vset.pattern.permute.xlu0 0
  %1958 = vperm.xlu0 %1957, %v1489
  %v1959 = vpop.permute.xlu0 %1958
  %1961 = vset.pattern.permute.xlu0 0
  %1962 = vperm.xlu0 %1961, %v1490
  %v1963 = vpop.permute.xlu0 %1962
  %1965 = vset.pattern.permute.xlu0 0
  %1966 = vperm.xlu0 %1965, %v1491
  %v1967 = vpop.permute.xlu0 %1966
  %1969 = vset.pattern.permute.xlu0 0
  %1970 = vperm.xlu0 %1969, %v1492
  %v1971 = vpop.permute.xlu0 %1970
  %1973 = vset.pattern.permute.xlu0 0
  %1974 = vperm.xlu0 %1973, %v1493
  %v1975 = vpop.permute.xlu0 %1974
  %1977 = vset.pattern.permute.xlu0 0
  %1978 = vperm.xlu0 %1977, %v1494
  %v1979 = vpop.permute.xlu0 %1978
  %1981 = vset.pattern.permute.xlu0 0
  %1982 = vperm.xlu0 %1981, %v1495
  %v1983 = vpop.permute.xlu0 %1982
  %v1985 = vmul.f32 %v1857, %v1923
  %v1986 = vmul.f32 %v1858, %v1923
  %v1987 = vmul.f32 %v1859, %v1923
  %v1988 = vmul.f32 %v1860, %v1923
  %v1989 = vmul.f32 %v1861, %v1927
  %v1990 = vmul.f32 %v1862, %v1927
  %v1991 = vmul.f32 %v1863, %v1927
  %v1992 = vmul.f32 %v1864, %v1927
  %v1993 = vmul.f32 %v1865, %v1931
  %v1994 = vmul.f32 %v1866, %v1931
  %v1995 = vmul.f32 %v1867, %v1931
  %v1996 = vmul.f32 %v1868, %v1931
  %v1997 = vmul.f32 %v1869, %v1935
  %v1998 = vmul.f32 %v1870, %v1935
  %v1999 = vmul.f32 %v1871, %v1935
  %v2000 = vmul.f32 %v1872, %v1935
  %v2001 = vmul.f32 %v1873, %v1939
  %v2002 = vmul.f32 %v1874, %v1939
  %v2003 = vmul.f32 %v1875, %v1939
  %v2004 = vmul.f32 %v1876, %v1939
  %v2005 = vmul.f32 %v1877, %v1943
  %v2006 = vmul.f32 %v1878, %v1943
  %v2007 = vmul.f32 %v1879, %v1943
  %v2008 = vmul.f32 %v1880, %v1943
  %v2009 = vmul.f32 %v1881, %v1947
  %v2010 = vmul.f32 %v1882, %v1947
  %v2011 = vmul.f32 %v1883, %v1947
  %v2012 = vmul.f32 %v1884, %v1947
  %v2013 = vmul.f32 %v1885, %v1951
  %v2014 = vmul.f32 %v1886, %v1951
  %v2015 = vmul.f32 %v1887, %v1951
  %v2016 = vmul.f32 %v1888, %v1951
  %v2017 = vmul.f32 %v1889, %v1955
  %v2018 = vmul.f32 %v1890, %v1955
  %v2019 = vmul.f32 %v1891, %v1955
  %v2020 = vmul.f32 %v1892, %v1955
  %v2021 = vmul.f32 %v1893, %v1959
  %v2022 = vmul.f32 %v1894, %v1959
  %v2023 = vmul.f32 %v1895, %v1959
  %v2024 = vmul.f32 %v1896, %v1959
  %v2025 = vmul.f32 %v1897, %v1963
  %v2026 = vmul.f32 %v1898, %v1963
  %v2027 = vmul.f32 %v1899, %v1963
  %v2028 = vmul.f32 %v1900, %v1963
  %v2029 = vmul.f32 %v1901, %v1967
  %v2030 = vmul.f32 %v1902, %v1967
  %v2031 = vmul.f32 %v1903, %v1967
  %v2032 = vmul.f32 %v1904, %v1967
  %v2033 = vmul.f32 %v1905, %v1971
  %v2034 = vmul.f32 %v1906, %v1971
  %v2035 = vmul.f32 %v1907, %v1971
  %v2036 = vmul.f32 %v1908, %v1971
  %v2037 = vmul.f32 %v1909, %v1975
  %v2038 = vmul.f32 %v1910, %v1975
  %v2039 = vmul.f32 %v1911, %v1975
  %v2040 = vmul.f32 %v1912, %v1975
  %v2041 = vmul.f32 %v1913, %v1979
  %v2042 = vmul.f32 %v1914, %v1979
  %v2043 = vmul.f32 %v1915, %v1979
  %v2044 = vmul.f32 %v1916, %v1979
  %v2045 = vmul.f32 %v1917, %v1983
  %v2046 = vmul.f32 %v1918, %v1983
  %v2047 = vmul.f32 %v1919, %v1983
  %v2048 = vmul.f32 %v1920, %v1983
  %v2049 = vadd.f32 %v1576, %v1985
  %v2050 = vadd.f32 %v1577, %v1986
  %v2051 = vadd.f32 %v1578, %v1987
  %v2052 = vadd.f32 %v1579, %v1988
  %v2053 = vadd.f32 %v1580, %v1989
  %v2054 = vadd.f32 %v1581, %v1990
  %v2055 = vadd.f32 %v1582, %v1991
  %v2056 = vadd.f32 %v1583, %v1992
  %v2057 = vadd.f32 %v1584, %v1993
  %v2058 = vadd.f32 %v1585, %v1994
  %v2059 = vadd.f32 %v1586, %v1995
  %v2060 = vadd.f32 %v1587, %v1996
  %v2061 = vadd.f32 %v1588, %v1997
  %v2062 = vadd.f32 %v1589, %v1998
  %v2063 = vadd.f32 %v1590, %v1999
  %v2064 = vadd.f32 %v1591, %v2000
  %v2065 = vadd.f32 %v1592, %v2001
  %v2066 = vadd.f32 %v1593, %v2002
  %v2067 = vadd.f32 %v1594, %v2003
  %v2068 = vadd.f32 %v1595, %v2004
  %v2069 = vadd.f32 %v1596, %v2005
  %v2070 = vadd.f32 %v1597, %v2006
  %v2071 = vadd.f32 %v1598, %v2007
  %v2072 = vadd.f32 %v1599, %v2008
  %v2073 = vadd.f32 %v1600, %v2009
  %v2074 = vadd.f32 %v1601, %v2010
  %v2075 = vadd.f32 %v1602, %v2011
  %v2076 = vadd.f32 %v1603, %v2012
  %v2077 = vadd.f32 %v1604, %v2013
  %v2078 = vadd.f32 %v1605, %v2014
  %v2079 = vadd.f32 %v1606, %v2015
  %v2080 = vadd.f32 %v1607, %v2016
  %v2081 = vadd.f32 %v1608, %v2017
  %v2082 = vadd.f32 %v1609, %v2018
  %v2083 = vadd.f32 %v1610, %v2019
  %v2084 = vadd.f32 %v1611, %v2020
  %v2085 = vadd.f32 %v1612, %v2021
  %v2086 = vadd.f32 %v1613, %v2022
  %v2087 = vadd.f32 %v1614, %v2023
  %v2088 = vadd.f32 %v1615, %v2024
  %v2089 = vadd.f32 %v1616, %v2025
  %v2090 = vadd.f32 %v1617, %v2026
  %v2091 = vadd.f32 %v1618, %v2027
  %v2092 = vadd.f32 %v1619, %v2028
  %v2093 = vadd.f32 %v1620, %v2029
  %v2094 = vadd.f32 %v1621, %v2030
  %v2095 = vadd.f32 %v1622, %v2031
  %v2096 = vadd.f32 %v1623, %v2032
  %v2097 = vadd.f32 %v1624, %v2033
  %v2098 = vadd.f32 %v1625, %v2034
  %v2099 = vadd.f32 %v1626, %v2035
  %v2100 = vadd.f32 %v1627, %v2036
  %v2101 = vadd.f32 %v1628, %v2037
  %v2102 = vadd.f32 %v1629, %v2038
  %v2103 = vadd.f32 %v1630, %v2039
  %v2104 = vadd.f32 %v1631, %v2040
  %v2105 = vadd.f32 %v1632, %v2041
  %v2106 = vadd.f32 %v1633, %v2042
  %v2107 = vadd.f32 %v1634, %v2043
  %v2108 = vadd.f32 %v1635, %v2044
  %v2109 = vadd.f32 %v1636, %v2045
  %v2110 = vadd.f32 %v1637, %v2046
  %v2111 = vadd.f32 %v1638, %v2047
  %v2112 = vadd.f32 %v1639, %v2048
  %2113 = vrot.lane.b32.xlu0 %v1416, 16
  %v2114 = vpop.permute.xlu0 %2113
  %2115 = vrot.lane.b32.xlu0 %v1420, 16
  %v2116 = vpop.permute.xlu0 %2115
  %2117 = vrot.lane.b32.xlu0 %v1424, 16
  %v2118 = vpop.permute.xlu0 %2117
  %2119 = vrot.lane.b32.xlu0 %v1428, 16
  %v2120 = vpop.permute.xlu0 %2119
  %2121 = vrot.lane.b32.xlu0 %v1432, 16
  %v2122 = vpop.permute.xlu0 %2121
  %2123 = vrot.lane.b32.xlu0 %v1436, 16
  %v2124 = vpop.permute.xlu0 %2123
  %2125 = vrot.lane.b32.xlu0 %v1440, 16
  %v2126 = vpop.permute.xlu0 %2125
  %2127 = vrot.lane.b32.xlu0 %v1444, 16
  %v2128 = vpop.permute.xlu0 %2127
  %2129 = vrot.lane.b32.xlu0 %v1448, 16
  %v2130 = vpop.permute.xlu0 %2129
  %2131 = vrot.lane.b32.xlu0 %v1452, 16
  %v2132 = vpop.permute.xlu0 %2131
  %2133 = vrot.lane.b32.xlu0 %v1456, 16
  %v2134 = vpop.permute.xlu0 %2133
  %2135 = vrot.lane.b32.xlu0 %v1460, 16
  %v2136 = vpop.permute.xlu0 %2135
  %2137 = vrot.lane.b32.xlu0 %v1464, 16
  %v2138 = vpop.permute.xlu0 %2137
  %2139 = vrot.lane.b32.xlu0 %v1468, 16
  %v2140 = vpop.permute.xlu0 %2139
  %2141 = vrot.lane.b32.xlu0 %v1472, 16
  %v2142 = vpop.permute.xlu0 %2141
  %2143 = vrot.lane.b32.xlu0 %v1476, 16
  %v2144 = vpop.permute.xlu0 %2143
  %2145 = vrot.lane.b32.xlu0 %v1417, 16
  %v2146 = vpop.permute.xlu0 %2145
  %2147 = vrot.lane.b32.xlu0 %v1421, 16
  %v2148 = vpop.permute.xlu0 %2147
  %2149 = vrot.lane.b32.xlu0 %v1425, 16
  %v2150 = vpop.permute.xlu0 %2149
  %2151 = vrot.lane.b32.xlu0 %v1429, 16
  %v2152 = vpop.permute.xlu0 %2151
  %2153 = vrot.lane.b32.xlu0 %v1433, 16
  %v2154 = vpop.permute.xlu0 %2153
  %2155 = vrot.lane.b32.xlu0 %v1437, 16
  %v2156 = vpop.permute.xlu0 %2155
  %2157 = vrot.lane.b32.xlu0 %v1441, 16
  %v2158 = vpop.permute.xlu0 %2157
  %2159 = vrot.lane.b32.xlu0 %v1445, 16
  %v2160 = vpop.permute.xlu0 %2159
  %2161 = vrot.lane.b32.xlu0 %v1449, 16
  %v2162 = vpop.permute.xlu0 %2161
  %2163 = vrot.lane.b32.xlu0 %v1453, 16
  %v2164 = vpop.permute.xlu0 %2163
  %2165 = vrot.lane.b32.xlu0 %v1457, 16
  %v2166 = vpop.permute.xlu0 %2165
  %2167 = vrot.lane.b32.xlu0 %v1461, 16
  %v2168 = vpop.permute.xlu0 %2167
  %2169 = vrot.lane.b32.xlu0 %v1465, 16
  %v2170 = vpop.permute.xlu0 %2169
  %2171 = vrot.lane.b32.xlu0 %v1469, 16
  %v2172 = vpop.permute.xlu0 %2171
  %2173 = vrot.lane.b32.xlu0 %v1473, 16
  %v2174 = vpop.permute.xlu0 %2173
  %2175 = vrot.lane.b32.xlu0 %v1477, 16
  %v2176 = vpop.permute.xlu0 %2175
  %2177 = vrot.lane.b32.xlu0 %v1418, 16
  %v2178 = vpop.permute.xlu0 %2177
  %2179 = vrot.lane.b32.xlu0 %v1422, 16
  %v2180 = vpop.permute.xlu0 %2179
  %2181 = vrot.lane.b32.xlu0 %v1426, 16
  %v2182 = vpop.permute.xlu0 %2181
  %2183 = vrot.lane.b32.xlu0 %v1430, 16
  %v2184 = vpop.permute.xlu0 %2183
  %2185 = vrot.lane.b32.xlu0 %v1434, 16
  %v2186 = vpop.permute.xlu0 %2185
  %2187 = vrot.lane.b32.xlu0 %v1438, 16
  %v2188 = vpop.permute.xlu0 %2187
  %2189 = vrot.lane.b32.xlu0 %v1442, 16
  %v2190 = vpop.permute.xlu0 %2189
  %2191 = vrot.lane.b32.xlu0 %v1446, 16
  %v2192 = vpop.permute.xlu0 %2191
  %2193 = vrot.lane.b32.xlu0 %v1450, 16
  %v2194 = vpop.permute.xlu0 %2193
  %2195 = vrot.lane.b32.xlu0 %v1454, 16
  %v2196 = vpop.permute.xlu0 %2195
  %2197 = vrot.lane.b32.xlu0 %v1458, 16
  %v2198 = vpop.permute.xlu0 %2197
  %2199 = vrot.lane.b32.xlu0 %v1462, 16
  %v2200 = vpop.permute.xlu0 %2199
  %2201 = vrot.lane.b32.xlu0 %v1466, 16
  %v2202 = vpop.permute.xlu0 %2201
  %2203 = vrot.lane.b32.xlu0 %v1470, 16
  %v2204 = vpop.permute.xlu0 %2203
  %2205 = vrot.lane.b32.xlu0 %v1474, 16
  %v2206 = vpop.permute.xlu0 %2205
  %2207 = vrot.lane.b32.xlu0 %v1478, 16
  %v2208 = vpop.permute.xlu0 %2207
  %2209 = vrot.lane.b32.xlu0 %v1419, 16
  %v2210 = vpop.permute.xlu0 %2209
  %2211 = vrot.lane.b32.xlu0 %v1423, 16
  %v2212 = vpop.permute.xlu0 %2211
  %2213 = vrot.lane.b32.xlu0 %v1427, 16
  %v2214 = vpop.permute.xlu0 %2213
  %2215 = vrot.lane.b32.xlu0 %v1431, 16
  %v2216 = vpop.permute.xlu0 %2215
  %2217 = vrot.lane.b32.xlu0 %v1435, 16
  %v2218 = vpop.permute.xlu0 %2217
  %2219 = vrot.lane.b32.xlu0 %v1439, 16
  %v2220 = vpop.permute.xlu0 %2219
  %2221 = vrot.lane.b32.xlu0 %v1443, 16
  %v2222 = vpop.permute.xlu0 %2221
  %2223 = vrot.lane.b32.xlu0 %v1447, 16
  %v2224 = vpop.permute.xlu0 %2223
  %2225 = vrot.lane.b32.xlu0 %v1451, 16
  %v2226 = vpop.permute.xlu0 %2225
  %2227 = vrot.lane.b32.xlu0 %v1455, 16
  %v2228 = vpop.permute.xlu0 %2227
  %2229 = vrot.lane.b32.xlu0 %v1459, 16
  %v2230 = vpop.permute.xlu0 %2229
  %2231 = vrot.lane.b32.xlu0 %v1463, 16
  %v2232 = vpop.permute.xlu0 %2231
  %2233 = vrot.lane.b32.xlu0 %v1467, 16
  %v2234 = vpop.permute.xlu0 %2233
  %2235 = vrot.lane.b32.xlu0 %v1471, 16
  %v2236 = vpop.permute.xlu0 %2235
  %2237 = vrot.lane.b32.xlu0 %v1475, 16
  %v2238 = vpop.permute.xlu0 %2237
  %2239 = vrot.lane.b32.xlu0 %v1479, 16
  %v2240 = vpop.permute.xlu0 %2239
  %vm2241 = vcmp.lt.s32.totalorder %v1769, 16
  %v2242 = vsel %vm2241, %v2178, %v2210
  %v2243 = vsel %vm2241, %v2180, %v2212
  %v2244 = vsel %vm2241, %v2182, %v2214
  %v2245 = vsel %vm2241, %v2184, %v2216
  %v2246 = vsel %vm2241, %v2186, %v2218
  %v2247 = vsel %vm2241, %v2188, %v2220
  %v2248 = vsel %vm2241, %v2190, %v2222
  %v2249 = vsel %vm2241, %v2192, %v2224
  %v2250 = vsel %vm2241, %v2194, %v2226
  %v2251 = vsel %vm2241, %v2196, %v2228
  %v2252 = vsel %vm2241, %v2198, %v2230
  %v2253 = vsel %vm2241, %v2200, %v2232
  %v2254 = vsel %vm2241, %v2202, %v2234
  %v2255 = vsel %vm2241, %v2204, %v2236
  %v2256 = vsel %vm2241, %v2206, %v2238
  %v2257 = vsel %vm2241, %v2208, %v2240
  %v2258 = vsel %vm2241, %v2146, %v2178
  %v2259 = vsel %vm2241, %v2148, %v2180
  %v2260 = vsel %vm2241, %v2150, %v2182
  %v2261 = vsel %vm2241, %v2152, %v2184
  %v2262 = vsel %vm2241, %v2154, %v2186
  %v2263 = vsel %vm2241, %v2156, %v2188
  %v2264 = vsel %vm2241, %v2158, %v2190
  %v2265 = vsel %vm2241, %v2160, %v2192
  %v2266 = vsel %vm2241, %v2162, %v2194
  %v2267 = vsel %vm2241, %v2164, %v2196
  %v2268 = vsel %vm2241, %v2166, %v2198
  %v2269 = vsel %vm2241, %v2168, %v2200
  %v2270 = vsel %vm2241, %v2170, %v2202
  %v2271 = vsel %vm2241, %v2172, %v2204
  %v2272 = vsel %vm2241, %v2174, %v2206
  %v2273 = vsel %vm2241, %v2176, %v2208
  %v2274 = vsel %vm2241, %v2114, %v2146
  %v2275 = vsel %vm2241, %v2116, %v2148
  %v2276 = vsel %vm2241, %v2118, %v2150
  %v2277 = vsel %vm2241, %v2120, %v2152
  %v2278 = vsel %vm2241, %v2122, %v2154
  %v2279 = vsel %vm2241, %v2124, %v2156
  %v2280 = vsel %vm2241, %v2126, %v2158
  %v2281 = vsel %vm2241, %v2128, %v2160
  %v2282 = vsel %vm2241, %v2130, %v2162
  %v2283 = vsel %vm2241, %v2132, %v2164
  %v2284 = vsel %vm2241, %v2134, %v2166
  %v2285 = vsel %vm2241, %v2136, %v2168
  %v2286 = vsel %vm2241, %v2138, %v2170
  %v2287 = vsel %vm2241, %v2140, %v2172
  %v2288 = vsel %vm2241, %v2142, %v2174
  %v2289 = vsel %vm2241, %v2144, %v2176
  %v2290 = vsel %vm2241, %v2210, %v2114
  %v2291 = vsel %vm2241, %v2212, %v2116
  %v2292 = vsel %vm2241, %v2214, %v2118
  %v2293 = vsel %vm2241, %v2216, %v2120
  %v2294 = vsel %vm2241, %v2218, %v2122
  %v2295 = vsel %vm2241, %v2220, %v2124
  %v2296 = vsel %vm2241, %v2222, %v2126
  %v2297 = vsel %vm2241, %v2224, %v2128
  %v2298 = vsel %vm2241, %v2226, %v2130
  %v2299 = vsel %vm2241, %v2228, %v2132
  %v2300 = vsel %vm2241, %v2230, %v2134
  %v2301 = vsel %vm2241, %v2232, %v2136
  %v2302 = vsel %vm2241, %v2234, %v2138
  %v2303 = vsel %vm2241, %v2236, %v2140
  %v2304 = vsel %vm2241, %v2238, %v2142
  %v2305 = vsel %vm2241, %v2240, %v2144
  %s2306 = scalar_lea.vmem %s3, 1
  %v2307 = vld [vmem:[%s2306] ss:$8 sm:$0xf]
  %v2309 = vlaneseq
  %v2310 = vshrl.u32 %v2309, 7
  %v2311 = vsub.s32 0, %v2310
  %v2312 = vrot.slane %v2307, %v2311
  %v2313 = vlaneseq
  %v2314 = vshrl.u32 %v2313, 7
  %v2315 = vsub.s32 1, %v2314
  %v2316 = vrot.slane %v2307, %v2315
  %v2317 = vlaneseq
  %v2318 = vshrl.u32 %v2317, 7
  %v2319 = vsub.s32 2, %v2318
  %v2320 = vrot.slane %v2307, %v2319
  %v2321 = vlaneseq
  %v2322 = vshrl.u32 %v2321, 7
  %v2323 = vsub.s32 3, %v2322
  %v2324 = vrot.slane %v2307, %v2323
  %v2329 = vmul.f32 %v2290, %v2312
  %v2330 = vmul.f32 %v2274, %v2316
  %v2331 = vmul.f32 %v2258, %v2320
  %v2332 = vmul.f32 %v2242, %v2324
  %v2333 = vmul.f32 %v2291, %v2312
  %v2334 = vmul.f32 %v2275, %v2316
  %v2335 = vmul.f32 %v2259, %v2320
  %v2336 = vmul.f32 %v2243, %v2324
  %v2337 = vmul.f32 %v2292, %v2312
  %v2338 = vmul.f32 %v2276, %v2316
  %v2339 = vmul.f32 %v2260, %v2320
  %v2340 = vmul.f32 %v2244, %v2324
  %v2341 = vmul.f32 %v2293, %v2312
  %v2342 = vmul.f32 %v2277, %v2316
  %v2343 = vmul.f32 %v2261, %v2320
  %v2344 = vmul.f32 %v2245, %v2324
  %v2345 = vmul.f32 %v2294, %v2312
  %v2346 = vmul.f32 %v2278, %v2316
  %v2347 = vmul.f32 %v2262, %v2320
  %v2348 = vmul.f32 %v2246, %v2324
  %v2349 = vmul.f32 %v2295, %v2312
  %v2350 = vmul.f32 %v2279, %v2316
  %v2351 = vmul.f32 %v2263, %v2320
  %v2352 = vmul.f32 %v2247, %v2324
  %v2353 = vmul.f32 %v2296, %v2312
  %v2354 = vmul.f32 %v2280, %v2316
  %v2355 = vmul.f32 %v2264, %v2320
  %v2356 = vmul.f32 %v2248, %v2324
  %v2357 = vmul.f32 %v2297, %v2312
  %v2358 = vmul.f32 %v2281, %v2316
  %v2359 = vmul.f32 %v2265, %v2320
  %v2360 = vmul.f32 %v2249, %v2324
  %v2361 = vmul.f32 %v2298, %v2312
  %v2362 = vmul.f32 %v2282, %v2316
  %v2363 = vmul.f32 %v2266, %v2320
  %v2364 = vmul.f32 %v2250, %v2324
  %v2365 = vmul.f32 %v2299, %v2312
  %v2366 = vmul.f32 %v2283, %v2316
  %v2367 = vmul.f32 %v2267, %v2320
  %v2368 = vmul.f32 %v2251, %v2324
  %v2369 = vmul.f32 %v2300, %v2312
  %v2370 = vmul.f32 %v2284, %v2316
  %v2371 = vmul.f32 %v2268, %v2320
  %v2372 = vmul.f32 %v2252, %v2324
  %v2373 = vmul.f32 %v2301, %v2312
  %v2374 = vmul.f32 %v2285, %v2316
  %v2375 = vmul.f32 %v2269, %v2320
  %v2376 = vmul.f32 %v2253, %v2324
  %v2377 = vmul.f32 %v2302, %v2312
  %v2378 = vmul.f32 %v2286, %v2316
  %v2379 = vmul.f32 %v2270, %v2320
  %v2380 = vmul.f32 %v2254, %v2324
  %v2381 = vmul.f32 %v2303, %v2312
  %v2382 = vmul.f32 %v2287, %v2316
  %v2383 = vmul.f32 %v2271, %v2320
  %v2384 = vmul.f32 %v2255, %v2324
  %v2385 = vmul.f32 %v2304, %v2312
  %v2386 = vmul.f32 %v2288, %v2316
  %v2387 = vmul.f32 %v2272, %v2320
  %v2388 = vmul.f32 %v2256, %v2324
  %v2389 = vmul.f32 %v2305, %v2312
  %v2390 = vmul.f32 %v2289, %v2316
  %v2391 = vmul.f32 %v2273, %v2320
  %v2392 = vmul.f32 %v2257, %v2324
  %2393 = vset.pattern.permute.xlu0 1
  %2394 = vperm.xlu0 %2393, %v1480
  %v2395 = vpop.permute.xlu0 %2394
  %2397 = vset.pattern.permute.xlu0 1
  %2398 = vperm.xlu0 %2397, %v1481
  %v2399 = vpop.permute.xlu0 %2398
  %2401 = vset.pattern.permute.xlu0 1
  %2402 = vperm.xlu0 %2401, %v1482
  %v2403 = vpop.permute.xlu0 %2402
  %2405 = vset.pattern.permute.xlu0 1
  %2406 = vperm.xlu0 %2405, %v1483
  %v2407 = vpop.permute.xlu0 %2406
  %2409 = vset.pattern.permute.xlu0 1
  %2410 = vperm.xlu0 %2409, %v1484
  %v2411 = vpop.permute.xlu0 %2410
  %2413 = vset.pattern.permute.xlu0 1
  %2414 = vperm.xlu0 %2413, %v1485
  %v2415 = vpop.permute.xlu0 %2414
  %2417 = vset.pattern.permute.xlu0 1
  %2418 = vperm.xlu0 %2417, %v1486
  %v2419 = vpop.permute.xlu0 %2418
  %2421 = vset.pattern.permute.xlu0 1
  %2422 = vperm.xlu0 %2421, %v1487
  %v2423 = vpop.permute.xlu0 %2422
  %2425 = vset.pattern.permute.xlu0 1
  %2426 = vperm.xlu0 %2425, %v1488
  %v2427 = vpop.permute.xlu0 %2426
  %2429 = vset.pattern.permute.xlu0 1
  %2430 = vperm.xlu0 %2429, %v1489
  %v2431 = vpop.permute.xlu0 %2430
  %2433 = vset.pattern.permute.xlu0 1
  %2434 = vperm.xlu0 %2433, %v1490
  %v2435 = vpop.permute.xlu0 %2434
  %2437 = vset.pattern.permute.xlu0 1
  %2438 = vperm.xlu0 %2437, %v1491
  %v2439 = vpop.permute.xlu0 %2438
  %2441 = vset.pattern.permute.xlu0 1
  %2442 = vperm.xlu0 %2441, %v1492
  %v2443 = vpop.permute.xlu0 %2442
  %2445 = vset.pattern.permute.xlu0 1
  %2446 = vperm.xlu0 %2445, %v1493
  %v2447 = vpop.permute.xlu0 %2446
  %2449 = vset.pattern.permute.xlu0 1
  %2450 = vperm.xlu0 %2449, %v1494
  %v2451 = vpop.permute.xlu0 %2450
  %2453 = vset.pattern.permute.xlu0 1
  %2454 = vperm.xlu0 %2453, %v1495
  %v2455 = vpop.permute.xlu0 %2454
  %v2457 = vmul.f32 %v2329, %v2395
  %v2458 = vmul.f32 %v2330, %v2395
  %v2459 = vmul.f32 %v2331, %v2395
  %v2460 = vmul.f32 %v2332, %v2395
  %v2461 = vmul.f32 %v2333, %v2399
  %v2462 = vmul.f32 %v2334, %v2399
  %v2463 = vmul.f32 %v2335, %v2399
  %v2464 = vmul.f32 %v2336, %v2399
  %v2465 = vmul.f32 %v2337, %v2403
  %v2466 = vmul.f32 %v2338, %v2403
  %v2467 = vmul.f32 %v2339, %v2403
  %v2468 = vmul.f32 %v2340, %v2403
  %v2469 = vmul.f32 %v2341, %v2407
  %v2470 = vmul.f32 %v2342, %v2407
  %v2471 = vmul.f32 %v2343, %v2407
  %v2472 = vmul.f32 %v2344, %v2407
  %v2473 = vmul.f32 %v2345, %v2411
  %v2474 = vmul.f32 %v2346, %v2411
  %v2475 = vmul.f32 %v2347, %v2411
  %v2476 = vmul.f32 %v2348, %v2411
  %v2477 = vmul.f32 %v2349, %v2415
  %v2478 = vmul.f32 %v2350, %v2415
  %v2479 = vmul.f32 %v2351, %v2415
  %v2480 = vmul.f32 %v2352, %v2415
  %v2481 = vmul.f32 %v2353, %v2419
  %v2482 = vmul.f32 %v2354, %v2419
  %v2483 = vmul.f32 %v2355, %v2419
  %v2484 = vmul.f32 %v2356, %v2419
  %v2485 = vmul.f32 %v2357, %v2423
  %v2486 = vmul.f32 %v2358, %v2423
  %v2487 = vmul.f32 %v2359, %v2423
  %v2488 = vmul.f32 %v2360, %v2423
  %v2489 = vmul.f32 %v2361, %v2427
  %v2490 = vmul.f32 %v2362, %v2427
  %v2491 = vmul.f32 %v2363, %v2427
  %v2492 = vmul.f32 %v2364, %v2427
  %v2493 = vmul.f32 %v2365, %v2431
  %v2494 = vmul.f32 %v2366, %v2431
  %v2495 = vmul.f32 %v2367, %v2431
  %v2496 = vmul.f32 %v2368, %v2431
  %v2497 = vmul.f32 %v2369, %v2435
  %v2498 = vmul.f32 %v2370, %v2435
  %v2499 = vmul.f32 %v2371, %v2435
  %v2500 = vmul.f32 %v2372, %v2435
  %v2501 = vmul.f32 %v2373, %v2439
  %v2502 = vmul.f32 %v2374, %v2439
  %v2503 = vmul.f32 %v2375, %v2439
  %v2504 = vmul.f32 %v2376, %v2439
  %v2505 = vmul.f32 %v2377, %v2443
  %v2506 = vmul.f32 %v2378, %v2443
  %v2507 = vmul.f32 %v2379, %v2443
  %v2508 = vmul.f32 %v2380, %v2443
  %v2509 = vmul.f32 %v2381, %v2447
  %v2510 = vmul.f32 %v2382, %v2447
  %v2511 = vmul.f32 %v2383, %v2447
  %v2512 = vmul.f32 %v2384, %v2447
  %v2513 = vmul.f32 %v2385, %v2451
  %v2514 = vmul.f32 %v2386, %v2451
  %v2515 = vmul.f32 %v2387, %v2451
  %v2516 = vmul.f32 %v2388, %v2451
  %v2517 = vmul.f32 %v2389, %v2455
  %v2518 = vmul.f32 %v2390, %v2455
  %v2519 = vmul.f32 %v2391, %v2455
  %v2520 = vmul.f32 %v2392, %v2455
  %v2521 = vadd.f32 %v2049, %v2457
  %v2522 = vadd.f32 %v2050, %v2458
  %v2523 = vadd.f32 %v2051, %v2459
  %v2524 = vadd.f32 %v2052, %v2460
  %v2525 = vadd.f32 %v2053, %v2461
  %v2526 = vadd.f32 %v2054, %v2462
  %v2527 = vadd.f32 %v2055, %v2463
  %v2528 = vadd.f32 %v2056, %v2464
  %v2529 = vadd.f32 %v2057, %v2465
  %v2530 = vadd.f32 %v2058, %v2466
  %v2531 = vadd.f32 %v2059, %v2467
  %v2532 = vadd.f32 %v2060, %v2468
  %v2533 = vadd.f32 %v2061, %v2469
  %v2534 = vadd.f32 %v2062, %v2470
  %v2535 = vadd.f32 %v2063, %v2471
  %v2536 = vadd.f32 %v2064, %v2472
  %v2537 = vadd.f32 %v2065, %v2473
  %v2538 = vadd.f32 %v2066, %v2474
  %v2539 = vadd.f32 %v2067, %v2475
  %v2540 = vadd.f32 %v2068, %v2476
  %v2541 = vadd.f32 %v2069, %v2477
  %v2542 = vadd.f32 %v2070, %v2478
  %v2543 = vadd.f32 %v2071, %v2479
  %v2544 = vadd.f32 %v2072, %v2480
  %v2545 = vadd.f32 %v2073, %v2481
  %v2546 = vadd.f32 %v2074, %v2482
  %v2547 = vadd.f32 %v2075, %v2483
  %v2548 = vadd.f32 %v2076, %v2484
  %v2549 = vadd.f32 %v2077, %v2485
  %v2550 = vadd.f32 %v2078, %v2486
  %v2551 = vadd.f32 %v2079, %v2487
  %v2552 = vadd.f32 %v2080, %v2488
  %v2553 = vadd.f32 %v2081, %v2489
  %v2554 = vadd.f32 %v2082, %v2490
  %v2555 = vadd.f32 %v2083, %v2491
  %v2556 = vadd.f32 %v2084, %v2492
  %v2557 = vadd.f32 %v2085, %v2493
  %v2558 = vadd.f32 %v2086, %v2494
  %v2559 = vadd.f32 %v2087, %v2495
  %v2560 = vadd.f32 %v2088, %v2496
  %v2561 = vadd.f32 %v2089, %v2497
  %v2562 = vadd.f32 %v2090, %v2498
  %v2563 = vadd.f32 %v2091, %v2499
  %v2564 = vadd.f32 %v2092, %v2500
  %v2565 = vadd.f32 %v2093, %v2501
  %v2566 = vadd.f32 %v2094, %v2502
  %v2567 = vadd.f32 %v2095, %v2503
  %v2568 = vadd.f32 %v2096, %v2504
  %v2569 = vadd.f32 %v2097, %v2505
  %v2570 = vadd.f32 %v2098, %v2506
  %v2571 = vadd.f32 %v2099, %v2507
  %v2572 = vadd.f32 %v2100, %v2508
  %v2573 = vadd.f32 %v2101, %v2509
  %v2574 = vadd.f32 %v2102, %v2510
  %v2575 = vadd.f32 %v2103, %v2511
  %v2576 = vadd.f32 %v2104, %v2512
  %v2577 = vadd.f32 %v2105, %v2513
  %v2578 = vadd.f32 %v2106, %v2514
  %v2579 = vadd.f32 %v2107, %v2515
  %v2580 = vadd.f32 %v2108, %v2516
  %v2581 = vadd.f32 %v2109, %v2517
  %v2582 = vadd.f32 %v2110, %v2518
  %v2583 = vadd.f32 %v2111, %v2519
  %v2584 = vadd.f32 %v2112, %v2520
  %2585 = vrot.lane.b32.xlu0 %v1416, 15
  %v2586 = vpop.permute.xlu0 %2585
  %2587 = vrot.lane.b32.xlu0 %v1420, 15
  %v2588 = vpop.permute.xlu0 %2587
  %2589 = vrot.lane.b32.xlu0 %v1424, 15
  %v2590 = vpop.permute.xlu0 %2589
  %2591 = vrot.lane.b32.xlu0 %v1428, 15
  %v2592 = vpop.permute.xlu0 %2591
  %2593 = vrot.lane.b32.xlu0 %v1432, 15
  %v2594 = vpop.permute.xlu0 %2593
  %2595 = vrot.lane.b32.xlu0 %v1436, 15
  %v2596 = vpop.permute.xlu0 %2595
  %2597 = vrot.lane.b32.xlu0 %v1440, 15
  %v2598 = vpop.permute.xlu0 %2597
  %2599 = vrot.lane.b32.xlu0 %v1444, 15
  %v2600 = vpop.permute.xlu0 %2599
  %2601 = vrot.lane.b32.xlu0 %v1448, 15
  %v2602 = vpop.permute.xlu0 %2601
  %2603 = vrot.lane.b32.xlu0 %v1452, 15
  %v2604 = vpop.permute.xlu0 %2603
  %2605 = vrot.lane.b32.xlu0 %v1456, 15
  %v2606 = vpop.permute.xlu0 %2605
  %2607 = vrot.lane.b32.xlu0 %v1460, 15
  %v2608 = vpop.permute.xlu0 %2607
  %2609 = vrot.lane.b32.xlu0 %v1464, 15
  %v2610 = vpop.permute.xlu0 %2609
  %2611 = vrot.lane.b32.xlu0 %v1468, 15
  %v2612 = vpop.permute.xlu0 %2611
  %2613 = vrot.lane.b32.xlu0 %v1472, 15
  %v2614 = vpop.permute.xlu0 %2613
  %2615 = vrot.lane.b32.xlu0 %v1476, 15
  %v2616 = vpop.permute.xlu0 %2615
  %2617 = vrot.lane.b32.xlu0 %v1417, 15
  %v2618 = vpop.permute.xlu0 %2617
  %2619 = vrot.lane.b32.xlu0 %v1421, 15
  %v2620 = vpop.permute.xlu0 %2619
  %2621 = vrot.lane.b32.xlu0 %v1425, 15
  %v2622 = vpop.permute.xlu0 %2621
  %2623 = vrot.lane.b32.xlu0 %v1429, 15
  %v2624 = vpop.permute.xlu0 %2623
  %2625 = vrot.lane.b32.xlu0 %v1433, 15
  %v2626 = vpop.permute.xlu0 %2625
  %2627 = vrot.lane.b32.xlu0 %v1437, 15
  %v2628 = vpop.permute.xlu0 %2627
  %2629 = vrot.lane.b32.xlu0 %v1441, 15
  %v2630 = vpop.permute.xlu0 %2629
  %2631 = vrot.lane.b32.xlu0 %v1445, 15
  %v2632 = vpop.permute.xlu0 %2631
  %2633 = vrot.lane.b32.xlu0 %v1449, 15
  %v2634 = vpop.permute.xlu0 %2633
  %2635 = vrot.lane.b32.xlu0 %v1453, 15
  %v2636 = vpop.permute.xlu0 %2635
  %2637 = vrot.lane.b32.xlu0 %v1457, 15
  %v2638 = vpop.permute.xlu0 %2637
  %2639 = vrot.lane.b32.xlu0 %v1461, 15
  %v2640 = vpop.permute.xlu0 %2639
  %2641 = vrot.lane.b32.xlu0 %v1465, 15
  %v2642 = vpop.permute.xlu0 %2641
  %2643 = vrot.lane.b32.xlu0 %v1469, 15
  %v2644 = vpop.permute.xlu0 %2643
  %2645 = vrot.lane.b32.xlu0 %v1473, 15
  %v2646 = vpop.permute.xlu0 %2645
  %2647 = vrot.lane.b32.xlu0 %v1477, 15
  %v2648 = vpop.permute.xlu0 %2647
  %2649 = vrot.lane.b32.xlu0 %v1418, 15
  %v2650 = vpop.permute.xlu0 %2649
  %2651 = vrot.lane.b32.xlu0 %v1422, 15
  %v2652 = vpop.permute.xlu0 %2651
  %2653 = vrot.lane.b32.xlu0 %v1426, 15
  %v2654 = vpop.permute.xlu0 %2653
  %2655 = vrot.lane.b32.xlu0 %v1430, 15
  %v2656 = vpop.permute.xlu0 %2655
  %2657 = vrot.lane.b32.xlu0 %v1434, 15
  %v2658 = vpop.permute.xlu0 %2657
  %2659 = vrot.lane.b32.xlu0 %v1438, 15
  %v2660 = vpop.permute.xlu0 %2659
  %2661 = vrot.lane.b32.xlu0 %v1442, 15
  %v2662 = vpop.permute.xlu0 %2661
  %2663 = vrot.lane.b32.xlu0 %v1446, 15
  %v2664 = vpop.permute.xlu0 %2663
  %2665 = vrot.lane.b32.xlu0 %v1450, 15
  %v2666 = vpop.permute.xlu0 %2665
  %2667 = vrot.lane.b32.xlu0 %v1454, 15
  %v2668 = vpop.permute.xlu0 %2667
  %2669 = vrot.lane.b32.xlu0 %v1458, 15
  %v2670 = vpop.permute.xlu0 %2669
  %2671 = vrot.lane.b32.xlu0 %v1462, 15
  %v2672 = vpop.permute.xlu0 %2671
  %2673 = vrot.lane.b32.xlu0 %v1466, 15
  %v2674 = vpop.permute.xlu0 %2673
  %2675 = vrot.lane.b32.xlu0 %v1470, 15
  %v2676 = vpop.permute.xlu0 %2675
  %2677 = vrot.lane.b32.xlu0 %v1474, 15
  %v2678 = vpop.permute.xlu0 %2677
  %2679 = vrot.lane.b32.xlu0 %v1478, 15
  %v2680 = vpop.permute.xlu0 %2679
  %2681 = vrot.lane.b32.xlu0 %v1419, 15
  %v2682 = vpop.permute.xlu0 %2681
  %2683 = vrot.lane.b32.xlu0 %v1423, 15
  %v2684 = vpop.permute.xlu0 %2683
  %2685 = vrot.lane.b32.xlu0 %v1427, 15
  %v2686 = vpop.permute.xlu0 %2685
  %2687 = vrot.lane.b32.xlu0 %v1431, 15
  %v2688 = vpop.permute.xlu0 %2687
  %2689 = vrot.lane.b32.xlu0 %v1435, 15
  %v2690 = vpop.permute.xlu0 %2689
  %2691 = vrot.lane.b32.xlu0 %v1439, 15
  %v2692 = vpop.permute.xlu0 %2691
  %2693 = vrot.lane.b32.xlu0 %v1443, 15
  %v2694 = vpop.permute.xlu0 %2693
  %2695 = vrot.lane.b32.xlu0 %v1447, 15
  %v2696 = vpop.permute.xlu0 %2695
  %2697 = vrot.lane.b32.xlu0 %v1451, 15
  %v2698 = vpop.permute.xlu0 %2697
  %2699 = vrot.lane.b32.xlu0 %v1455, 15
  %v2700 = vpop.permute.xlu0 %2699
  %2701 = vrot.lane.b32.xlu0 %v1459, 15
  %v2702 = vpop.permute.xlu0 %2701
  %2703 = vrot.lane.b32.xlu0 %v1463, 15
  %v2704 = vpop.permute.xlu0 %2703
  %2705 = vrot.lane.b32.xlu0 %v1467, 15
  %v2706 = vpop.permute.xlu0 %2705
  %2707 = vrot.lane.b32.xlu0 %v1471, 15
  %v2708 = vpop.permute.xlu0 %2707
  %2709 = vrot.lane.b32.xlu0 %v1475, 15
  %v2710 = vpop.permute.xlu0 %2709
  %2711 = vrot.lane.b32.xlu0 %v1479, 15
  %v2712 = vpop.permute.xlu0 %2711
  %vm2713 = vcmp.lt.s32.totalorder %v1769, 15
  %v2714 = vsel %vm2713, %v2650, %v2682
  %v2715 = vsel %vm2713, %v2652, %v2684
  %v2716 = vsel %vm2713, %v2654, %v2686
  %v2717 = vsel %vm2713, %v2656, %v2688
  %v2718 = vsel %vm2713, %v2658, %v2690
  %v2719 = vsel %vm2713, %v2660, %v2692
  %v2720 = vsel %vm2713, %v2662, %v2694
  %v2721 = vsel %vm2713, %v2664, %v2696
  %v2722 = vsel %vm2713, %v2666, %v2698
  %v2723 = vsel %vm2713, %v2668, %v2700
  %v2724 = vsel %vm2713, %v2670, %v2702
  %v2725 = vsel %vm2713, %v2672, %v2704
  %v2726 = vsel %vm2713, %v2674, %v2706
  %v2727 = vsel %vm2713, %v2676, %v2708
  %v2728 = vsel %vm2713, %v2678, %v2710
  %v2729 = vsel %vm2713, %v2680, %v2712
  %v2730 = vsel %vm2713, %v2618, %v2650
  %v2731 = vsel %vm2713, %v2620, %v2652
  %v2732 = vsel %vm2713, %v2622, %v2654
  %v2733 = vsel %vm2713, %v2624, %v2656
  %v2734 = vsel %vm2713, %v2626, %v2658
  %v2735 = vsel %vm2713, %v2628, %v2660
  %v2736 = vsel %vm2713, %v2630, %v2662
  %v2737 = vsel %vm2713, %v2632, %v2664
  %v2738 = vsel %vm2713, %v2634, %v2666
  %v2739 = vsel %vm2713, %v2636, %v2668
  %v2740 = vsel %vm2713, %v2638, %v2670
  %v2741 = vsel %vm2713, %v2640, %v2672
  %v2742 = vsel %vm2713, %v2642, %v2674
  %v2743 = vsel %vm2713, %v2644, %v2676
  %v2744 = vsel %vm2713, %v2646, %v2678
  %v2745 = vsel %vm2713, %v2648, %v2680
  %v2746 = vsel %vm2713, %v2586, %v2618
  %v2747 = vsel %vm2713, %v2588, %v2620
  %v2748 = vsel %vm2713, %v2590, %v2622
  %v2749 = vsel %vm2713, %v2592, %v2624
  %v2750 = vsel %vm2713, %v2594, %v2626
  %v2751 = vsel %vm2713, %v2596, %v2628
  %v2752 = vsel %vm2713, %v2598, %v2630
  %v2753 = vsel %vm2713, %v2600, %v2632
  %v2754 = vsel %vm2713, %v2602, %v2634
  %v2755 = vsel %vm2713, %v2604, %v2636
  %v2756 = vsel %vm2713, %v2606, %v2638
  %v2757 = vsel %vm2713, %v2608, %v2640
  %v2758 = vsel %vm2713, %v2610, %v2642
  %v2759 = vsel %vm2713, %v2612, %v2644
  %v2760 = vsel %vm2713, %v2614, %v2646
  %v2761 = vsel %vm2713, %v2616, %v2648
  %v2762 = vsel %vm2713, %v2682, %v2586
  %v2763 = vsel %vm2713, %v2684, %v2588
  %v2764 = vsel %vm2713, %v2686, %v2590
  %v2765 = vsel %vm2713, %v2688, %v2592
  %v2766 = vsel %vm2713, %v2690, %v2594
  %v2767 = vsel %vm2713, %v2692, %v2596
  %v2768 = vsel %vm2713, %v2694, %v2598
  %v2769 = vsel %vm2713, %v2696, %v2600
  %v2770 = vsel %vm2713, %v2698, %v2602
  %v2771 = vsel %vm2713, %v2700, %v2604
  %v2772 = vsel %vm2713, %v2702, %v2606
  %v2773 = vsel %vm2713, %v2704, %v2608
  %v2774 = vsel %vm2713, %v2706, %v2610
  %v2775 = vsel %vm2713, %v2708, %v2612
  %v2776 = vsel %vm2713, %v2710, %v2614
  %v2777 = vsel %vm2713, %v2712, %v2616
  %s2778 = scalar_lea.vmem %s3, 2
  %v2779 = vld [vmem:[%s2778] ss:$8 sm:$0xf]
  %v2781 = vlaneseq
  %v2782 = vshrl.u32 %v2781, 7
  %v2783 = vsub.s32 0, %v2782
  %v2784 = vrot.slane %v2779, %v2783
  %v2785 = vlaneseq
  %v2786 = vshrl.u32 %v2785, 7
  %v2787 = vsub.s32 1, %v2786
  %v2788 = vrot.slane %v2779, %v2787
  %v2789 = vlaneseq
  %v2790 = vshrl.u32 %v2789, 7
  %v2791 = vsub.s32 2, %v2790
  %v2792 = vrot.slane %v2779, %v2791
  %v2793 = vlaneseq
  %v2794 = vshrl.u32 %v2793, 7
  %v2795 = vsub.s32 3, %v2794
  %v2796 = vrot.slane %v2779, %v2795
  %v2801 = vmul.f32 %v2762, %v2784
  %v2802 = vmul.f32 %v2746, %v2788
  %v2803 = vmul.f32 %v2730, %v2792
  %v2804 = vmul.f32 %v2714, %v2796
  %v2805 = vmul.f32 %v2763, %v2784
  %v2806 = vmul.f32 %v2747, %v2788
  %v2807 = vmul.f32 %v2731, %v2792
  %v2808 = vmul.f32 %v2715, %v2796
  %v2809 = vmul.f32 %v2764, %v2784
  %v2810 = vmul.f32 %v2748, %v2788
  %v2811 = vmul.f32 %v2732, %v2792
  %v2812 = vmul.f32 %v2716, %v2796
  %v2813 = vmul.f32 %v2765, %v2784
  %v2814 = vmul.f32 %v2749, %v2788
  %v2815 = vmul.f32 %v2733, %v2792
  %v2816 = vmul.f32 %v2717, %v2796
  %v2817 = vmul.f32 %v2766, %v2784
  %v2818 = vmul.f32 %v2750, %v2788
  %v2819 = vmul.f32 %v2734, %v2792
  %v2820 = vmul.f32 %v2718, %v2796
  %v2821 = vmul.f32 %v2767, %v2784
  %v2822 = vmul.f32 %v2751, %v2788
  %v2823 = vmul.f32 %v2735, %v2792
  %v2824 = vmul.f32 %v2719, %v2796
  %v2825 = vmul.f32 %v2768, %v2784
  %v2826 = vmul.f32 %v2752, %v2788
  %v2827 = vmul.f32 %v2736, %v2792
  %v2828 = vmul.f32 %v2720, %v2796
  %v2829 = vmul.f32 %v2769, %v2784
  %v2830 = vmul.f32 %v2753, %v2788
  %v2831 = vmul.f32 %v2737, %v2792
  %v2832 = vmul.f32 %v2721, %v2796
  %v2833 = vmul.f32 %v2770, %v2784
  %v2834 = vmul.f32 %v2754, %v2788
  %v2835 = vmul.f32 %v2738, %v2792
  %v2836 = vmul.f32 %v2722, %v2796
  %v2837 = vmul.f32 %v2771, %v2784
  %v2838 = vmul.f32 %v2755, %v2788
  %v2839 = vmul.f32 %v2739, %v2792
  %v2840 = vmul.f32 %v2723, %v2796
  %v2841 = vmul.f32 %v2772, %v2784
  %v2842 = vmul.f32 %v2756, %v2788
  %v2843 = vmul.f32 %v2740, %v2792
  %v2844 = vmul.f32 %v2724, %v2796
  %v2845 = vmul.f32 %v2773, %v2784
  %v2846 = vmul.f32 %v2757, %v2788
  %v2847 = vmul.f32 %v2741, %v2792
  %v2848 = vmul.f32 %v2725, %v2796
  %v2849 = vmul.f32 %v2774, %v2784
  %v2850 = vmul.f32 %v2758, %v2788
  %v2851 = vmul.f32 %v2742, %v2792
  %v2852 = vmul.f32 %v2726, %v2796
  %v2853 = vmul.f32 %v2775, %v2784
  %v2854 = vmul.f32 %v2759, %v2788
  %v2855 = vmul.f32 %v2743, %v2792
  %v2856 = vmul.f32 %v2727, %v2796
  %v2857 = vmul.f32 %v2776, %v2784
  %v2858 = vmul.f32 %v2760, %v2788
  %v2859 = vmul.f32 %v2744, %v2792
  %v2860 = vmul.f32 %v2728, %v2796
  %v2861 = vmul.f32 %v2777, %v2784
  %v2862 = vmul.f32 %v2761, %v2788
  %v2863 = vmul.f32 %v2745, %v2792
  %v2864 = vmul.f32 %v2729, %v2796
  %2865 = vset.pattern.permute.xlu0 2
  %2866 = vperm.xlu0 %2865, %v1480
  %v2867 = vpop.permute.xlu0 %2866
  %2869 = vset.pattern.permute.xlu0 2
  %2870 = vperm.xlu0 %2869, %v1481
  %v2871 = vpop.permute.xlu0 %2870
  %2873 = vset.pattern.permute.xlu0 2
  %2874 = vperm.xlu0 %2873, %v1482
  %v2875 = vpop.permute.xlu0 %2874
  %2877 = vset.pattern.permute.xlu0 2
  %2878 = vperm.xlu0 %2877, %v1483
  %v2879 = vpop.permute.xlu0 %2878
  %2881 = vset.pattern.permute.xlu0 2
  %2882 = vperm.xlu0 %2881, %v1484
  %v2883 = vpop.permute.xlu0 %2882
  %2885 = vset.pattern.permute.xlu0 2
  %2886 = vperm.xlu0 %2885, %v1485
  %v2887 = vpop.permute.xlu0 %2886
  %2889 = vset.pattern.permute.xlu0 2
  %2890 = vperm.xlu0 %2889, %v1486
  %v2891 = vpop.permute.xlu0 %2890
  %2893 = vset.pattern.permute.xlu0 2
  %2894 = vperm.xlu0 %2893, %v1487
  %v2895 = vpop.permute.xlu0 %2894
  %2897 = vset.pattern.permute.xlu0 2
  %2898 = vperm.xlu0 %2897, %v1488
  %v2899 = vpop.permute.xlu0 %2898
  %2901 = vset.pattern.permute.xlu0 2
  %2902 = vperm.xlu0 %2901, %v1489
  %v2903 = vpop.permute.xlu0 %2902
  %2905 = vset.pattern.permute.xlu0 2
  %2906 = vperm.xlu0 %2905, %v1490
  %v2907 = vpop.permute.xlu0 %2906
  %2909 = vset.pattern.permute.xlu0 2
  %2910 = vperm.xlu0 %2909, %v1491
  %v2911 = vpop.permute.xlu0 %2910
  %2913 = vset.pattern.permute.xlu0 2
  %2914 = vperm.xlu0 %2913, %v1492
  %v2915 = vpop.permute.xlu0 %2914
  %2917 = vset.pattern.permute.xlu0 2
  %2918 = vperm.xlu0 %2917, %v1493
  %v2919 = vpop.permute.xlu0 %2918
  %2921 = vset.pattern.permute.xlu0 2
  %2922 = vperm.xlu0 %2921, %v1494
  %v2923 = vpop.permute.xlu0 %2922
  %2925 = vset.pattern.permute.xlu0 2
  %2926 = vperm.xlu0 %2925, %v1495
  %v2927 = vpop.permute.xlu0 %2926
  %v2929 = vmul.f32 %v2801, %v2867
  %v2930 = vmul.f32 %v2802, %v2867
  %v2931 = vmul.f32 %v2803, %v2867
  %v2932 = vmul.f32 %v2804, %v2867
  %v2933 = vmul.f32 %v2805, %v2871
  %v2934 = vmul.f32 %v2806, %v2871
  %v2935 = vmul.f32 %v2807, %v2871
  %v2936 = vmul.f32 %v2808, %v2871
  %v2937 = vmul.f32 %v2809, %v2875
  %v2938 = vmul.f32 %v2810, %v2875
  %v2939 = vmul.f32 %v2811, %v2875
  %v2940 = vmul.f32 %v2812, %v2875
  %v2941 = vmul.f32 %v2813, %v2879
  %v2942 = vmul.f32 %v2814, %v2879
  %v2943 = vmul.f32 %v2815, %v2879
  %v2944 = vmul.f32 %v2816, %v2879
  %v2945 = vmul.f32 %v2817, %v2883
  %v2946 = vmul.f32 %v2818, %v2883
  %v2947 = vmul.f32 %v2819, %v2883
  %v2948 = vmul.f32 %v2820, %v2883
  %v2949 = vmul.f32 %v2821, %v2887
  %v2950 = vmul.f32 %v2822, %v2887
  %v2951 = vmul.f32 %v2823, %v2887
  %v2952 = vmul.f32 %v2824, %v2887
  %v2953 = vmul.f32 %v2825, %v2891
  %v2954 = vmul.f32 %v2826, %v2891
  %v2955 = vmul.f32 %v2827, %v2891
  %v2956 = vmul.f32 %v2828, %v2891
  %v2957 = vmul.f32 %v2829, %v2895
  %v2958 = vmul.f32 %v2830, %v2895
  %v2959 = vmul.f32 %v2831, %v2895
  %v2960 = vmul.f32 %v2832, %v2895
  %v2961 = vmul.f32 %v2833, %v2899
  %v2962 = vmul.f32 %v2834, %v2899
  %v2963 = vmul.f32 %v2835, %v2899
  %v2964 = vmul.f32 %v2836, %v2899
  %v2965 = vmul.f32 %v2837, %v2903
  %v2966 = vmul.f32 %v2838, %v2903
  %v2967 = vmul.f32 %v2839, %v2903
  %v2968 = vmul.f32 %v2840, %v2903
  %v2969 = vmul.f32 %v2841, %v2907
  %v2970 = vmul.f32 %v2842, %v2907
  %v2971 = vmul.f32 %v2843, %v2907
  %v2972 = vmul.f32 %v2844, %v2907
  %v2973 = vmul.f32 %v2845, %v2911
  %v2974 = vmul.f32 %v2846, %v2911
  %v2975 = vmul.f32 %v2847, %v2911
  %v2976 = vmul.f32 %v2848, %v2911
  %v2977 = vmul.f32 %v2849, %v2915
  %v2978 = vmul.f32 %v2850, %v2915
  %v2979 = vmul.f32 %v2851, %v2915
  %v2980 = vmul.f32 %v2852, %v2915
  %v2981 = vmul.f32 %v2853, %v2919
  %v2982 = vmul.f32 %v2854, %v2919
  %v2983 = vmul.f32 %v2855, %v2919
  %v2984 = vmul.f32 %v2856, %v2919
  %v2985 = vmul.f32 %v2857, %v2923
  %v2986 = vmul.f32 %v2858, %v2923
  %v2987 = vmul.f32 %v2859, %v2923
  %v2988 = vmul.f32 %v2860, %v2923
  %v2989 = vmul.f32 %v2861, %v2927
  %v2990 = vmul.f32 %v2862, %v2927
  %v2991 = vmul.f32 %v2863, %v2927
  %v2992 = vmul.f32 %v2864, %v2927
  %v2993 = vadd.f32 %v2521, %v2929
  %v2994 = vadd.f32 %v2522, %v2930
  %v2995 = vadd.f32 %v2523, %v2931
  %v2996 = vadd.f32 %v2524, %v2932
  %v2997 = vadd.f32 %v2525, %v2933
  %v2998 = vadd.f32 %v2526, %v2934
  %v2999 = vadd.f32 %v2527, %v2935
  %v3000 = vadd.f32 %v2528, %v2936
  %v3001 = vadd.f32 %v2529, %v2937
  %v3002 = vadd.f32 %v2530, %v2938
  %v3003 = vadd.f32 %v2531, %v2939
  %v3004 = vadd.f32 %v2532, %v2940
  %v3005 = vadd.f32 %v2533, %v2941
  %v3006 = vadd.f32 %v2534, %v2942
  %v3007 = vadd.f32 %v2535, %v2943
  %v3008 = vadd.f32 %v2536, %v2944
  %v3009 = vadd.f32 %v2537, %v2945
  %v3010 = vadd.f32 %v2538, %v2946
  %v3011 = vadd.f32 %v2539, %v2947
  %v3012 = vadd.f32 %v2540, %v2948
  %v3013 = vadd.f32 %v2541, %v2949
  %v3014 = vadd.f32 %v2542, %v2950
  %v3015 = vadd.f32 %v2543, %v2951
  %v3016 = vadd.f32 %v2544, %v2952
  %v3017 = vadd.f32 %v2545, %v2953
  %v3018 = vadd.f32 %v2546, %v2954
  %v3019 = vadd.f32 %v2547, %v2955
  %v3020 = vadd.f32 %v2548, %v2956
  %v3021 = vadd.f32 %v2549, %v2957
  %v3022 = vadd.f32 %v2550, %v2958
  %v3023 = vadd.f32 %v2551, %v2959
  %v3024 = vadd.f32 %v2552, %v2960
  %v3025 = vadd.f32 %v2553, %v2961
  %v3026 = vadd.f32 %v2554, %v2962
  %v3027 = vadd.f32 %v2555, %v2963
  %v3028 = vadd.f32 %v2556, %v2964
  %v3029 = vadd.f32 %v2557, %v2965
  %v3030 = vadd.f32 %v2558, %v2966
  %v3031 = vadd.f32 %v2559, %v2967
  %v3032 = vadd.f32 %v2560, %v2968
  %v3033 = vadd.f32 %v2561, %v2969
  %v3034 = vadd.f32 %v2562, %v2970
  %v3035 = vadd.f32 %v2563, %v2971
  %v3036 = vadd.f32 %v2564, %v2972
  %v3037 = vadd.f32 %v2565, %v2973
  %v3038 = vadd.f32 %v2566, %v2974
  %v3039 = vadd.f32 %v2567, %v2975
  %v3040 = vadd.f32 %v2568, %v2976
  %v3041 = vadd.f32 %v2569, %v2977
  %v3042 = vadd.f32 %v2570, %v2978
  %v3043 = vadd.f32 %v2571, %v2979
  %v3044 = vadd.f32 %v2572, %v2980
  %v3045 = vadd.f32 %v2573, %v2981
  %v3046 = vadd.f32 %v2574, %v2982
  %v3047 = vadd.f32 %v2575, %v2983
  %v3048 = vadd.f32 %v2576, %v2984
  %v3049 = vadd.f32 %v2577, %v2985
  %v3050 = vadd.f32 %v2578, %v2986
  %v3051 = vadd.f32 %v2579, %v2987
  %v3052 = vadd.f32 %v2580, %v2988
  %v3053 = vadd.f32 %v2581, %v2989
  %v3054 = vadd.f32 %v2582, %v2990
  %v3055 = vadd.f32 %v2583, %v2991
  %v3056 = vadd.f32 %v2584, %v2992
  %3057 = vrot.lane.b32.xlu0 %v1416, 1
  %v3058 = vpop.permute.xlu0 %3057
  %3059 = vrot.lane.b32.xlu0 %v1420, 1
  %v3060 = vpop.permute.xlu0 %3059
  %3061 = vrot.lane.b32.xlu0 %v1424, 1
  %v3062 = vpop.permute.xlu0 %3061
  %3063 = vrot.lane.b32.xlu0 %v1428, 1
  %v3064 = vpop.permute.xlu0 %3063
  %3065 = vrot.lane.b32.xlu0 %v1432, 1
  %v3066 = vpop.permute.xlu0 %3065
  %3067 = vrot.lane.b32.xlu0 %v1436, 1
  %v3068 = vpop.permute.xlu0 %3067
  %3069 = vrot.lane.b32.xlu0 %v1440, 1
  %v3070 = vpop.permute.xlu0 %3069
  %3071 = vrot.lane.b32.xlu0 %v1444, 1
  %v3072 = vpop.permute.xlu0 %3071
  %3073 = vrot.lane.b32.xlu0 %v1448, 1
  %v3074 = vpop.permute.xlu0 %3073
  %3075 = vrot.lane.b32.xlu0 %v1452, 1
  %v3076 = vpop.permute.xlu0 %3075
  %3077 = vrot.lane.b32.xlu0 %v1456, 1
  %v3078 = vpop.permute.xlu0 %3077
  %3079 = vrot.lane.b32.xlu0 %v1460, 1
  %v3080 = vpop.permute.xlu0 %3079
  %3081 = vrot.lane.b32.xlu0 %v1464, 1
  %v3082 = vpop.permute.xlu0 %3081
  %3083 = vrot.lane.b32.xlu0 %v1468, 1
  %v3084 = vpop.permute.xlu0 %3083
  %3085 = vrot.lane.b32.xlu0 %v1472, 1
  %v3086 = vpop.permute.xlu0 %3085
  %3087 = vrot.lane.b32.xlu0 %v1476, 1
  %v3088 = vpop.permute.xlu0 %3087
  %3089 = vrot.lane.b32.xlu0 %v1417, 1
  %v3090 = vpop.permute.xlu0 %3089
  %3091 = vrot.lane.b32.xlu0 %v1421, 1
  %v3092 = vpop.permute.xlu0 %3091
  %3093 = vrot.lane.b32.xlu0 %v1425, 1
  %v3094 = vpop.permute.xlu0 %3093
  %3095 = vrot.lane.b32.xlu0 %v1429, 1
  %v3096 = vpop.permute.xlu0 %3095
  %3097 = vrot.lane.b32.xlu0 %v1433, 1
  %v3098 = vpop.permute.xlu0 %3097
  %3099 = vrot.lane.b32.xlu0 %v1437, 1
  %v3100 = vpop.permute.xlu0 %3099
  %3101 = vrot.lane.b32.xlu0 %v1441, 1
  %v3102 = vpop.permute.xlu0 %3101
  %3103 = vrot.lane.b32.xlu0 %v1445, 1
  %v3104 = vpop.permute.xlu0 %3103
  %3105 = vrot.lane.b32.xlu0 %v1449, 1
  %v3106 = vpop.permute.xlu0 %3105
  %3107 = vrot.lane.b32.xlu0 %v1453, 1
  %v3108 = vpop.permute.xlu0 %3107
  %3109 = vrot.lane.b32.xlu0 %v1457, 1
  %v3110 = vpop.permute.xlu0 %3109
  %3111 = vrot.lane.b32.xlu0 %v1461, 1
  %v3112 = vpop.permute.xlu0 %3111
  %3113 = vrot.lane.b32.xlu0 %v1465, 1
  %v3114 = vpop.permute.xlu0 %3113
  %3115 = vrot.lane.b32.xlu0 %v1469, 1
  %v3116 = vpop.permute.xlu0 %3115
  %3117 = vrot.lane.b32.xlu0 %v1473, 1
  %v3118 = vpop.permute.xlu0 %3117
  %3119 = vrot.lane.b32.xlu0 %v1477, 1
  %v3120 = vpop.permute.xlu0 %3119
  %3121 = vrot.lane.b32.xlu0 %v1418, 1
  %v3122 = vpop.permute.xlu0 %3121
  %3123 = vrot.lane.b32.xlu0 %v1422, 1
  %v3124 = vpop.permute.xlu0 %3123
  %3125 = vrot.lane.b32.xlu0 %v1426, 1
  %v3126 = vpop.permute.xlu0 %3125
  %3127 = vrot.lane.b32.xlu0 %v1430, 1
  %v3128 = vpop.permute.xlu0 %3127
  %3129 = vrot.lane.b32.xlu0 %v1434, 1
  %v3130 = vpop.permute.xlu0 %3129
  %3131 = vrot.lane.b32.xlu0 %v1438, 1
  %v3132 = vpop.permute.xlu0 %3131
  %3133 = vrot.lane.b32.xlu0 %v1442, 1
  %v3134 = vpop.permute.xlu0 %3133
  %3135 = vrot.lane.b32.xlu0 %v1446, 1
  %v3136 = vpop.permute.xlu0 %3135
  %3137 = vrot.lane.b32.xlu0 %v1450, 1
  %v3138 = vpop.permute.xlu0 %3137
  %3139 = vrot.lane.b32.xlu0 %v1454, 1
  %v3140 = vpop.permute.xlu0 %3139
  %3141 = vrot.lane.b32.xlu0 %v1458, 1
  %v3142 = vpop.permute.xlu0 %3141
  %3143 = vrot.lane.b32.xlu0 %v1462, 1
  %v3144 = vpop.permute.xlu0 %3143
  %3145 = vrot.lane.b32.xlu0 %v1466, 1
  %v3146 = vpop.permute.xlu0 %3145
  %3147 = vrot.lane.b32.xlu0 %v1470, 1
  %v3148 = vpop.permute.xlu0 %3147
  %3149 = vrot.lane.b32.xlu0 %v1474, 1
  %v3150 = vpop.permute.xlu0 %3149
  %3151 = vrot.lane.b32.xlu0 %v1478, 1
  %v3152 = vpop.permute.xlu0 %3151
  %3153 = vrot.lane.b32.xlu0 %v1419, 1
  %v3154 = vpop.permute.xlu0 %3153
  %3155 = vrot.lane.b32.xlu0 %v1423, 1
  %v3156 = vpop.permute.xlu0 %3155
  %3157 = vrot.lane.b32.xlu0 %v1427, 1
  %v3158 = vpop.permute.xlu0 %3157
  %3159 = vrot.lane.b32.xlu0 %v1431, 1
  %v3160 = vpop.permute.xlu0 %3159
  %3161 = vrot.lane.b32.xlu0 %v1435, 1
  %v3162 = vpop.permute.xlu0 %3161
  %3163 = vrot.lane.b32.xlu0 %v1439, 1
  %v3164 = vpop.permute.xlu0 %3163
  %3165 = vrot.lane.b32.xlu0 %v1443, 1
  %v3166 = vpop.permute.xlu0 %3165
  %3167 = vrot.lane.b32.xlu0 %v1447, 1
  %v3168 = vpop.permute.xlu0 %3167
  %3169 = vrot.lane.b32.xlu0 %v1451, 1
  %v3170 = vpop.permute.xlu0 %3169
  %3171 = vrot.lane.b32.xlu0 %v1455, 1
  %v3172 = vpop.permute.xlu0 %3171
  %3173 = vrot.lane.b32.xlu0 %v1459, 1
  %v3174 = vpop.permute.xlu0 %3173
  %3175 = vrot.lane.b32.xlu0 %v1463, 1
  %v3176 = vpop.permute.xlu0 %3175
  %3177 = vrot.lane.b32.xlu0 %v1467, 1
  %v3178 = vpop.permute.xlu0 %3177
  %3179 = vrot.lane.b32.xlu0 %v1471, 1
  %v3180 = vpop.permute.xlu0 %3179
  %3181 = vrot.lane.b32.xlu0 %v1475, 1
  %v3182 = vpop.permute.xlu0 %3181
  %3183 = vrot.lane.b32.xlu0 %v1479, 1
  %v3184 = vpop.permute.xlu0 %3183
  %vm3185 = vcmp.lt.s32.totalorder %v1769, 1
  %v3186 = vsel %vm3185, %v3122, %v3154
  %v3187 = vsel %vm3185, %v3124, %v3156
  %v3188 = vsel %vm3185, %v3126, %v3158
  %v3189 = vsel %vm3185, %v3128, %v3160
  %v3190 = vsel %vm3185, %v3130, %v3162
  %v3191 = vsel %vm3185, %v3132, %v3164
  %v3192 = vsel %vm3185, %v3134, %v3166
  %v3193 = vsel %vm3185, %v3136, %v3168
  %v3194 = vsel %vm3185, %v3138, %v3170
  %v3195 = vsel %vm3185, %v3140, %v3172
  %v3196 = vsel %vm3185, %v3142, %v3174
  %v3197 = vsel %vm3185, %v3144, %v3176
  %v3198 = vsel %vm3185, %v3146, %v3178
  %v3199 = vsel %vm3185, %v3148, %v3180
  %v3200 = vsel %vm3185, %v3150, %v3182
  %v3201 = vsel %vm3185, %v3152, %v3184
  %v3202 = vsel %vm3185, %v3090, %v3122
  %v3203 = vsel %vm3185, %v3092, %v3124
  %v3204 = vsel %vm3185, %v3094, %v3126
  %v3205 = vsel %vm3185, %v3096, %v3128
  %v3206 = vsel %vm3185, %v3098, %v3130
  %v3207 = vsel %vm3185, %v3100, %v3132
  %v3208 = vsel %vm3185, %v3102, %v3134
  %v3209 = vsel %vm3185, %v3104, %v3136
  %v3210 = vsel %vm3185, %v3106, %v3138
  %v3211 = vsel %vm3185, %v3108, %v3140
  %v3212 = vsel %vm3185, %v3110, %v3142
  %v3213 = vsel %vm3185, %v3112, %v3144
  %v3214 = vsel %vm3185, %v3114, %v3146
  %v3215 = vsel %vm3185, %v3116, %v3148
  %v3216 = vsel %vm3185, %v3118, %v3150
  %v3217 = vsel %vm3185, %v3120, %v3152
  %v3218 = vsel %vm3185, %v3058, %v3090
  %v3219 = vsel %vm3185, %v3060, %v3092
  %v3220 = vsel %vm3185, %v3062, %v3094
  %v3221 = vsel %vm3185, %v3064, %v3096
  %v3222 = vsel %vm3185, %v3066, %v3098
  %v3223 = vsel %vm3185, %v3068, %v3100
  %v3224 = vsel %vm3185, %v3070, %v3102
  %v3225 = vsel %vm3185, %v3072, %v3104
  %v3226 = vsel %vm3185, %v3074, %v3106
  %v3227 = vsel %vm3185, %v3076, %v3108
  %v3228 = vsel %vm3185, %v3078, %v3110
  %v3229 = vsel %vm3185, %v3080, %v3112
  %v3230 = vsel %vm3185, %v3082, %v3114
  %v3231 = vsel %vm3185, %v3084, %v3116
  %v3232 = vsel %vm3185, %v3086, %v3118
  %v3233 = vsel %vm3185, %v3088, %v3120
  %v3234 = vsel %vm3185, %v3154, %v3058
  %v3235 = vsel %vm3185, %v3156, %v3060
  %v3236 = vsel %vm3185, %v3158, %v3062
  %v3237 = vsel %vm3185, %v3160, %v3064
  %v3238 = vsel %vm3185, %v3162, %v3066
  %v3239 = vsel %vm3185, %v3164, %v3068
  %v3240 = vsel %vm3185, %v3166, %v3070
  %v3241 = vsel %vm3185, %v3168, %v3072
  %v3242 = vsel %vm3185, %v3170, %v3074
  %v3243 = vsel %vm3185, %v3172, %v3076
  %v3244 = vsel %vm3185, %v3174, %v3078
  %v3245 = vsel %vm3185, %v3176, %v3080
  %v3246 = vsel %vm3185, %v3178, %v3082
  %v3247 = vsel %vm3185, %v3180, %v3084
  %v3248 = vsel %vm3185, %v3182, %v3086
  %v3249 = vsel %vm3185, %v3184, %v3088
  %s3250 = scalar_lea.vmem %s3, 3
  %v3251 = vld [vmem:[%s3250] ss:$8 sm:$0xf]
  %v3253 = vlaneseq
  %v3254 = vshrl.u32 %v3253, 7
  %v3255 = vsub.s32 0, %v3254
  %v3256 = vrot.slane %v3251, %v3255
  %v3257 = vlaneseq
  %v3258 = vshrl.u32 %v3257, 7
  %v3259 = vsub.s32 1, %v3258
  %v3260 = vrot.slane %v3251, %v3259
  %v3261 = vlaneseq
  %v3262 = vshrl.u32 %v3261, 7
  %v3263 = vsub.s32 2, %v3262
  %v3264 = vrot.slane %v3251, %v3263
  %v3265 = vlaneseq
  %v3266 = vshrl.u32 %v3265, 7
  %v3267 = vsub.s32 3, %v3266
  %v3268 = vrot.slane %v3251, %v3267
  %v3273 = vmul.f32 %v3234, %v3256
  %v3274 = vmul.f32 %v3218, %v3260
  %v3275 = vmul.f32 %v3202, %v3264
  %v3276 = vmul.f32 %v3186, %v3268
  %v3277 = vmul.f32 %v3235, %v3256
  %v3278 = vmul.f32 %v3219, %v3260
  %v3279 = vmul.f32 %v3203, %v3264
  %v3280 = vmul.f32 %v3187, %v3268
  %v3281 = vmul.f32 %v3236, %v3256
  %v3282 = vmul.f32 %v3220, %v3260
  %v3283 = vmul.f32 %v3204, %v3264
  %v3284 = vmul.f32 %v3188, %v3268
  %v3285 = vmul.f32 %v3237, %v3256
  %v3286 = vmul.f32 %v3221, %v3260
  %v3287 = vmul.f32 %v3205, %v3264
  %v3288 = vmul.f32 %v3189, %v3268
  %v3289 = vmul.f32 %v3238, %v3256
  %v3290 = vmul.f32 %v3222, %v3260
  %v3291 = vmul.f32 %v3206, %v3264
  %v3292 = vmul.f32 %v3190, %v3268
  %v3293 = vmul.f32 %v3239, %v3256
  %v3294 = vmul.f32 %v3223, %v3260
  %v3295 = vmul.f32 %v3207, %v3264
  %v3296 = vmul.f32 %v3191, %v3268
  %v3297 = vmul.f32 %v3240, %v3256
  %v3298 = vmul.f32 %v3224, %v3260
  %v3299 = vmul.f32 %v3208, %v3264
  %v3300 = vmul.f32 %v3192, %v3268
  %v3301 = vmul.f32 %v3241, %v3256
  %v3302 = vmul.f32 %v3225, %v3260
  %v3303 = vmul.f32 %v3209, %v3264
  %v3304 = vmul.f32 %v3193, %v3268
  %v3305 = vmul.f32 %v3242, %v3256
  %v3306 = vmul.f32 %v3226, %v3260
  %v3307 = vmul.f32 %v3210, %v3264
  %v3308 = vmul.f32 %v3194, %v3268
  %v3309 = vmul.f32 %v3243, %v3256
  %v3310 = vmul.f32 %v3227, %v3260
  %v3311 = vmul.f32 %v3211, %v3264
  %v3312 = vmul.f32 %v3195, %v3268
  %v3313 = vmul.f32 %v3244, %v3256
  %v3314 = vmul.f32 %v3228, %v3260
  %v3315 = vmul.f32 %v3212, %v3264
  %v3316 = vmul.f32 %v3196, %v3268
  %v3317 = vmul.f32 %v3245, %v3256
  %v3318 = vmul.f32 %v3229, %v3260
  %v3319 = vmul.f32 %v3213, %v3264
  %v3320 = vmul.f32 %v3197, %v3268
  %v3321 = vmul.f32 %v3246, %v3256
  %v3322 = vmul.f32 %v3230, %v3260
  %v3323 = vmul.f32 %v3214, %v3264
  %v3324 = vmul.f32 %v3198, %v3268
  %v3325 = vmul.f32 %v3247, %v3256
  %v3326 = vmul.f32 %v3231, %v3260
  %v3327 = vmul.f32 %v3215, %v3264
  %v3328 = vmul.f32 %v3199, %v3268
  %v3329 = vmul.f32 %v3248, %v3256
  %v3330 = vmul.f32 %v3232, %v3260
  %v3331 = vmul.f32 %v3216, %v3264
  %v3332 = vmul.f32 %v3200, %v3268
  %v3333 = vmul.f32 %v3249, %v3256
  %v3334 = vmul.f32 %v3233, %v3260
  %v3335 = vmul.f32 %v3217, %v3264
  %v3336 = vmul.f32 %v3201, %v3268
  %3337 = vset.pattern.permute.xlu0 3
  %3338 = vperm.xlu0 %3337, %v1480
  %v3339 = vpop.permute.xlu0 %3338
  %3341 = vset.pattern.permute.xlu0 3
  %3342 = vperm.xlu0 %3341, %v1481
  %v3343 = vpop.permute.xlu0 %3342
  %3345 = vset.pattern.permute.xlu0 3
  %3346 = vperm.xlu0 %3345, %v1482
  %v3347 = vpop.permute.xlu0 %3346
  %3349 = vset.pattern.permute.xlu0 3
  %3350 = vperm.xlu0 %3349, %v1483
  %v3351 = vpop.permute.xlu0 %3350
  %3353 = vset.pattern.permute.xlu0 3
  %3354 = vperm.xlu0 %3353, %v1484
  %v3355 = vpop.permute.xlu0 %3354
  %3357 = vset.pattern.permute.xlu0 3
  %3358 = vperm.xlu0 %3357, %v1485
  %v3359 = vpop.permute.xlu0 %3358
  %3361 = vset.pattern.permute.xlu0 3
  %3362 = vperm.xlu0 %3361, %v1486
  %v3363 = vpop.permute.xlu0 %3362
  %3365 = vset.pattern.permute.xlu0 3
  %3366 = vperm.xlu0 %3365, %v1487
  %v3367 = vpop.permute.xlu0 %3366
  %3369 = vset.pattern.permute.xlu0 3
  %3370 = vperm.xlu0 %3369, %v1488
  %v3371 = vpop.permute.xlu0 %3370
  %3373 = vset.pattern.permute.xlu0 3
  %3374 = vperm.xlu0 %3373, %v1489
  %v3375 = vpop.permute.xlu0 %3374
  %3377 = vset.pattern.permute.xlu0 3
  %3378 = vperm.xlu0 %3377, %v1490
  %v3379 = vpop.permute.xlu0 %3378
  %3381 = vset.pattern.permute.xlu0 3
  %3382 = vperm.xlu0 %3381, %v1491
  %v3383 = vpop.permute.xlu0 %3382
  %3385 = vset.pattern.permute.xlu0 3
  %3386 = vperm.xlu0 %3385, %v1492
  %v3387 = vpop.permute.xlu0 %3386
  %3389 = vset.pattern.permute.xlu0 3
  %3390 = vperm.xlu0 %3389, %v1493
  %v3391 = vpop.permute.xlu0 %3390
  %3393 = vset.pattern.permute.xlu0 3
  %3394 = vperm.xlu0 %3393, %v1494
  %v3395 = vpop.permute.xlu0 %3394
  %3397 = vset.pattern.permute.xlu0 3
  %3398 = vperm.xlu0 %3397, %v1495
  %v3399 = vpop.permute.xlu0 %3398
  %v3401 = vmul.f32 %v3273, %v3339
  %v3402 = vmul.f32 %v3274, %v3339
  %v3403 = vmul.f32 %v3275, %v3339
  %v3404 = vmul.f32 %v3276, %v3339
  %v3405 = vmul.f32 %v3277, %v3343
  %v3406 = vmul.f32 %v3278, %v3343
  %v3407 = vmul.f32 %v3279, %v3343
  %v3408 = vmul.f32 %v3280, %v3343
  %v3409 = vmul.f32 %v3281, %v3347
  %v3410 = vmul.f32 %v3282, %v3347
  %v3411 = vmul.f32 %v3283, %v3347
  %v3412 = vmul.f32 %v3284, %v3347
  %v3413 = vmul.f32 %v3285, %v3351
  %v3414 = vmul.f32 %v3286, %v3351
  %v3415 = vmul.f32 %v3287, %v3351
  %v3416 = vmul.f32 %v3288, %v3351
  %v3417 = vmul.f32 %v3289, %v3355
  %v3418 = vmul.f32 %v3290, %v3355
  %v3419 = vmul.f32 %v3291, %v3355
  %v3420 = vmul.f32 %v3292, %v3355
  %v3421 = vmul.f32 %v3293, %v3359
  %v3422 = vmul.f32 %v3294, %v3359
  %v3423 = vmul.f32 %v3295, %v3359
  %v3424 = vmul.f32 %v3296, %v3359
  %v3425 = vmul.f32 %v3297, %v3363
  %v3426 = vmul.f32 %v3298, %v3363
  %v3427 = vmul.f32 %v3299, %v3363
  %v3428 = vmul.f32 %v3300, %v3363
  %v3429 = vmul.f32 %v3301, %v3367
  %v3430 = vmul.f32 %v3302, %v3367
  %v3431 = vmul.f32 %v3303, %v3367
  %v3432 = vmul.f32 %v3304, %v3367
  %v3433 = vmul.f32 %v3305, %v3371
  %v3434 = vmul.f32 %v3306, %v3371
  %v3435 = vmul.f32 %v3307, %v3371
  %v3436 = vmul.f32 %v3308, %v3371
  %v3437 = vmul.f32 %v3309, %v3375
  %v3438 = vmul.f32 %v3310, %v3375
  %v3439 = vmul.f32 %v3311, %v3375
  %v3440 = vmul.f32 %v3312, %v3375
  %v3441 = vmul.f32 %v3313, %v3379
  %v3442 = vmul.f32 %v3314, %v3379
  %v3443 = vmul.f32 %v3315, %v3379
  %v3444 = vmul.f32 %v3316, %v3379
  %v3445 = vmul.f32 %v3317, %v3383
  %v3446 = vmul.f32 %v3318, %v3383
  %v3447 = vmul.f32 %v3319, %v3383
  %v3448 = vmul.f32 %v3320, %v3383
  %v3449 = vmul.f32 %v3321, %v3387
  %v3450 = vmul.f32 %v3322, %v3387
  %v3451 = vmul.f32 %v3323, %v3387
  %v3452 = vmul.f32 %v3324, %v3387
  %v3453 = vmul.f32 %v3325, %v3391
  %v3454 = vmul.f32 %v3326, %v3391
  %v3455 = vmul.f32 %v3327, %v3391
  %v3456 = vmul.f32 %v3328, %v3391
  %v3457 = vmul.f32 %v3329, %v3395
  %v3458 = vmul.f32 %v3330, %v3395
  %v3459 = vmul.f32 %v3331, %v3395
  %v3460 = vmul.f32 %v3332, %v3395
  %v3461 = vmul.f32 %v3333, %v3399
  %v3462 = vmul.f32 %v3334, %v3399
  %v3463 = vmul.f32 %v3335, %v3399
  %v3464 = vmul.f32 %v3336, %v3399
  %v3465 = vadd.f32 %v2993, %v3401
  %v3466 = vadd.f32 %v2994, %v3402
  %v3467 = vadd.f32 %v2995, %v3403
  %v3468 = vadd.f32 %v2996, %v3404
  %v3469 = vadd.f32 %v2997, %v3405
  %v3470 = vadd.f32 %v2998, %v3406
  %v3471 = vadd.f32 %v2999, %v3407
  %v3472 = vadd.f32 %v3000, %v3408
  %v3473 = vadd.f32 %v3001, %v3409
  %v3474 = vadd.f32 %v3002, %v3410
  %v3475 = vadd.f32 %v3003, %v3411
  %v3476 = vadd.f32 %v3004, %v3412
  %v3477 = vadd.f32 %v3005, %v3413
  %v3478 = vadd.f32 %v3006, %v3414
  %v3479 = vadd.f32 %v3007, %v3415
  %v3480 = vadd.f32 %v3008, %v3416
  %v3481 = vadd.f32 %v3009, %v3417
  %v3482 = vadd.f32 %v3010, %v3418
  %v3483 = vadd.f32 %v3011, %v3419
  %v3484 = vadd.f32 %v3012, %v3420
  %v3485 = vadd.f32 %v3013, %v3421
  %v3486 = vadd.f32 %v3014, %v3422
  %v3487 = vadd.f32 %v3015, %v3423
  %v3488 = vadd.f32 %v3016, %v3424
  %v3489 = vadd.f32 %v3017, %v3425
  %v3490 = vadd.f32 %v3018, %v3426
  %v3491 = vadd.f32 %v3019, %v3427
  %v3492 = vadd.f32 %v3020, %v3428
  %v3493 = vadd.f32 %v3021, %v3429
  %v3494 = vadd.f32 %v3022, %v3430
  %v3495 = vadd.f32 %v3023, %v3431
  %v3496 = vadd.f32 %v3024, %v3432
  %v3497 = vadd.f32 %v3025, %v3433
  %v3498 = vadd.f32 %v3026, %v3434
  %v3499 = vadd.f32 %v3027, %v3435
  %v3500 = vadd.f32 %v3028, %v3436
  %v3501 = vadd.f32 %v3029, %v3437
  %v3502 = vadd.f32 %v3030, %v3438
  %v3503 = vadd.f32 %v3031, %v3439
  %v3504 = vadd.f32 %v3032, %v3440
  %v3505 = vadd.f32 %v3033, %v3441
  %v3506 = vadd.f32 %v3034, %v3442
  %v3507 = vadd.f32 %v3035, %v3443
  %v3508 = vadd.f32 %v3036, %v3444
  %v3509 = vadd.f32 %v3037, %v3445
  %v3510 = vadd.f32 %v3038, %v3446
  %v3511 = vadd.f32 %v3039, %v3447
  %v3512 = vadd.f32 %v3040, %v3448
  %v3513 = vadd.f32 %v3041, %v3449
  %v3514 = vadd.f32 %v3042, %v3450
  %v3515 = vadd.f32 %v3043, %v3451
  %v3516 = vadd.f32 %v3044, %v3452
  %v3517 = vadd.f32 %v3045, %v3453
  %v3518 = vadd.f32 %v3046, %v3454
  %v3519 = vadd.f32 %v3047, %v3455
  %v3520 = vadd.f32 %v3048, %v3456
  %v3521 = vadd.f32 %v3049, %v3457
  %v3522 = vadd.f32 %v3050, %v3458
  %v3523 = vadd.f32 %v3051, %v3459
  %v3524 = vadd.f32 %v3052, %v3460
  %v3525 = vadd.f32 %v3053, %v3461
  %v3526 = vadd.f32 %v3054, %v3462
  %v3527 = vadd.f32 %v3055, %v3463
  %v3528 = vadd.f32 %v3056, %v3464
  %3529 = vrot.lane.b32.xlu0 %v1416, 127
  %v3530 = vpop.permute.xlu0 %3529
  %3531 = vrot.lane.b32.xlu0 %v1420, 127
  %v3532 = vpop.permute.xlu0 %3531
  %3533 = vrot.lane.b32.xlu0 %v1424, 127
  %v3534 = vpop.permute.xlu0 %3533
  %3535 = vrot.lane.b32.xlu0 %v1428, 127
  %v3536 = vpop.permute.xlu0 %3535
  %3537 = vrot.lane.b32.xlu0 %v1432, 127
  %v3538 = vpop.permute.xlu0 %3537
  %3539 = vrot.lane.b32.xlu0 %v1436, 127
  %v3540 = vpop.permute.xlu0 %3539
  %3541 = vrot.lane.b32.xlu0 %v1440, 127
  %v3542 = vpop.permute.xlu0 %3541
  %3543 = vrot.lane.b32.xlu0 %v1444, 127
  %v3544 = vpop.permute.xlu0 %3543
  %3545 = vrot.lane.b32.xlu0 %v1448, 127
  %v3546 = vpop.permute.xlu0 %3545
  %3547 = vrot.lane.b32.xlu0 %v1452, 127
  %v3548 = vpop.permute.xlu0 %3547
  %3549 = vrot.lane.b32.xlu0 %v1456, 127
  %v3550 = vpop.permute.xlu0 %3549
  %3551 = vrot.lane.b32.xlu0 %v1460, 127
  %v3552 = vpop.permute.xlu0 %3551
  %3553 = vrot.lane.b32.xlu0 %v1464, 127
  %v3554 = vpop.permute.xlu0 %3553
  %3555 = vrot.lane.b32.xlu0 %v1468, 127
  %v3556 = vpop.permute.xlu0 %3555
  %3557 = vrot.lane.b32.xlu0 %v1472, 127
  %v3558 = vpop.permute.xlu0 %3557
  %3559 = vrot.lane.b32.xlu0 %v1476, 127
  %v3560 = vpop.permute.xlu0 %3559
  %3561 = vrot.lane.b32.xlu0 %v1417, 127
  %v3562 = vpop.permute.xlu0 %3561
  %3563 = vrot.lane.b32.xlu0 %v1421, 127
  %v3564 = vpop.permute.xlu0 %3563
  %3565 = vrot.lane.b32.xlu0 %v1425, 127
  %v3566 = vpop.permute.xlu0 %3565
  %3567 = vrot.lane.b32.xlu0 %v1429, 127
  %v3568 = vpop.permute.xlu0 %3567
  %3569 = vrot.lane.b32.xlu0 %v1433, 127
  %v3570 = vpop.permute.xlu0 %3569
  %3571 = vrot.lane.b32.xlu0 %v1437, 127
  %v3572 = vpop.permute.xlu0 %3571
  %3573 = vrot.lane.b32.xlu0 %v1441, 127
  %v3574 = vpop.permute.xlu0 %3573
  %3575 = vrot.lane.b32.xlu0 %v1445, 127
  %v3576 = vpop.permute.xlu0 %3575
  %3577 = vrot.lane.b32.xlu0 %v1449, 127
  %v3578 = vpop.permute.xlu0 %3577
  %3579 = vrot.lane.b32.xlu0 %v1453, 127
  %v3580 = vpop.permute.xlu0 %3579
  %3581 = vrot.lane.b32.xlu0 %v1457, 127
  %v3582 = vpop.permute.xlu0 %3581
  %3583 = vrot.lane.b32.xlu0 %v1461, 127
  %v3584 = vpop.permute.xlu0 %3583
  %3585 = vrot.lane.b32.xlu0 %v1465, 127
  %v3586 = vpop.permute.xlu0 %3585
  %3587 = vrot.lane.b32.xlu0 %v1469, 127
  %v3588 = vpop.permute.xlu0 %3587
  %3589 = vrot.lane.b32.xlu0 %v1473, 127
  %v3590 = vpop.permute.xlu0 %3589
  %3591 = vrot.lane.b32.xlu0 %v1477, 127
  %v3592 = vpop.permute.xlu0 %3591
  %3593 = vrot.lane.b32.xlu0 %v1418, 127
  %v3594 = vpop.permute.xlu0 %3593
  %3595 = vrot.lane.b32.xlu0 %v1422, 127
  %v3596 = vpop.permute.xlu0 %3595
  %3597 = vrot.lane.b32.xlu0 %v1426, 127
  %v3598 = vpop.permute.xlu0 %3597
  %3599 = vrot.lane.b32.xlu0 %v1430, 127
  %v3600 = vpop.permute.xlu0 %3599
  %3601 = vrot.lane.b32.xlu0 %v1434, 127
  %v3602 = vpop.permute.xlu0 %3601
  %3603 = vrot.lane.b32.xlu0 %v1438, 127
  %v3604 = vpop.permute.xlu0 %3603
  %3605 = vrot.lane.b32.xlu0 %v1442, 127
  %v3606 = vpop.permute.xlu0 %3605
  %3607 = vrot.lane.b32.xlu0 %v1446, 127
  %v3608 = vpop.permute.xlu0 %3607
  %3609 = vrot.lane.b32.xlu0 %v1450, 127
  %v3610 = vpop.permute.xlu0 %3609
  %3611 = vrot.lane.b32.xlu0 %v1454, 127
  %v3612 = vpop.permute.xlu0 %3611
  %3613 = vrot.lane.b32.xlu0 %v1458, 127
  %v3614 = vpop.permute.xlu0 %3613
  %3615 = vrot.lane.b32.xlu0 %v1462, 127
  %v3616 = vpop.permute.xlu0 %3615
  %3617 = vrot.lane.b32.xlu0 %v1466, 127
  %v3618 = vpop.permute.xlu0 %3617
  %3619 = vrot.lane.b32.xlu0 %v1470, 127
  %v3620 = vpop.permute.xlu0 %3619
  %3621 = vrot.lane.b32.xlu0 %v1474, 127
  %v3622 = vpop.permute.xlu0 %3621
  %3623 = vrot.lane.b32.xlu0 %v1478, 127
  %v3624 = vpop.permute.xlu0 %3623
  %3625 = vrot.lane.b32.xlu0 %v1419, 127
  %v3626 = vpop.permute.xlu0 %3625
  %3627 = vrot.lane.b32.xlu0 %v1423, 127
  %v3628 = vpop.permute.xlu0 %3627
  %3629 = vrot.lane.b32.xlu0 %v1427, 127
  %v3630 = vpop.permute.xlu0 %3629
  %3631 = vrot.lane.b32.xlu0 %v1431, 127
  %v3632 = vpop.permute.xlu0 %3631
  %3633 = vrot.lane.b32.xlu0 %v1435, 127
  %v3634 = vpop.permute.xlu0 %3633
  %3635 = vrot.lane.b32.xlu0 %v1439, 127
  %v3636 = vpop.permute.xlu0 %3635
  %3637 = vrot.lane.b32.xlu0 %v1443, 127
  %v3638 = vpop.permute.xlu0 %3637
  %3639 = vrot.lane.b32.xlu0 %v1447, 127
  %v3640 = vpop.permute.xlu0 %3639
  %3641 = vrot.lane.b32.xlu0 %v1451, 127
  %v3642 = vpop.permute.xlu0 %3641
  %3643 = vrot.lane.b32.xlu0 %v1455, 127
  %v3644 = vpop.permute.xlu0 %3643
  %3645 = vrot.lane.b32.xlu0 %v1459, 127
  %v3646 = vpop.permute.xlu0 %3645
  %3647 = vrot.lane.b32.xlu0 %v1463, 127
  %v3648 = vpop.permute.xlu0 %3647
  %3649 = vrot.lane.b32.xlu0 %v1467, 127
  %v3650 = vpop.permute.xlu0 %3649
  %3651 = vrot.lane.b32.xlu0 %v1471, 127
  %v3652 = vpop.permute.xlu0 %3651
  %3653 = vrot.lane.b32.xlu0 %v1475, 127
  %v3654 = vpop.permute.xlu0 %3653
  %3655 = vrot.lane.b32.xlu0 %v1479, 127
  %v3656 = vpop.permute.xlu0 %3655
  %vm3657 = vcmp.lt.s32.totalorder %v1769, 127
  %v3658 = vsel %vm3657, %v3594, %v3626
  %v3659 = vsel %vm3657, %v3596, %v3628
  %v3660 = vsel %vm3657, %v3598, %v3630
  %v3661 = vsel %vm3657, %v3600, %v3632
  %v3662 = vsel %vm3657, %v3602, %v3634
  %v3663 = vsel %vm3657, %v3604, %v3636
  %v3664 = vsel %vm3657, %v3606, %v3638
  %v3665 = vsel %vm3657, %v3608, %v3640
  %v3666 = vsel %vm3657, %v3610, %v3642
  %v3667 = vsel %vm3657, %v3612, %v3644
  %v3668 = vsel %vm3657, %v3614, %v3646
  %v3669 = vsel %vm3657, %v3616, %v3648
  %v3670 = vsel %vm3657, %v3618, %v3650
  %v3671 = vsel %vm3657, %v3620, %v3652
  %v3672 = vsel %vm3657, %v3622, %v3654
  %v3673 = vsel %vm3657, %v3624, %v3656
  %v3674 = vsel %vm3657, %v3562, %v3594
  %v3675 = vsel %vm3657, %v3564, %v3596
  %v3676 = vsel %vm3657, %v3566, %v3598
  %v3677 = vsel %vm3657, %v3568, %v3600
  %v3678 = vsel %vm3657, %v3570, %v3602
  %v3679 = vsel %vm3657, %v3572, %v3604
  %v3680 = vsel %vm3657, %v3574, %v3606
  %v3681 = vsel %vm3657, %v3576, %v3608
  %v3682 = vsel %vm3657, %v3578, %v3610
  %v3683 = vsel %vm3657, %v3580, %v3612
  %v3684 = vsel %vm3657, %v3582, %v3614
  %v3685 = vsel %vm3657, %v3584, %v3616
  %v3686 = vsel %vm3657, %v3586, %v3618
  %v3687 = vsel %vm3657, %v3588, %v3620
  %v3688 = vsel %vm3657, %v3590, %v3622
  %v3689 = vsel %vm3657, %v3592, %v3624
  %v3690 = vsel %vm3657, %v3530, %v3562
  %v3691 = vsel %vm3657, %v3532, %v3564
  %v3692 = vsel %vm3657, %v3534, %v3566
  %v3693 = vsel %vm3657, %v3536, %v3568
  %v3694 = vsel %vm3657, %v3538, %v3570
  %v3695 = vsel %vm3657, %v3540, %v3572
  %v3696 = vsel %vm3657, %v3542, %v3574
  %v3697 = vsel %vm3657, %v3544, %v3576
  %v3698 = vsel %vm3657, %v3546, %v3578
  %v3699 = vsel %vm3657, %v3548, %v3580
  %v3700 = vsel %vm3657, %v3550, %v3582
  %v3701 = vsel %vm3657, %v3552, %v3584
  %v3702 = vsel %vm3657, %v3554, %v3586
  %v3703 = vsel %vm3657, %v3556, %v3588
  %v3704 = vsel %vm3657, %v3558, %v3590
  %v3705 = vsel %vm3657, %v3560, %v3592
  %v3706 = vsel %vm3657, %v3626, %v3530
  %v3707 = vsel %vm3657, %v3628, %v3532
  %v3708 = vsel %vm3657, %v3630, %v3534
  %v3709 = vsel %vm3657, %v3632, %v3536
  %v3710 = vsel %vm3657, %v3634, %v3538
  %v3711 = vsel %vm3657, %v3636, %v3540
  %v3712 = vsel %vm3657, %v3638, %v3542
  %v3713 = vsel %vm3657, %v3640, %v3544
  %v3714 = vsel %vm3657, %v3642, %v3546
  %v3715 = vsel %vm3657, %v3644, %v3548
  %v3716 = vsel %vm3657, %v3646, %v3550
  %v3717 = vsel %vm3657, %v3648, %v3552
  %v3718 = vsel %vm3657, %v3650, %v3554
  %v3719 = vsel %vm3657, %v3652, %v3556
  %v3720 = vsel %vm3657, %v3654, %v3558
  %v3721 = vsel %vm3657, %v3656, %v3560
  %s3722 = scalar_lea.vmem %s3, 4
  %v3723 = vld [vmem:[%s3722] ss:$8 sm:$0xf]
  %v3725 = vlaneseq
  %v3726 = vshrl.u32 %v3725, 7
  %v3727 = vsub.s32 0, %v3726
  %v3728 = vrot.slane %v3723, %v3727
  %v3729 = vlaneseq
  %v3730 = vshrl.u32 %v3729, 7
  %v3731 = vsub.s32 1, %v3730
  %v3732 = vrot.slane %v3723, %v3731
  %v3733 = vlaneseq
  %v3734 = vshrl.u32 %v3733, 7
  %v3735 = vsub.s32 2, %v3734
  %v3736 = vrot.slane %v3723, %v3735
  %v3737 = vlaneseq
  %v3738 = vshrl.u32 %v3737, 7
  %v3739 = vsub.s32 3, %v3738
  %v3740 = vrot.slane %v3723, %v3739
  %v3745 = vmul.f32 %v3690, %v3728
  %v3746 = vmul.f32 %v3674, %v3732
  %v3747 = vmul.f32 %v3658, %v3736
  %v3748 = vmul.f32 %v3706, %v3740
  %v3749 = vmul.f32 %v3691, %v3728
  %v3750 = vmul.f32 %v3675, %v3732
  %v3751 = vmul.f32 %v3659, %v3736
  %v3752 = vmul.f32 %v3707, %v3740
  %v3753 = vmul.f32 %v3692, %v3728
  %v3754 = vmul.f32 %v3676, %v3732
  %v3755 = vmul.f32 %v3660, %v3736
  %v3756 = vmul.f32 %v3708, %v3740
  %v3757 = vmul.f32 %v3693, %v3728
  %v3758 = vmul.f32 %v3677, %v3732
  %v3759 = vmul.f32 %v3661, %v3736
  %v3760 = vmul.f32 %v3709, %v3740
  %v3761 = vmul.f32 %v3694, %v3728
  %v3762 = vmul.f32 %v3678, %v3732
  %v3763 = vmul.f32 %v3662, %v3736
  %v3764 = vmul.f32 %v3710, %v3740
  %v3765 = vmul.f32 %v3695, %v3728
  %v3766 = vmul.f32 %v3679, %v3732
  %v3767 = vmul.f32 %v3663, %v3736
  %v3768 = vmul.f32 %v3711, %v3740
  %v3769 = vmul.f32 %v3696, %v3728
  %v3770 = vmul.f32 %v3680, %v3732
  %v3771 = vmul.f32 %v3664, %v3736
  %v3772 = vmul.f32 %v3712, %v3740
  %v3773 = vmul.f32 %v3697, %v3728
  %v3774 = vmul.f32 %v3681, %v3732
  %v3775 = vmul.f32 %v3665, %v3736
  %v3776 = vmul.f32 %v3713, %v3740
  %v3777 = vmul.f32 %v3698, %v3728
  %v3778 = vmul.f32 %v3682, %v3732
  %v3779 = vmul.f32 %v3666, %v3736
  %v3780 = vmul.f32 %v3714, %v3740
  %v3781 = vmul.f32 %v3699, %v3728
  %v3782 = vmul.f32 %v3683, %v3732
  %v3783 = vmul.f32 %v3667, %v3736
  %v3784 = vmul.f32 %v3715, %v3740
  %v3785 = vmul.f32 %v3700, %v3728
  %v3786 = vmul.f32 %v3684, %v3732
  %v3787 = vmul.f32 %v3668, %v3736
  %v3788 = vmul.f32 %v3716, %v3740
  %v3789 = vmul.f32 %v3701, %v3728
  %v3790 = vmul.f32 %v3685, %v3732
  %v3791 = vmul.f32 %v3669, %v3736
  %v3792 = vmul.f32 %v3717, %v3740
  %v3793 = vmul.f32 %v3702, %v3728
  %v3794 = vmul.f32 %v3686, %v3732
  %v3795 = vmul.f32 %v3670, %v3736
  %v3796 = vmul.f32 %v3718, %v3740
  %v3797 = vmul.f32 %v3703, %v3728
  %v3798 = vmul.f32 %v3687, %v3732
  %v3799 = vmul.f32 %v3671, %v3736
  %v3800 = vmul.f32 %v3719, %v3740
  %v3801 = vmul.f32 %v3704, %v3728
  %v3802 = vmul.f32 %v3688, %v3732
  %v3803 = vmul.f32 %v3672, %v3736
  %v3804 = vmul.f32 %v3720, %v3740
  %v3805 = vmul.f32 %v3705, %v3728
  %v3806 = vmul.f32 %v3689, %v3732
  %v3807 = vmul.f32 %v3673, %v3736
  %v3808 = vmul.f32 %v3721, %v3740
  %3809 = vset.pattern.permute.xlu0 5
  %3810 = vperm.xlu0 %3809, %v1480
  %v3811 = vpop.permute.xlu0 %3810
  %3813 = vset.pattern.permute.xlu0 5
  %3814 = vperm.xlu0 %3813, %v1481
  %v3815 = vpop.permute.xlu0 %3814
  %3817 = vset.pattern.permute.xlu0 5
  %3818 = vperm.xlu0 %3817, %v1482
  %v3819 = vpop.permute.xlu0 %3818
  %3821 = vset.pattern.permute.xlu0 5
  %3822 = vperm.xlu0 %3821, %v1483
  %v3823 = vpop.permute.xlu0 %3822
  %3825 = vset.pattern.permute.xlu0 5
  %3826 = vperm.xlu0 %3825, %v1484
  %v3827 = vpop.permute.xlu0 %3826
  %3829 = vset.pattern.permute.xlu0 5
  %3830 = vperm.xlu0 %3829, %v1485
  %v3831 = vpop.permute.xlu0 %3830
  %3833 = vset.pattern.permute.xlu0 5
  %3834 = vperm.xlu0 %3833, %v1486
  %v3835 = vpop.permute.xlu0 %3834
  %3837 = vset.pattern.permute.xlu0 5
  %3838 = vperm.xlu0 %3837, %v1487
  %v3839 = vpop.permute.xlu0 %3838
  %3841 = vset.pattern.permute.xlu0 5
  %3842 = vperm.xlu0 %3841, %v1488
  %v3843 = vpop.permute.xlu0 %3842
  %3845 = vset.pattern.permute.xlu0 5
  %3846 = vperm.xlu0 %3845, %v1489
  %v3847 = vpop.permute.xlu0 %3846
  %3849 = vset.pattern.permute.xlu0 5
  %3850 = vperm.xlu0 %3849, %v1490
  %v3851 = vpop.permute.xlu0 %3850
  %3853 = vset.pattern.permute.xlu0 5
  %3854 = vperm.xlu0 %3853, %v1491
  %v3855 = vpop.permute.xlu0 %3854
  %3857 = vset.pattern.permute.xlu0 5
  %3858 = vperm.xlu0 %3857, %v1492
  %v3859 = vpop.permute.xlu0 %3858
  %3861 = vset.pattern.permute.xlu0 5
  %3862 = vperm.xlu0 %3861, %v1493
  %v3863 = vpop.permute.xlu0 %3862
  %3865 = vset.pattern.permute.xlu0 5
  %3866 = vperm.xlu0 %3865, %v1494
  %v3867 = vpop.permute.xlu0 %3866
  %3869 = vset.pattern.permute.xlu0 5
  %3870 = vperm.xlu0 %3869, %v1495
  %v3871 = vpop.permute.xlu0 %3870
  %v3873 = vmul.f32 %v3745, %v3811
  %v3874 = vmul.f32 %v3746, %v3811
  %v3875 = vmul.f32 %v3747, %v3811
  %v3876 = vmul.f32 %v3748, %v3811
  %v3877 = vmul.f32 %v3749, %v3815
  %v3878 = vmul.f32 %v3750, %v3815
  %v3879 = vmul.f32 %v3751, %v3815
  %v3880 = vmul.f32 %v3752, %v3815
  %v3881 = vmul.f32 %v3753, %v3819
  %v3882 = vmul.f32 %v3754, %v3819
  %v3883 = vmul.f32 %v3755, %v3819
  %v3884 = vmul.f32 %v3756, %v3819
  %v3885 = vmul.f32 %v3757, %v3823
  %v3886 = vmul.f32 %v3758, %v3823
  %v3887 = vmul.f32 %v3759, %v3823
  %v3888 = vmul.f32 %v3760, %v3823
  %v3889 = vmul.f32 %v3761, %v3827
  %v3890 = vmul.f32 %v3762, %v3827
  %v3891 = vmul.f32 %v3763, %v3827
  %v3892 = vmul.f32 %v3764, %v3827
  %v3893 = vmul.f32 %v3765, %v3831
  %v3894 = vmul.f32 %v3766, %v3831
  %v3895 = vmul.f32 %v3767, %v3831
  %v3896 = vmul.f32 %v3768, %v3831
  %v3897 = vmul.f32 %v3769, %v3835
  %v3898 = vmul.f32 %v3770, %v3835
  %v3899 = vmul.f32 %v3771, %v3835
  %v3900 = vmul.f32 %v3772, %v3835
  %v3901 = vmul.f32 %v3773, %v3839
  %v3902 = vmul.f32 %v3774, %v3839
  %v3903 = vmul.f32 %v3775, %v3839
  %v3904 = vmul.f32 %v3776, %v3839
  %v3905 = vmul.f32 %v3777, %v3843
  %v3906 = vmul.f32 %v3778, %v3843
  %v3907 = vmul.f32 %v3779, %v3843
  %v3908 = vmul.f32 %v3780, %v3843
  %v3909 = vmul.f32 %v3781, %v3847
  %v3910 = vmul.f32 %v3782, %v3847
  %v3911 = vmul.f32 %v3783, %v3847
  %v3912 = vmul.f32 %v3784, %v3847
  %v3913 = vmul.f32 %v3785, %v3851
  %v3914 = vmul.f32 %v3786, %v3851
  %v3915 = vmul.f32 %v3787, %v3851
  %v3916 = vmul.f32 %v3788, %v3851
  %v3917 = vmul.f32 %v3789, %v3855
  %v3918 = vmul.f32 %v3790, %v3855
  %v3919 = vmul.f32 %v3791, %v3855
  %v3920 = vmul.f32 %v3792, %v3855
  %v3921 = vmul.f32 %v3793, %v3859
  %v3922 = vmul.f32 %v3794, %v3859
  %v3923 = vmul.f32 %v3795, %v3859
  %v3924 = vmul.f32 %v3796, %v3859
  %v3925 = vmul.f32 %v3797, %v3863
  %v3926 = vmul.f32 %v3798, %v3863
  %v3927 = vmul.f32 %v3799, %v3863
  %v3928 = vmul.f32 %v3800, %v3863
  %v3929 = vmul.f32 %v3801, %v3867
  %v3930 = vmul.f32 %v3802, %v3867
  %v3931 = vmul.f32 %v3803, %v3867
  %v3932 = vmul.f32 %v3804, %v3867
  %v3933 = vmul.f32 %v3805, %v3871
  %v3934 = vmul.f32 %v3806, %v3871
  %v3935 = vmul.f32 %v3807, %v3871
  %v3936 = vmul.f32 %v3808, %v3871
  %v3937 = vadd.f32 %v3465, %v3873
  %v3938 = vadd.f32 %v3466, %v3874
  %v3939 = vadd.f32 %v3467, %v3875
  %v3940 = vadd.f32 %v3468, %v3876
  %v3941 = vadd.f32 %v3469, %v3877
  %v3942 = vadd.f32 %v3470, %v3878
  %v3943 = vadd.f32 %v3471, %v3879
  %v3944 = vadd.f32 %v3472, %v3880
  %v3945 = vadd.f32 %v3473, %v3881
  %v3946 = vadd.f32 %v3474, %v3882
  %v3947 = vadd.f32 %v3475, %v3883
  %v3948 = vadd.f32 %v3476, %v3884
  %v3949 = vadd.f32 %v3477, %v3885
  %v3950 = vadd.f32 %v3478, %v3886
  %v3951 = vadd.f32 %v3479, %v3887
  %v3952 = vadd.f32 %v3480, %v3888
  %v3953 = vadd.f32 %v3481, %v3889
  %v3954 = vadd.f32 %v3482, %v3890
  %v3955 = vadd.f32 %v3483, %v3891
  %v3956 = vadd.f32 %v3484, %v3892
  %v3957 = vadd.f32 %v3485, %v3893
  %v3958 = vadd.f32 %v3486, %v3894
  %v3959 = vadd.f32 %v3487, %v3895
  %v3960 = vadd.f32 %v3488, %v3896
  %v3961 = vadd.f32 %v3489, %v3897
  %v3962 = vadd.f32 %v3490, %v3898
  %v3963 = vadd.f32 %v3491, %v3899
  %v3964 = vadd.f32 %v3492, %v3900
  %v3965 = vadd.f32 %v3493, %v3901
  %v3966 = vadd.f32 %v3494, %v3902
  %v3967 = vadd.f32 %v3495, %v3903
  %v3968 = vadd.f32 %v3496, %v3904
  %v3969 = vadd.f32 %v3497, %v3905
  %v3970 = vadd.f32 %v3498, %v3906
  %v3971 = vadd.f32 %v3499, %v3907
  %v3972 = vadd.f32 %v3500, %v3908
  %v3973 = vadd.f32 %v3501, %v3909
  %v3974 = vadd.f32 %v3502, %v3910
  %v3975 = vadd.f32 %v3503, %v3911
  %v3976 = vadd.f32 %v3504, %v3912
  %v3977 = vadd.f32 %v3505, %v3913
  %v3978 = vadd.f32 %v3506, %v3914
  %v3979 = vadd.f32 %v3507, %v3915
  %v3980 = vadd.f32 %v3508, %v3916
  %v3981 = vadd.f32 %v3509, %v3917
  %v3982 = vadd.f32 %v3510, %v3918
  %v3983 = vadd.f32 %v3511, %v3919
  %v3984 = vadd.f32 %v3512, %v3920
  %v3985 = vadd.f32 %v3513, %v3921
  %v3986 = vadd.f32 %v3514, %v3922
  %v3987 = vadd.f32 %v3515, %v3923
  %v3988 = vadd.f32 %v3516, %v3924
  %v3989 = vadd.f32 %v3517, %v3925
  %v3990 = vadd.f32 %v3518, %v3926
  %v3991 = vadd.f32 %v3519, %v3927
  %v3992 = vadd.f32 %v3520, %v3928
  %v3993 = vadd.f32 %v3521, %v3929
  %v3994 = vadd.f32 %v3522, %v3930
  %v3995 = vadd.f32 %v3523, %v3931
  %v3996 = vadd.f32 %v3524, %v3932
  %v3997 = vadd.f32 %v3525, %v3933
  %v3998 = vadd.f32 %v3526, %v3934
  %v3999 = vadd.f32 %v3527, %v3935
  %v4000 = vadd.f32 %v3528, %v3936
  %4001 = vrot.lane.b32.xlu0 %v1416, 113
  %v4002 = vpop.permute.xlu0 %4001
  %4003 = vrot.lane.b32.xlu0 %v1420, 113
  %v4004 = vpop.permute.xlu0 %4003
  %4005 = vrot.lane.b32.xlu0 %v1424, 113
  %v4006 = vpop.permute.xlu0 %4005
  %4007 = vrot.lane.b32.xlu0 %v1428, 113
  %v4008 = vpop.permute.xlu0 %4007
  %4009 = vrot.lane.b32.xlu0 %v1432, 113
  %v4010 = vpop.permute.xlu0 %4009
  %4011 = vrot.lane.b32.xlu0 %v1436, 113
  %v4012 = vpop.permute.xlu0 %4011
  %4013 = vrot.lane.b32.xlu0 %v1440, 113
  %v4014 = vpop.permute.xlu0 %4013
  %4015 = vrot.lane.b32.xlu0 %v1444, 113
  %v4016 = vpop.permute.xlu0 %4015
  %4017 = vrot.lane.b32.xlu0 %v1448, 113
  %v4018 = vpop.permute.xlu0 %4017
  %4019 = vrot.lane.b32.xlu0 %v1452, 113
  %v4020 = vpop.permute.xlu0 %4019
  %4021 = vrot.lane.b32.xlu0 %v1456, 113
  %v4022 = vpop.permute.xlu0 %4021
  %4023 = vrot.lane.b32.xlu0 %v1460, 113
  %v4024 = vpop.permute.xlu0 %4023
  %4025 = vrot.lane.b32.xlu0 %v1464, 113
  %v4026 = vpop.permute.xlu0 %4025
  %4027 = vrot.lane.b32.xlu0 %v1468, 113
  %v4028 = vpop.permute.xlu0 %4027
  %4029 = vrot.lane.b32.xlu0 %v1472, 113
  %v4030 = vpop.permute.xlu0 %4029
  %4031 = vrot.lane.b32.xlu0 %v1476, 113
  %v4032 = vpop.permute.xlu0 %4031
  %4033 = vrot.lane.b32.xlu0 %v1417, 113
  %v4034 = vpop.permute.xlu0 %4033
  %4035 = vrot.lane.b32.xlu0 %v1421, 113
  %v4036 = vpop.permute.xlu0 %4035
  %4037 = vrot.lane.b32.xlu0 %v1425, 113
  %v4038 = vpop.permute.xlu0 %4037
  %4039 = vrot.lane.b32.xlu0 %v1429, 113
  %v4040 = vpop.permute.xlu0 %4039
  %4041 = vrot.lane.b32.xlu0 %v1433, 113
  %v4042 = vpop.permute.xlu0 %4041
  %4043 = vrot.lane.b32.xlu0 %v1437, 113
  %v4044 = vpop.permute.xlu0 %4043
  %4045 = vrot.lane.b32.xlu0 %v1441, 113
  %v4046 = vpop.permute.xlu0 %4045
  %4047 = vrot.lane.b32.xlu0 %v1445, 113
  %v4048 = vpop.permute.xlu0 %4047
  %4049 = vrot.lane.b32.xlu0 %v1449, 113
  %v4050 = vpop.permute.xlu0 %4049
  %4051 = vrot.lane.b32.xlu0 %v1453, 113
  %v4052 = vpop.permute.xlu0 %4051
  %4053 = vrot.lane.b32.xlu0 %v1457, 113
  %v4054 = vpop.permute.xlu0 %4053
  %4055 = vrot.lane.b32.xlu0 %v1461, 113
  %v4056 = vpop.permute.xlu0 %4055
  %4057 = vrot.lane.b32.xlu0 %v1465, 113
  %v4058 = vpop.permute.xlu0 %4057
  %4059 = vrot.lane.b32.xlu0 %v1469, 113
  %v4060 = vpop.permute.xlu0 %4059
  %4061 = vrot.lane.b32.xlu0 %v1473, 113
  %v4062 = vpop.permute.xlu0 %4061
  %4063 = vrot.lane.b32.xlu0 %v1477, 113
  %v4064 = vpop.permute.xlu0 %4063
  %4065 = vrot.lane.b32.xlu0 %v1418, 113
  %v4066 = vpop.permute.xlu0 %4065
  %4067 = vrot.lane.b32.xlu0 %v1422, 113
  %v4068 = vpop.permute.xlu0 %4067
  %4069 = vrot.lane.b32.xlu0 %v1426, 113
  %v4070 = vpop.permute.xlu0 %4069
  %4071 = vrot.lane.b32.xlu0 %v1430, 113
  %v4072 = vpop.permute.xlu0 %4071
  %4073 = vrot.lane.b32.xlu0 %v1434, 113
  %v4074 = vpop.permute.xlu0 %4073
  %4075 = vrot.lane.b32.xlu0 %v1438, 113
  %v4076 = vpop.permute.xlu0 %4075
  %4077 = vrot.lane.b32.xlu0 %v1442, 113
  %v4078 = vpop.permute.xlu0 %4077
  %4079 = vrot.lane.b32.xlu0 %v1446, 113
  %v4080 = vpop.permute.xlu0 %4079
  %4081 = vrot.lane.b32.xlu0 %v1450, 113
  %v4082 = vpop.permute.xlu0 %4081
  %4083 = vrot.lane.b32.xlu0 %v1454, 113
  %v4084 = vpop.permute.xlu0 %4083
  %4085 = vrot.lane.b32.xlu0 %v1458, 113
  %v4086 = vpop.permute.xlu0 %4085
  %4087 = vrot.lane.b32.xlu0 %v1462, 113
  %v4088 = vpop.permute.xlu0 %4087
  %4089 = vrot.lane.b32.xlu0 %v1466, 113
  %v4090 = vpop.permute.xlu0 %4089
  %4091 = vrot.lane.b32.xlu0 %v1470, 113
  %v4092 = vpop.permute.xlu0 %4091
  %4093 = vrot.lane.b32.xlu0 %v1474, 113
  %v4094 = vpop.permute.xlu0 %4093
  %4095 = vrot.lane.b32.xlu0 %v1478, 113
  %v4096 = vpop.permute.xlu0 %4095
  %4097 = vrot.lane.b32.xlu0 %v1419, 113
  %v4098 = vpop.permute.xlu0 %4097
  %4099 = vrot.lane.b32.xlu0 %v1423, 113
  %v4100 = vpop.permute.xlu0 %4099
  %4101 = vrot.lane.b32.xlu0 %v1427, 113
  %v4102 = vpop.permute.xlu0 %4101
  %4103 = vrot.lane.b32.xlu0 %v1431, 113
  %v4104 = vpop.permute.xlu0 %4103
  %4105 = vrot.lane.b32.xlu0 %v1435, 113
  %v4106 = vpop.permute.xlu0 %4105
  %4107 = vrot.lane.b32.xlu0 %v1439, 113
  %v4108 = vpop.permute.xlu0 %4107
  %4109 = vrot.lane.b32.xlu0 %v1443, 113
  %v4110 = vpop.permute.xlu0 %4109
  %4111 = vrot.lane.b32.xlu0 %v1447, 113
  %v4112 = vpop.permute.xlu0 %4111
  %4113 = vrot.lane.b32.xlu0 %v1451, 113
  %v4114 = vpop.permute.xlu0 %4113
  %4115 = vrot.lane.b32.xlu0 %v1455, 113
  %v4116 = vpop.permute.xlu0 %4115
  %4117 = vrot.lane.b32.xlu0 %v1459, 113
  %v4118 = vpop.permute.xlu0 %4117
  %4119 = vrot.lane.b32.xlu0 %v1463, 113
  %v4120 = vpop.permute.xlu0 %4119
  %4121 = vrot.lane.b32.xlu0 %v1467, 113
  %v4122 = vpop.permute.xlu0 %4121
  %4123 = vrot.lane.b32.xlu0 %v1471, 113
  %v4124 = vpop.permute.xlu0 %4123
  %4125 = vrot.lane.b32.xlu0 %v1475, 113
  %v4126 = vpop.permute.xlu0 %4125
  %4127 = vrot.lane.b32.xlu0 %v1479, 113
  %v4128 = vpop.permute.xlu0 %4127
  %vm4129 = vcmp.lt.s32.totalorder %v1769, 113
  %v4130 = vsel %vm4129, %v4066, %v4098
  %v4131 = vsel %vm4129, %v4068, %v4100
  %v4132 = vsel %vm4129, %v4070, %v4102
  %v4133 = vsel %vm4129, %v4072, %v4104
  %v4134 = vsel %vm4129, %v4074, %v4106
  %v4135 = vsel %vm4129, %v4076, %v4108
  %v4136 = vsel %vm4129, %v4078, %v4110
  %v4137 = vsel %vm4129, %v4080, %v4112
  %v4138 = vsel %vm4129, %v4082, %v4114
  %v4139 = vsel %vm4129, %v4084, %v4116
  %v4140 = vsel %vm4129, %v4086, %v4118
  %v4141 = vsel %vm4129, %v4088, %v4120
  %v4142 = vsel %vm4129, %v4090, %v4122
  %v4143 = vsel %vm4129, %v4092, %v4124
  %v4144 = vsel %vm4129, %v4094, %v4126
  %v4145 = vsel %vm4129, %v4096, %v4128
  %v4146 = vsel %vm4129, %v4034, %v4066
  %v4147 = vsel %vm4129, %v4036, %v4068
  %v4148 = vsel %vm4129, %v4038, %v4070
  %v4149 = vsel %vm4129, %v4040, %v4072
  %v4150 = vsel %vm4129, %v4042, %v4074
  %v4151 = vsel %vm4129, %v4044, %v4076
  %v4152 = vsel %vm4129, %v4046, %v4078
  %v4153 = vsel %vm4129, %v4048, %v4080
  %v4154 = vsel %vm4129, %v4050, %v4082
  %v4155 = vsel %vm4129, %v4052, %v4084
  %v4156 = vsel %vm4129, %v4054, %v4086
  %v4157 = vsel %vm4129, %v4056, %v4088
  %v4158 = vsel %vm4129, %v4058, %v4090
  %v4159 = vsel %vm4129, %v4060, %v4092
  %v4160 = vsel %vm4129, %v4062, %v4094
  %v4161 = vsel %vm4129, %v4064, %v4096
  %v4162 = vsel %vm4129, %v4002, %v4034
  %v4163 = vsel %vm4129, %v4004, %v4036
  %v4164 = vsel %vm4129, %v4006, %v4038
  %v4165 = vsel %vm4129, %v4008, %v4040
  %v4166 = vsel %vm4129, %v4010, %v4042
  %v4167 = vsel %vm4129, %v4012, %v4044
  %v4168 = vsel %vm4129, %v4014, %v4046
  %v4169 = vsel %vm4129, %v4016, %v4048
  %v4170 = vsel %vm4129, %v4018, %v4050
  %v4171 = vsel %vm4129, %v4020, %v4052
  %v4172 = vsel %vm4129, %v4022, %v4054
  %v4173 = vsel %vm4129, %v4024, %v4056
  %v4174 = vsel %vm4129, %v4026, %v4058
  %v4175 = vsel %vm4129, %v4028, %v4060
  %v4176 = vsel %vm4129, %v4030, %v4062
  %v4177 = vsel %vm4129, %v4032, %v4064
  %v4178 = vsel %vm4129, %v4098, %v4002
  %v4179 = vsel %vm4129, %v4100, %v4004
  %v4180 = vsel %vm4129, %v4102, %v4006
  %v4181 = vsel %vm4129, %v4104, %v4008
  %v4182 = vsel %vm4129, %v4106, %v4010
  %v4183 = vsel %vm4129, %v4108, %v4012
  %v4184 = vsel %vm4129, %v4110, %v4014
  %v4185 = vsel %vm4129, %v4112, %v4016
  %v4186 = vsel %vm4129, %v4114, %v4018
  %v4187 = vsel %vm4129, %v4116, %v4020
  %v4188 = vsel %vm4129, %v4118, %v4022
  %v4189 = vsel %vm4129, %v4120, %v4024
  %v4190 = vsel %vm4129, %v4122, %v4026
  %v4191 = vsel %vm4129, %v4124, %v4028
  %v4192 = vsel %vm4129, %v4126, %v4030
  %v4193 = vsel %vm4129, %v4128, %v4032
  %s4194 = scalar_lea.vmem %s3, 5
  %v4195 = vld [vmem:[%s4194] ss:$8 sm:$0xf]
  %v4197 = vlaneseq
  %v4198 = vshrl.u32 %v4197, 7
  %v4199 = vsub.s32 0, %v4198
  %v4200 = vrot.slane %v4195, %v4199
  %v4201 = vlaneseq
  %v4202 = vshrl.u32 %v4201, 7
  %v4203 = vsub.s32 1, %v4202
  %v4204 = vrot.slane %v4195, %v4203
  %v4205 = vlaneseq
  %v4206 = vshrl.u32 %v4205, 7
  %v4207 = vsub.s32 2, %v4206
  %v4208 = vrot.slane %v4195, %v4207
  %v4209 = vlaneseq
  %v4210 = vshrl.u32 %v4209, 7
  %v4211 = vsub.s32 3, %v4210
  %v4212 = vrot.slane %v4195, %v4211
  %v4217 = vmul.f32 %v4162, %v4200
  %v4218 = vmul.f32 %v4146, %v4204
  %v4219 = vmul.f32 %v4130, %v4208
  %v4220 = vmul.f32 %v4178, %v4212
  %v4221 = vmul.f32 %v4163, %v4200
  %v4222 = vmul.f32 %v4147, %v4204
  %v4223 = vmul.f32 %v4131, %v4208
  %v4224 = vmul.f32 %v4179, %v4212
  %v4225 = vmul.f32 %v4164, %v4200
  %v4226 = vmul.f32 %v4148, %v4204
  %v4227 = vmul.f32 %v4132, %v4208
  %v4228 = vmul.f32 %v4180, %v4212
  %v4229 = vmul.f32 %v4165, %v4200
  %v4230 = vmul.f32 %v4149, %v4204
  %v4231 = vmul.f32 %v4133, %v4208
  %v4232 = vmul.f32 %v4181, %v4212
  %v4233 = vmul.f32 %v4166, %v4200
  %v4234 = vmul.f32 %v4150, %v4204
  %v4235 = vmul.f32 %v4134, %v4208
  %v4236 = vmul.f32 %v4182, %v4212
  %v4237 = vmul.f32 %v4167, %v4200
  %v4238 = vmul.f32 %v4151, %v4204
  %v4239 = vmul.f32 %v4135, %v4208
  %v4240 = vmul.f32 %v4183, %v4212
  %v4241 = vmul.f32 %v4168, %v4200
  %v4242 = vmul.f32 %v4152, %v4204
  %v4243 = vmul.f32 %v4136, %v4208
  %v4244 = vmul.f32 %v4184, %v4212
  %v4245 = vmul.f32 %v4169, %v4200
  %v4246 = vmul.f32 %v4153, %v4204
  %v4247 = vmul.f32 %v4137, %v4208
  %v4248 = vmul.f32 %v4185, %v4212
  %v4249 = vmul.f32 %v4170, %v4200
  %v4250 = vmul.f32 %v4154, %v4204
  %v4251 = vmul.f32 %v4138, %v4208
  %v4252 = vmul.f32 %v4186, %v4212
  %v4253 = vmul.f32 %v4171, %v4200
  %v4254 = vmul.f32 %v4155, %v4204
  %v4255 = vmul.f32 %v4139, %v4208
  %v4256 = vmul.f32 %v4187, %v4212
  %v4257 = vmul.f32 %v4172, %v4200
  %v4258 = vmul.f32 %v4156, %v4204
  %v4259 = vmul.f32 %v4140, %v4208
  %v4260 = vmul.f32 %v4188, %v4212
  %v4261 = vmul.f32 %v4173, %v4200
  %v4262 = vmul.f32 %v4157, %v4204
  %v4263 = vmul.f32 %v4141, %v4208
  %v4264 = vmul.f32 %v4189, %v4212
  %v4265 = vmul.f32 %v4174, %v4200
  %v4266 = vmul.f32 %v4158, %v4204
  %v4267 = vmul.f32 %v4142, %v4208
  %v4268 = vmul.f32 %v4190, %v4212
  %v4269 = vmul.f32 %v4175, %v4200
  %v4270 = vmul.f32 %v4159, %v4204
  %v4271 = vmul.f32 %v4143, %v4208
  %v4272 = vmul.f32 %v4191, %v4212
  %v4273 = vmul.f32 %v4176, %v4200
  %v4274 = vmul.f32 %v4160, %v4204
  %v4275 = vmul.f32 %v4144, %v4208
  %v4276 = vmul.f32 %v4192, %v4212
  %v4277 = vmul.f32 %v4177, %v4200
  %v4278 = vmul.f32 %v4161, %v4204
  %v4279 = vmul.f32 %v4145, %v4208
  %v4280 = vmul.f32 %v4193, %v4212
  %4281 = vset.pattern.permute.xlu0 6
  %4282 = vperm.xlu0 %4281, %v1480
  %v4283 = vpop.permute.xlu0 %4282
  %4285 = vset.pattern.permute.xlu0 6
  %4286 = vperm.xlu0 %4285, %v1481
  %v4287 = vpop.permute.xlu0 %4286
  %4289 = vset.pattern.permute.xlu0 6
  %4290 = vperm.xlu0 %4289, %v1482
  %v4291 = vpop.permute.xlu0 %4290
  %4293 = vset.pattern.permute.xlu0 6
  %4294 = vperm.xlu0 %4293, %v1483
  %v4295 = vpop.permute.xlu0 %4294
  %4297 = vset.pattern.permute.xlu0 6
  %4298 = vperm.xlu0 %4297, %v1484
  %v4299 = vpop.permute.xlu0 %4298
  %4301 = vset.pattern.permute.xlu0 6
  %4302 = vperm.xlu0 %4301, %v1485
  %v4303 = vpop.permute.xlu0 %4302
  %4305 = vset.pattern.permute.xlu0 6
  %4306 = vperm.xlu0 %4305, %v1486
  %v4307 = vpop.permute.xlu0 %4306
  %4309 = vset.pattern.permute.xlu0 6
  %4310 = vperm.xlu0 %4309, %v1487
  %v4311 = vpop.permute.xlu0 %4310
  %4313 = vset.pattern.permute.xlu0 6
  %4314 = vperm.xlu0 %4313, %v1488
  %v4315 = vpop.permute.xlu0 %4314
  %4317 = vset.pattern.permute.xlu0 6
  %4318 = vperm.xlu0 %4317, %v1489
  %v4319 = vpop.permute.xlu0 %4318
  %4321 = vset.pattern.permute.xlu0 6
  %4322 = vperm.xlu0 %4321, %v1490
  %v4323 = vpop.permute.xlu0 %4322
  %4325 = vset.pattern.permute.xlu0 6
  %4326 = vperm.xlu0 %4325, %v1491
  %v4327 = vpop.permute.xlu0 %4326
  %4329 = vset.pattern.permute.xlu0 6
  %4330 = vperm.xlu0 %4329, %v1492
  %v4331 = vpop.permute.xlu0 %4330
  %4333 = vset.pattern.permute.xlu0 6
  %4334 = vperm.xlu0 %4333, %v1493
  %v4335 = vpop.permute.xlu0 %4334
  %4337 = vset.pattern.permute.xlu0 6
  %4338 = vperm.xlu0 %4337, %v1494
  %v4339 = vpop.permute.xlu0 %4338
  %4341 = vset.pattern.permute.xlu0 6
  %4342 = vperm.xlu0 %4341, %v1495
  %v4343 = vpop.permute.xlu0 %4342
  %v4345 = vmul.f32 %v4217, %v4283
  %v4346 = vmul.f32 %v4218, %v4283
  %v4347 = vmul.f32 %v4219, %v4283
  %v4348 = vmul.f32 %v4220, %v4283
  %v4349 = vmul.f32 %v4221, %v4287
  %v4350 = vmul.f32 %v4222, %v4287
  %v4351 = vmul.f32 %v4223, %v4287
  %v4352 = vmul.f32 %v4224, %v4287
  %v4353 = vmul.f32 %v4225, %v4291
  %v4354 = vmul.f32 %v4226, %v4291
  %v4355 = vmul.f32 %v4227, %v4291
  %v4356 = vmul.f32 %v4228, %v4291
  %v4357 = vmul.f32 %v4229, %v4295
  %v4358 = vmul.f32 %v4230, %v4295
  %v4359 = vmul.f32 %v4231, %v4295
  %v4360 = vmul.f32 %v4232, %v4295
  %v4361 = vmul.f32 %v4233, %v4299
  %v4362 = vmul.f32 %v4234, %v4299
  %v4363 = vmul.f32 %v4235, %v4299
  %v4364 = vmul.f32 %v4236, %v4299
  %v4365 = vmul.f32 %v4237, %v4303
  %v4366 = vmul.f32 %v4238, %v4303
  %v4367 = vmul.f32 %v4239, %v4303
  %v4368 = vmul.f32 %v4240, %v4303
  %v4369 = vmul.f32 %v4241, %v4307
  %v4370 = vmul.f32 %v4242, %v4307
  %v4371 = vmul.f32 %v4243, %v4307
  %v4372 = vmul.f32 %v4244, %v4307
  %v4373 = vmul.f32 %v4245, %v4311
  %v4374 = vmul.f32 %v4246, %v4311
  %v4375 = vmul.f32 %v4247, %v4311
  %v4376 = vmul.f32 %v4248, %v4311
  %v4377 = vmul.f32 %v4249, %v4315
  %v4378 = vmul.f32 %v4250, %v4315
  %v4379 = vmul.f32 %v4251, %v4315
  %v4380 = vmul.f32 %v4252, %v4315
  %v4381 = vmul.f32 %v4253, %v4319
  %v4382 = vmul.f32 %v4254, %v4319
  %v4383 = vmul.f32 %v4255, %v4319
  %v4384 = vmul.f32 %v4256, %v4319
  %v4385 = vmul.f32 %v4257, %v4323
  %v4386 = vmul.f32 %v4258, %v4323
  %v4387 = vmul.f32 %v4259, %v4323
  %v4388 = vmul.f32 %v4260, %v4323
  %v4389 = vmul.f32 %v4261, %v4327
  %v4390 = vmul.f32 %v4262, %v4327
  %v4391 = vmul.f32 %v4263, %v4327
  %v4392 = vmul.f32 %v4264, %v4327
  %v4393 = vmul.f32 %v4265, %v4331
  %v4394 = vmul.f32 %v4266, %v4331
  %v4395 = vmul.f32 %v4267, %v4331
  %v4396 = vmul.f32 %v4268, %v4331
  %v4397 = vmul.f32 %v4269, %v4335
  %v4398 = vmul.f32 %v4270, %v4335
  %v4399 = vmul.f32 %v4271, %v4335
  %v4400 = vmul.f32 %v4272, %v4335
  %v4401 = vmul.f32 %v4273, %v4339
  %v4402 = vmul.f32 %v4274, %v4339
  %v4403 = vmul.f32 %v4275, %v4339
  %v4404 = vmul.f32 %v4276, %v4339
  %v4405 = vmul.f32 %v4277, %v4343
  %v4406 = vmul.f32 %v4278, %v4343
  %v4407 = vmul.f32 %v4279, %v4343
  %v4408 = vmul.f32 %v4280, %v4343
  %v4409 = vadd.f32 %v3937, %v4345
  %v4410 = vadd.f32 %v3938, %v4346
  %v4411 = vadd.f32 %v3939, %v4347
  %v4412 = vadd.f32 %v3940, %v4348
  %v4413 = vadd.f32 %v3941, %v4349
  %v4414 = vadd.f32 %v3942, %v4350
  %v4415 = vadd.f32 %v3943, %v4351
  %v4416 = vadd.f32 %v3944, %v4352
  %v4417 = vadd.f32 %v3945, %v4353
  %v4418 = vadd.f32 %v3946, %v4354
  %v4419 = vadd.f32 %v3947, %v4355
  %v4420 = vadd.f32 %v3948, %v4356
  %v4421 = vadd.f32 %v3949, %v4357
  %v4422 = vadd.f32 %v3950, %v4358
  %v4423 = vadd.f32 %v3951, %v4359
  %v4424 = vadd.f32 %v3952, %v4360
  %v4425 = vadd.f32 %v3953, %v4361
  %v4426 = vadd.f32 %v3954, %v4362
  %v4427 = vadd.f32 %v3955, %v4363
  %v4428 = vadd.f32 %v3956, %v4364
  %v4429 = vadd.f32 %v3957, %v4365
  %v4430 = vadd.f32 %v3958, %v4366
  %v4431 = vadd.f32 %v3959, %v4367
  %v4432 = vadd.f32 %v3960, %v4368
  %v4433 = vadd.f32 %v3961, %v4369
  %v4434 = vadd.f32 %v3962, %v4370
  %v4435 = vadd.f32 %v3963, %v4371
  %v4436 = vadd.f32 %v3964, %v4372
  %v4437 = vadd.f32 %v3965, %v4373
  %v4438 = vadd.f32 %v3966, %v4374
  %v4439 = vadd.f32 %v3967, %v4375
  %v4440 = vadd.f32 %v3968, %v4376
  %v4441 = vadd.f32 %v3969, %v4377
  %v4442 = vadd.f32 %v3970, %v4378
  %v4443 = vadd.f32 %v3971, %v4379
  %v4444 = vadd.f32 %v3972, %v4380
  %v4445 = vadd.f32 %v3973, %v4381
  %v4446 = vadd.f32 %v3974, %v4382
  %v4447 = vadd.f32 %v3975, %v4383
  %v4448 = vadd.f32 %v3976, %v4384
  %v4449 = vadd.f32 %v3977, %v4385
  %v4450 = vadd.f32 %v3978, %v4386
  %v4451 = vadd.f32 %v3979, %v4387
  %v4452 = vadd.f32 %v3980, %v4388
  %v4453 = vadd.f32 %v3981, %v4389
  %v4454 = vadd.f32 %v3982, %v4390
  %v4455 = vadd.f32 %v3983, %v4391
  %v4456 = vadd.f32 %v3984, %v4392
  %v4457 = vadd.f32 %v3985, %v4393
  %v4458 = vadd.f32 %v3986, %v4394
  %v4459 = vadd.f32 %v3987, %v4395
  %v4460 = vadd.f32 %v3988, %v4396
  %v4461 = vadd.f32 %v3989, %v4397
  %v4462 = vadd.f32 %v3990, %v4398
  %v4463 = vadd.f32 %v3991, %v4399
  %v4464 = vadd.f32 %v3992, %v4400
  %v4465 = vadd.f32 %v3993, %v4401
  %v4466 = vadd.f32 %v3994, %v4402
  %v4467 = vadd.f32 %v3995, %v4403
  %v4468 = vadd.f32 %v3996, %v4404
  %v4469 = vadd.f32 %v3997, %v4405
  %v4470 = vadd.f32 %v3998, %v4406
  %v4471 = vadd.f32 %v3999, %v4407
  %v4472 = vadd.f32 %v4000, %v4408
  %4473 = vrot.lane.b32.xlu0 %v1416, 112
  %v4474 = vpop.permute.xlu0 %4473
  %4475 = vrot.lane.b32.xlu0 %v1420, 112
  %v4476 = vpop.permute.xlu0 %4475
  %4477 = vrot.lane.b32.xlu0 %v1424, 112
  %v4478 = vpop.permute.xlu0 %4477
  %4479 = vrot.lane.b32.xlu0 %v1428, 112
  %v4480 = vpop.permute.xlu0 %4479
  %4481 = vrot.lane.b32.xlu0 %v1432, 112
  %v4482 = vpop.permute.xlu0 %4481
  %4483 = vrot.lane.b32.xlu0 %v1436, 112
  %v4484 = vpop.permute.xlu0 %4483
  %4485 = vrot.lane.b32.xlu0 %v1440, 112
  %v4486 = vpop.permute.xlu0 %4485
  %4487 = vrot.lane.b32.xlu0 %v1444, 112
  %v4488 = vpop.permute.xlu0 %4487
  %4489 = vrot.lane.b32.xlu0 %v1448, 112
  %v4490 = vpop.permute.xlu0 %4489
  %4491 = vrot.lane.b32.xlu0 %v1452, 112
  %v4492 = vpop.permute.xlu0 %4491
  %4493 = vrot.lane.b32.xlu0 %v1456, 112
  %v4494 = vpop.permute.xlu0 %4493
  %4495 = vrot.lane.b32.xlu0 %v1460, 112
  %v4496 = vpop.permute.xlu0 %4495
  %4497 = vrot.lane.b32.xlu0 %v1464, 112
  %v4498 = vpop.permute.xlu0 %4497
  %4499 = vrot.lane.b32.xlu0 %v1468, 112
  %v4500 = vpop.permute.xlu0 %4499
  %4501 = vrot.lane.b32.xlu0 %v1472, 112
  %v4502 = vpop.permute.xlu0 %4501
  %4503 = vrot.lane.b32.xlu0 %v1476, 112
  %v4504 = vpop.permute.xlu0 %4503
  %4505 = vrot.lane.b32.xlu0 %v1417, 112
  %v4506 = vpop.permute.xlu0 %4505
  %4507 = vrot.lane.b32.xlu0 %v1421, 112
  %v4508 = vpop.permute.xlu0 %4507
  %4509 = vrot.lane.b32.xlu0 %v1425, 112
  %v4510 = vpop.permute.xlu0 %4509
  %4511 = vrot.lane.b32.xlu0 %v1429, 112
  %v4512 = vpop.permute.xlu0 %4511
  %4513 = vrot.lane.b32.xlu0 %v1433, 112
  %v4514 = vpop.permute.xlu0 %4513
  %4515 = vrot.lane.b32.xlu0 %v1437, 112
  %v4516 = vpop.permute.xlu0 %4515
  %4517 = vrot.lane.b32.xlu0 %v1441, 112
  %v4518 = vpop.permute.xlu0 %4517
  %4519 = vrot.lane.b32.xlu0 %v1445, 112
  %v4520 = vpop.permute.xlu0 %4519
  %4521 = vrot.lane.b32.xlu0 %v1449, 112
  %v4522 = vpop.permute.xlu0 %4521
  %4523 = vrot.lane.b32.xlu0 %v1453, 112
  %v4524 = vpop.permute.xlu0 %4523
  %4525 = vrot.lane.b32.xlu0 %v1457, 112
  %v4526 = vpop.permute.xlu0 %4525
  %4527 = vrot.lane.b32.xlu0 %v1461, 112
  %v4528 = vpop.permute.xlu0 %4527
  %4529 = vrot.lane.b32.xlu0 %v1465, 112
  %v4530 = vpop.permute.xlu0 %4529
  %4531 = vrot.lane.b32.xlu0 %v1469, 112
  %v4532 = vpop.permute.xlu0 %4531
  %4533 = vrot.lane.b32.xlu0 %v1473, 112
  %v4534 = vpop.permute.xlu0 %4533
  %4535 = vrot.lane.b32.xlu0 %v1477, 112
  %v4536 = vpop.permute.xlu0 %4535
  %4537 = vrot.lane.b32.xlu0 %v1418, 112
  %v4538 = vpop.permute.xlu0 %4537
  %4539 = vrot.lane.b32.xlu0 %v1422, 112
  %v4540 = vpop.permute.xlu0 %4539
  %4541 = vrot.lane.b32.xlu0 %v1426, 112
  %v4542 = vpop.permute.xlu0 %4541
  %4543 = vrot.lane.b32.xlu0 %v1430, 112
  %v4544 = vpop.permute.xlu0 %4543
  %4545 = vrot.lane.b32.xlu0 %v1434, 112
  %v4546 = vpop.permute.xlu0 %4545
  %4547 = vrot.lane.b32.xlu0 %v1438, 112
  %v4548 = vpop.permute.xlu0 %4547
  %4549 = vrot.lane.b32.xlu0 %v1442, 112
  %v4550 = vpop.permute.xlu0 %4549
  %4551 = vrot.lane.b32.xlu0 %v1446, 112
  %v4552 = vpop.permute.xlu0 %4551
  %4553 = vrot.lane.b32.xlu0 %v1450, 112
  %v4554 = vpop.permute.xlu0 %4553
  %4555 = vrot.lane.b32.xlu0 %v1454, 112
  %v4556 = vpop.permute.xlu0 %4555
  %4557 = vrot.lane.b32.xlu0 %v1458, 112
  %v4558 = vpop.permute.xlu0 %4557
  %4559 = vrot.lane.b32.xlu0 %v1462, 112
  %v4560 = vpop.permute.xlu0 %4559
  %4561 = vrot.lane.b32.xlu0 %v1466, 112
  %v4562 = vpop.permute.xlu0 %4561
  %4563 = vrot.lane.b32.xlu0 %v1470, 112
  %v4564 = vpop.permute.xlu0 %4563
  %4565 = vrot.lane.b32.xlu0 %v1474, 112
  %v4566 = vpop.permute.xlu0 %4565
  %4567 = vrot.lane.b32.xlu0 %v1478, 112
  %v4568 = vpop.permute.xlu0 %4567
  %4569 = vrot.lane.b32.xlu0 %v1419, 112
  %v4570 = vpop.permute.xlu0 %4569
  %4571 = vrot.lane.b32.xlu0 %v1423, 112
  %v4572 = vpop.permute.xlu0 %4571
  %4573 = vrot.lane.b32.xlu0 %v1427, 112
  %v4574 = vpop.permute.xlu0 %4573
  %4575 = vrot.lane.b32.xlu0 %v1431, 112
  %v4576 = vpop.permute.xlu0 %4575
  %4577 = vrot.lane.b32.xlu0 %v1435, 112
  %v4578 = vpop.permute.xlu0 %4577
  %4579 = vrot.lane.b32.xlu0 %v1439, 112
  %v4580 = vpop.permute.xlu0 %4579
  %4581 = vrot.lane.b32.xlu0 %v1443, 112
  %v4582 = vpop.permute.xlu0 %4581
  %4583 = vrot.lane.b32.xlu0 %v1447, 112
  %v4584 = vpop.permute.xlu0 %4583
  %4585 = vrot.lane.b32.xlu0 %v1451, 112
  %v4586 = vpop.permute.xlu0 %4585
  %4587 = vrot.lane.b32.xlu0 %v1455, 112
  %v4588 = vpop.permute.xlu0 %4587
  %4589 = vrot.lane.b32.xlu0 %v1459, 112
  %v4590 = vpop.permute.xlu0 %4589
  %4591 = vrot.lane.b32.xlu0 %v1463, 112
  %v4592 = vpop.permute.xlu0 %4591
  %4593 = vrot.lane.b32.xlu0 %v1467, 112
  %v4594 = vpop.permute.xlu0 %4593
  %4595 = vrot.lane.b32.xlu0 %v1471, 112
  %v4596 = vpop.permute.xlu0 %4595
  %4597 = vrot.lane.b32.xlu0 %v1475, 112
  %v4598 = vpop.permute.xlu0 %4597
  %4599 = vrot.lane.b32.xlu0 %v1479, 112
  %v4600 = vpop.permute.xlu0 %4599
  %vm4601 = vcmp.lt.s32.totalorder %v1769, 112
  %v4602 = vsel %vm4601, %v4538, %v4570
  %v4603 = vsel %vm4601, %v4540, %v4572
  %v4604 = vsel %vm4601, %v4542, %v4574
  %v4605 = vsel %vm4601, %v4544, %v4576
  %v4606 = vsel %vm4601, %v4546, %v4578
  %v4607 = vsel %vm4601, %v4548, %v4580
  %v4608 = vsel %vm4601, %v4550, %v4582
  %v4609 = vsel %vm4601, %v4552, %v4584
  %v4610 = vsel %vm4601, %v4554, %v4586
  %v4611 = vsel %vm4601, %v4556, %v4588
  %v4612 = vsel %vm4601, %v4558, %v4590
  %v4613 = vsel %vm4601, %v4560, %v4592
  %v4614 = vsel %vm4601, %v4562, %v4594
  %v4615 = vsel %vm4601, %v4564, %v4596
  %v4616 = vsel %vm4601, %v4566, %v4598
  %v4617 = vsel %vm4601, %v4568, %v4600
  %v4618 = vsel %vm4601, %v4506, %v4538
  %v4619 = vsel %vm4601, %v4508, %v4540
  %v4620 = vsel %vm4601, %v4510, %v4542
  %v4621 = vsel %vm4601, %v4512, %v4544
  %v4622 = vsel %vm4601, %v4514, %v4546
  %v4623 = vsel %vm4601, %v4516, %v4548
  %v4624 = vsel %vm4601, %v4518, %v4550
  %v4625 = vsel %vm4601, %v4520, %v4552
  %v4626 = vsel %vm4601, %v4522, %v4554
  %v4627 = vsel %vm4601, %v4524, %v4556
  %v4628 = vsel %vm4601, %v4526, %v4558
  %v4629 = vsel %vm4601, %v4528, %v4560
  %v4630 = vsel %vm4601, %v4530, %v4562
  %v4631 = vsel %vm4601, %v4532, %v4564
  %v4632 = vsel %vm4601, %v4534, %v4566
  %v4633 = vsel %vm4601, %v4536, %v4568
  %v4634 = vsel %vm4601, %v4474, %v4506
  %v4635 = vsel %vm4601, %v4476, %v4508
  %v4636 = vsel %vm4601, %v4478, %v4510
  %v4637 = vsel %vm4601, %v4480, %v4512
  %v4638 = vsel %vm4601, %v4482, %v4514
  %v4639 = vsel %vm4601, %v4484, %v4516
  %v4640 = vsel %vm4601, %v4486, %v4518
  %v4641 = vsel %vm4601, %v4488, %v4520
  %v4642 = vsel %vm4601, %v4490, %v4522
  %v4643 = vsel %vm4601, %v4492, %v4524
  %v4644 = vsel %vm4601, %v4494, %v4526
  %v4645 = vsel %vm4601, %v4496, %v4528
  %v4646 = vsel %vm4601, %v4498, %v4530
  %v4647 = vsel %vm4601, %v4500, %v4532
  %v4648 = vsel %vm4601, %v4502, %v4534
  %v4649 = vsel %vm4601, %v4504, %v4536
  %v4650 = vsel %vm4601, %v4570, %v4474
  %v4651 = vsel %vm4601, %v4572, %v4476
  %v4652 = vsel %vm4601, %v4574, %v4478
  %v4653 = vsel %vm4601, %v4576, %v4480
  %v4654 = vsel %vm4601, %v4578, %v4482
  %v4655 = vsel %vm4601, %v4580, %v4484
  %v4656 = vsel %vm4601, %v4582, %v4486
  %v4657 = vsel %vm4601, %v4584, %v4488
  %v4658 = vsel %vm4601, %v4586, %v4490
  %v4659 = vsel %vm4601, %v4588, %v4492
  %v4660 = vsel %vm4601, %v4590, %v4494
  %v4661 = vsel %vm4601, %v4592, %v4496
  %v4662 = vsel %vm4601, %v4594, %v4498
  %v4663 = vsel %vm4601, %v4596, %v4500
  %v4664 = vsel %vm4601, %v4598, %v4502
  %v4665 = vsel %vm4601, %v4600, %v4504
  %s4666 = scalar_lea.vmem %s3, 6
  %v4667 = vld [vmem:[%s4666] ss:$8 sm:$0xf]
  %v4669 = vlaneseq
  %v4670 = vshrl.u32 %v4669, 7
  %v4671 = vsub.s32 0, %v4670
  %v4672 = vrot.slane %v4667, %v4671
  %v4673 = vlaneseq
  %v4674 = vshrl.u32 %v4673, 7
  %v4675 = vsub.s32 1, %v4674
  %v4676 = vrot.slane %v4667, %v4675
  %v4677 = vlaneseq
  %v4678 = vshrl.u32 %v4677, 7
  %v4679 = vsub.s32 2, %v4678
  %v4680 = vrot.slane %v4667, %v4679
  %v4681 = vlaneseq
  %v4682 = vshrl.u32 %v4681, 7
  %v4683 = vsub.s32 3, %v4682
  %v4684 = vrot.slane %v4667, %v4683
  %v4689 = vmul.f32 %v4634, %v4672
  %v4690 = vmul.f32 %v4618, %v4676
  %v4691 = vmul.f32 %v4602, %v4680
  %v4692 = vmul.f32 %v4650, %v4684
  %v4693 = vmul.f32 %v4635, %v4672
  %v4694 = vmul.f32 %v4619, %v4676
  %v4695 = vmul.f32 %v4603, %v4680
  %v4696 = vmul.f32 %v4651, %v4684
  %v4697 = vmul.f32 %v4636, %v4672
  %v4698 = vmul.f32 %v4620, %v4676
  %v4699 = vmul.f32 %v4604, %v4680
  %v4700 = vmul.f32 %v4652, %v4684
  %v4701 = vmul.f32 %v4637, %v4672
  %v4702 = vmul.f32 %v4621, %v4676
  %v4703 = vmul.f32 %v4605, %v4680
  %v4704 = vmul.f32 %v4653, %v4684
  %v4705 = vmul.f32 %v4638, %v4672
  %v4706 = vmul.f32 %v4622, %v4676
  %v4707 = vmul.f32 %v4606, %v4680
  %v4708 = vmul.f32 %v4654, %v4684
  %v4709 = vmul.f32 %v4639, %v4672
  %v4710 = vmul.f32 %v4623, %v4676
  %v4711 = vmul.f32 %v4607, %v4680
  %v4712 = vmul.f32 %v4655, %v4684
  %v4713 = vmul.f32 %v4640, %v4672
  %v4714 = vmul.f32 %v4624, %v4676
  %v4715 = vmul.f32 %v4608, %v4680
  %v4716 = vmul.f32 %v4656, %v4684
  %v4717 = vmul.f32 %v4641, %v4672
  %v4718 = vmul.f32 %v4625, %v4676
  %v4719 = vmul.f32 %v4609, %v4680
  %v4720 = vmul.f32 %v4657, %v4684
  %v4721 = vmul.f32 %v4642, %v4672
  %v4722 = vmul.f32 %v4626, %v4676
  %v4723 = vmul.f32 %v4610, %v4680
  %v4724 = vmul.f32 %v4658, %v4684
  %v4725 = vmul.f32 %v4643, %v4672
  %v4726 = vmul.f32 %v4627, %v4676
  %v4727 = vmul.f32 %v4611, %v4680
  %v4728 = vmul.f32 %v4659, %v4684
  %v4729 = vmul.f32 %v4644, %v4672
  %v4730 = vmul.f32 %v4628, %v4676
  %v4731 = vmul.f32 %v4612, %v4680
  %v4732 = vmul.f32 %v4660, %v4684
  %v4733 = vmul.f32 %v4645, %v4672
  %v4734 = vmul.f32 %v4629, %v4676
  %v4735 = vmul.f32 %v4613, %v4680
  %v4736 = vmul.f32 %v4661, %v4684
  %v4737 = vmul.f32 %v4646, %v4672
  %v4738 = vmul.f32 %v4630, %v4676
  %v4739 = vmul.f32 %v4614, %v4680
  %v4740 = vmul.f32 %v4662, %v4684
  %v4741 = vmul.f32 %v4647, %v4672
  %v4742 = vmul.f32 %v4631, %v4676
  %v4743 = vmul.f32 %v4615, %v4680
  %v4744 = vmul.f32 %v4663, %v4684
  %v4745 = vmul.f32 %v4648, %v4672
  %v4746 = vmul.f32 %v4632, %v4676
  %v4747 = vmul.f32 %v4616, %v4680
  %v4748 = vmul.f32 %v4664, %v4684
  %v4749 = vmul.f32 %v4649, %v4672
  %v4750 = vmul.f32 %v4633, %v4676
  %v4751 = vmul.f32 %v4617, %v4680
  %v4752 = vmul.f32 %v4665, %v4684
  %4753 = vset.pattern.permute.xlu0 7
  %4754 = vperm.xlu0 %4753, %v1480
  %v4755 = vpop.permute.xlu0 %4754
  %4757 = vset.pattern.permute.xlu0 7
  %4758 = vperm.xlu0 %4757, %v1481
  %v4759 = vpop.permute.xlu0 %4758
  %4761 = vset.pattern.permute.xlu0 7
  %4762 = vperm.xlu0 %4761, %v1482
  %v4763 = vpop.permute.xlu0 %4762
  %4765 = vset.pattern.permute.xlu0 7
  %4766 = vperm.xlu0 %4765, %v1483
  %v4767 = vpop.permute.xlu0 %4766
  %4769 = vset.pattern.permute.xlu0 7
  %4770 = vperm.xlu0 %4769, %v1484
  %v4771 = vpop.permute.xlu0 %4770
  %4773 = vset.pattern.permute.xlu0 7
  %4774 = vperm.xlu0 %4773, %v1485
  %v4775 = vpop.permute.xlu0 %4774
  %4777 = vset.pattern.permute.xlu0 7
  %4778 = vperm.xlu0 %4777, %v1486
  %v4779 = vpop.permute.xlu0 %4778
  %4781 = vset.pattern.permute.xlu0 7
  %4782 = vperm.xlu0 %4781, %v1487
  %v4783 = vpop.permute.xlu0 %4782
  %4785 = vset.pattern.permute.xlu0 7
  %4786 = vperm.xlu0 %4785, %v1488
  %v4787 = vpop.permute.xlu0 %4786
  %4789 = vset.pattern.permute.xlu0 7
  %4790 = vperm.xlu0 %4789, %v1489
  %v4791 = vpop.permute.xlu0 %4790
  %4793 = vset.pattern.permute.xlu0 7
  %4794 = vperm.xlu0 %4793, %v1490
  %v4795 = vpop.permute.xlu0 %4794
  %4797 = vset.pattern.permute.xlu0 7
  %4798 = vperm.xlu0 %4797, %v1491
  %v4799 = vpop.permute.xlu0 %4798
  %4801 = vset.pattern.permute.xlu0 7
  %4802 = vperm.xlu0 %4801, %v1492
  %v4803 = vpop.permute.xlu0 %4802
  %4805 = vset.pattern.permute.xlu0 7
  %4806 = vperm.xlu0 %4805, %v1493
  %v4807 = vpop.permute.xlu0 %4806
  %4809 = vset.pattern.permute.xlu0 7
  %4810 = vperm.xlu0 %4809, %v1494
  %v4811 = vpop.permute.xlu0 %4810
  %4813 = vset.pattern.permute.xlu0 7
  %4814 = vperm.xlu0 %4813, %v1495
  %v4815 = vpop.permute.xlu0 %4814
  %v4817 = vmul.f32 %v4689, %v4755
  %v4818 = vmul.f32 %v4690, %v4755
  %v4819 = vmul.f32 %v4691, %v4755
  %v4820 = vmul.f32 %v4692, %v4755
  %v4821 = vmul.f32 %v4693, %v4759
  %v4822 = vmul.f32 %v4694, %v4759
  %v4823 = vmul.f32 %v4695, %v4759
  %v4824 = vmul.f32 %v4696, %v4759
  %v4825 = vmul.f32 %v4697, %v4763
  %v4826 = vmul.f32 %v4698, %v4763
  %v4827 = vmul.f32 %v4699, %v4763
  %v4828 = vmul.f32 %v4700, %v4763
  %v4829 = vmul.f32 %v4701, %v4767
  %v4830 = vmul.f32 %v4702, %v4767
  %v4831 = vmul.f32 %v4703, %v4767
  %v4832 = vmul.f32 %v4704, %v4767
  %v4833 = vmul.f32 %v4705, %v4771
  %v4834 = vmul.f32 %v4706, %v4771
  %v4835 = vmul.f32 %v4707, %v4771
  %v4836 = vmul.f32 %v4708, %v4771
  %v4837 = vmul.f32 %v4709, %v4775
  %v4838 = vmul.f32 %v4710, %v4775
  %v4839 = vmul.f32 %v4711, %v4775
  %v4840 = vmul.f32 %v4712, %v4775
  %v4841 = vmul.f32 %v4713, %v4779
  %v4842 = vmul.f32 %v4714, %v4779
  %v4843 = vmul.f32 %v4715, %v4779
  %v4844 = vmul.f32 %v4716, %v4779
  %v4845 = vmul.f32 %v4717, %v4783
  %v4846 = vmul.f32 %v4718, %v4783
  %v4847 = vmul.f32 %v4719, %v4783
  %v4848 = vmul.f32 %v4720, %v4783
  %v4849 = vmul.f32 %v4721, %v4787
  %v4850 = vmul.f32 %v4722, %v4787
  %v4851 = vmul.f32 %v4723, %v4787
  %v4852 = vmul.f32 %v4724, %v4787
  %v4853 = vmul.f32 %v4725, %v4791
  %v4854 = vmul.f32 %v4726, %v4791
  %v4855 = vmul.f32 %v4727, %v4791
  %v4856 = vmul.f32 %v4728, %v4791
  %v4857 = vmul.f32 %v4729, %v4795
  %v4858 = vmul.f32 %v4730, %v4795
  %v4859 = vmul.f32 %v4731, %v4795
  %v4860 = vmul.f32 %v4732, %v4795
  %v4861 = vmul.f32 %v4733, %v4799
  %v4862 = vmul.f32 %v4734, %v4799
  %v4863 = vmul.f32 %v4735, %v4799
  %v4864 = vmul.f32 %v4736, %v4799
  %v4865 = vmul.f32 %v4737, %v4803
  %v4866 = vmul.f32 %v4738, %v4803
  %v4867 = vmul.f32 %v4739, %v4803
  %v4868 = vmul.f32 %v4740, %v4803
  %v4869 = vmul.f32 %v4741, %v4807
  %v4870 = vmul.f32 %v4742, %v4807
  %v4871 = vmul.f32 %v4743, %v4807
  %v4872 = vmul.f32 %v4744, %v4807
  %v4873 = vmul.f32 %v4745, %v4811
  %v4874 = vmul.f32 %v4746, %v4811
  %v4875 = vmul.f32 %v4747, %v4811
  %v4876 = vmul.f32 %v4748, %v4811
  %v4877 = vmul.f32 %v4749, %v4815
  %v4878 = vmul.f32 %v4750, %v4815
  %v4879 = vmul.f32 %v4751, %v4815
  %v4880 = vmul.f32 %v4752, %v4815
  %v4881 = vadd.f32 %v4409, %v4817
  %v4882 = vadd.f32 %v4410, %v4818
  %v4883 = vadd.f32 %v4411, %v4819
  %v4884 = vadd.f32 %v4412, %v4820
  %v4885 = vadd.f32 %v4413, %v4821
  %v4886 = vadd.f32 %v4414, %v4822
  %v4887 = vadd.f32 %v4415, %v4823
  %v4888 = vadd.f32 %v4416, %v4824
  %v4889 = vadd.f32 %v4417, %v4825
  %v4890 = vadd.f32 %v4418, %v4826
  %v4891 = vadd.f32 %v4419, %v4827
  %v4892 = vadd.f32 %v4420, %v4828
  %v4893 = vadd.f32 %v4421, %v4829
  %v4894 = vadd.f32 %v4422, %v4830
  %v4895 = vadd.f32 %v4423, %v4831
  %v4896 = vadd.f32 %v4424, %v4832
  %v4897 = vadd.f32 %v4425, %v4833
  %v4898 = vadd.f32 %v4426, %v4834
  %v4899 = vadd.f32 %v4427, %v4835
  %v4900 = vadd.f32 %v4428, %v4836
  %v4901 = vadd.f32 %v4429, %v4837
  %v4902 = vadd.f32 %v4430, %v4838
  %v4903 = vadd.f32 %v4431, %v4839
  %v4904 = vadd.f32 %v4432, %v4840
  %v4905 = vadd.f32 %v4433, %v4841
  %v4906 = vadd.f32 %v4434, %v4842
  %v4907 = vadd.f32 %v4435, %v4843
  %v4908 = vadd.f32 %v4436, %v4844
  %v4909 = vadd.f32 %v4437, %v4845
  %v4910 = vadd.f32 %v4438, %v4846
  %v4911 = vadd.f32 %v4439, %v4847
  %v4912 = vadd.f32 %v4440, %v4848
  %v4913 = vadd.f32 %v4441, %v4849
  %v4914 = vadd.f32 %v4442, %v4850
  %v4915 = vadd.f32 %v4443, %v4851
  %v4916 = vadd.f32 %v4444, %v4852
  %v4917 = vadd.f32 %v4445, %v4853
  %v4918 = vadd.f32 %v4446, %v4854
  %v4919 = vadd.f32 %v4447, %v4855
  %v4920 = vadd.f32 %v4448, %v4856
  %v4921 = vadd.f32 %v4449, %v4857
  %v4922 = vadd.f32 %v4450, %v4858
  %v4923 = vadd.f32 %v4451, %v4859
  %v4924 = vadd.f32 %v4452, %v4860
  %v4925 = vadd.f32 %v4453, %v4861
  %v4926 = vadd.f32 %v4454, %v4862
  %v4927 = vadd.f32 %v4455, %v4863
  %v4928 = vadd.f32 %v4456, %v4864
  %v4929 = vadd.f32 %v4457, %v4865
  %v4930 = vadd.f32 %v4458, %v4866
  %v4931 = vadd.f32 %v4459, %v4867
  %v4932 = vadd.f32 %v4460, %v4868
  %v4933 = vadd.f32 %v4461, %v4869
  %v4934 = vadd.f32 %v4462, %v4870
  %v4935 = vadd.f32 %v4463, %v4871
  %v4936 = vadd.f32 %v4464, %v4872
  %v4937 = vadd.f32 %v4465, %v4873
  %v4938 = vadd.f32 %v4466, %v4874
  %v4939 = vadd.f32 %v4467, %v4875
  %v4940 = vadd.f32 %v4468, %v4876
  %v4941 = vadd.f32 %v4469, %v4877
  %v4942 = vadd.f32 %v4470, %v4878
  %v4943 = vadd.f32 %v4471, %v4879
  %v4944 = vadd.f32 %v4472, %v4880
  %4945 = vrot.lane.b32.xlu0 %v1416, 111
  %v4946 = vpop.permute.xlu0 %4945
  %4947 = vrot.lane.b32.xlu0 %v1420, 111
  %v4948 = vpop.permute.xlu0 %4947
  %4949 = vrot.lane.b32.xlu0 %v1424, 111
  %v4950 = vpop.permute.xlu0 %4949
  %4951 = vrot.lane.b32.xlu0 %v1428, 111
  %v4952 = vpop.permute.xlu0 %4951
  %4953 = vrot.lane.b32.xlu0 %v1432, 111
  %v4954 = vpop.permute.xlu0 %4953
  %4955 = vrot.lane.b32.xlu0 %v1436, 111
  %v4956 = vpop.permute.xlu0 %4955
  %4957 = vrot.lane.b32.xlu0 %v1440, 111
  %v4958 = vpop.permute.xlu0 %4957
  %4959 = vrot.lane.b32.xlu0 %v1444, 111
  %v4960 = vpop.permute.xlu0 %4959
  %4961 = vrot.lane.b32.xlu0 %v1448, 111
  %v4962 = vpop.permute.xlu0 %4961
  %4963 = vrot.lane.b32.xlu0 %v1452, 111
  %v4964 = vpop.permute.xlu0 %4963
  %4965 = vrot.lane.b32.xlu0 %v1456, 111
  %v4966 = vpop.permute.xlu0 %4965
  %4967 = vrot.lane.b32.xlu0 %v1460, 111
  %v4968 = vpop.permute.xlu0 %4967
  %4969 = vrot.lane.b32.xlu0 %v1464, 111
  %v4970 = vpop.permute.xlu0 %4969
  %4971 = vrot.lane.b32.xlu0 %v1468, 111
  %v4972 = vpop.permute.xlu0 %4971
  %4973 = vrot.lane.b32.xlu0 %v1472, 111
  %v4974 = vpop.permute.xlu0 %4973
  %4975 = vrot.lane.b32.xlu0 %v1476, 111
  %v4976 = vpop.permute.xlu0 %4975
  %4977 = vrot.lane.b32.xlu0 %v1417, 111
  %v4978 = vpop.permute.xlu0 %4977
  %4979 = vrot.lane.b32.xlu0 %v1421, 111
  %v4980 = vpop.permute.xlu0 %4979
  %4981 = vrot.lane.b32.xlu0 %v1425, 111
  %v4982 = vpop.permute.xlu0 %4981
  %4983 = vrot.lane.b32.xlu0 %v1429, 111
  %v4984 = vpop.permute.xlu0 %4983
  %4985 = vrot.lane.b32.xlu0 %v1433, 111
  %v4986 = vpop.permute.xlu0 %4985
  %4987 = vrot.lane.b32.xlu0 %v1437, 111
  %v4988 = vpop.permute.xlu0 %4987
  %4989 = vrot.lane.b32.xlu0 %v1441, 111
  %v4990 = vpop.permute.xlu0 %4989
  %4991 = vrot.lane.b32.xlu0 %v1445, 111
  %v4992 = vpop.permute.xlu0 %4991
  %4993 = vrot.lane.b32.xlu0 %v1449, 111
  %v4994 = vpop.permute.xlu0 %4993
  %4995 = vrot.lane.b32.xlu0 %v1453, 111
  %v4996 = vpop.permute.xlu0 %4995
  %4997 = vrot.lane.b32.xlu0 %v1457, 111
  %v4998 = vpop.permute.xlu0 %4997
  %4999 = vrot.lane.b32.xlu0 %v1461, 111
  %v5000 = vpop.permute.xlu0 %4999
  %5001 = vrot.lane.b32.xlu0 %v1465, 111
  %v5002 = vpop.permute.xlu0 %5001
  %5003 = vrot.lane.b32.xlu0 %v1469, 111
  %v5004 = vpop.permute.xlu0 %5003
  %5005 = vrot.lane.b32.xlu0 %v1473, 111
  %v5006 = vpop.permute.xlu0 %5005
  %5007 = vrot.lane.b32.xlu0 %v1477, 111
  %v5008 = vpop.permute.xlu0 %5007
  %5009 = vrot.lane.b32.xlu0 %v1418, 111
  %v5010 = vpop.permute.xlu0 %5009
  %5011 = vrot.lane.b32.xlu0 %v1422, 111
  %v5012 = vpop.permute.xlu0 %5011
  %5013 = vrot.lane.b32.xlu0 %v1426, 111
  %v5014 = vpop.permute.xlu0 %5013
  %5015 = vrot.lane.b32.xlu0 %v1430, 111
  %v5016 = vpop.permute.xlu0 %5015
  %5017 = vrot.lane.b32.xlu0 %v1434, 111
  %v5018 = vpop.permute.xlu0 %5017
  %5019 = vrot.lane.b32.xlu0 %v1438, 111
  %v5020 = vpop.permute.xlu0 %5019
  %5021 = vrot.lane.b32.xlu0 %v1442, 111
  %v5022 = vpop.permute.xlu0 %5021
  %5023 = vrot.lane.b32.xlu0 %v1446, 111
  %v5024 = vpop.permute.xlu0 %5023
  %5025 = vrot.lane.b32.xlu0 %v1450, 111
  %v5026 = vpop.permute.xlu0 %5025
  %5027 = vrot.lane.b32.xlu0 %v1454, 111
  %v5028 = vpop.permute.xlu0 %5027
  %5029 = vrot.lane.b32.xlu0 %v1458, 111
  %v5030 = vpop.permute.xlu0 %5029
  %5031 = vrot.lane.b32.xlu0 %v1462, 111
  %v5032 = vpop.permute.xlu0 %5031
  %5033 = vrot.lane.b32.xlu0 %v1466, 111
  %v5034 = vpop.permute.xlu0 %5033
  %5035 = vrot.lane.b32.xlu0 %v1470, 111
  %v5036 = vpop.permute.xlu0 %5035
  %5037 = vrot.lane.b32.xlu0 %v1474, 111
  %v5038 = vpop.permute.xlu0 %5037
  %5039 = vrot.lane.b32.xlu0 %v1478, 111
  %v5040 = vpop.permute.xlu0 %5039
  %5041 = vrot.lane.b32.xlu0 %v1419, 111
  %v5042 = vpop.permute.xlu0 %5041
  %5043 = vrot.lane.b32.xlu0 %v1423, 111
  %v5044 = vpop.permute.xlu0 %5043
  %5045 = vrot.lane.b32.xlu0 %v1427, 111
  %v5046 = vpop.permute.xlu0 %5045
  %5047 = vrot.lane.b32.xlu0 %v1431, 111
  %v5048 = vpop.permute.xlu0 %5047
  %5049 = vrot.lane.b32.xlu0 %v1435, 111
  %v5050 = vpop.permute.xlu0 %5049
  %5051 = vrot.lane.b32.xlu0 %v1439, 111
  %v5052 = vpop.permute.xlu0 %5051
  %5053 = vrot.lane.b32.xlu0 %v1443, 111
  %v5054 = vpop.permute.xlu0 %5053
  %5055 = vrot.lane.b32.xlu0 %v1447, 111
  %v5056 = vpop.permute.xlu0 %5055
  %5057 = vrot.lane.b32.xlu0 %v1451, 111
  %v5058 = vpop.permute.xlu0 %5057
  %5059 = vrot.lane.b32.xlu0 %v1455, 111
  %v5060 = vpop.permute.xlu0 %5059
  %5061 = vrot.lane.b32.xlu0 %v1459, 111
  %v5062 = vpop.permute.xlu0 %5061
  %5063 = vrot.lane.b32.xlu0 %v1463, 111
  %v5064 = vpop.permute.xlu0 %5063
  %5065 = vrot.lane.b32.xlu0 %v1467, 111
  %v5066 = vpop.permute.xlu0 %5065
  %5067 = vrot.lane.b32.xlu0 %v1471, 111
  %v5068 = vpop.permute.xlu0 %5067
  %5069 = vrot.lane.b32.xlu0 %v1475, 111
  %v5070 = vpop.permute.xlu0 %5069
  %5071 = vrot.lane.b32.xlu0 %v1479, 111
  %v5072 = vpop.permute.xlu0 %5071
  %vm5073 = vcmp.lt.s32.totalorder %v1769, 111
  %v5074 = vsel %vm5073, %v5010, %v5042
  %v5075 = vsel %vm5073, %v5012, %v5044
  %v5076 = vsel %vm5073, %v5014, %v5046
  %v5077 = vsel %vm5073, %v5016, %v5048
  %v5078 = vsel %vm5073, %v5018, %v5050
  %v5079 = vsel %vm5073, %v5020, %v5052
  %v5080 = vsel %vm5073, %v5022, %v5054
  %v5081 = vsel %vm5073, %v5024, %v5056
  %v5082 = vsel %vm5073, %v5026, %v5058
  %v5083 = vsel %vm5073, %v5028, %v5060
  %v5084 = vsel %vm5073, %v5030, %v5062
  %v5085 = vsel %vm5073, %v5032, %v5064
  %v5086 = vsel %vm5073, %v5034, %v5066
  %v5087 = vsel %vm5073, %v5036, %v5068
  %v5088 = vsel %vm5073, %v5038, %v5070
  %v5089 = vsel %vm5073, %v5040, %v5072
  %v5090 = vsel %vm5073, %v4978, %v5010
  %v5091 = vsel %vm5073, %v4980, %v5012
  %v5092 = vsel %vm5073, %v4982, %v5014
  %v5093 = vsel %vm5073, %v4984, %v5016
  %v5094 = vsel %vm5073, %v4986, %v5018
  %v5095 = vsel %vm5073, %v4988, %v5020
  %v5096 = vsel %vm5073, %v4990, %v5022
  %v5097 = vsel %vm5073, %v4992, %v5024
  %v5098 = vsel %vm5073, %v4994, %v5026
  %v5099 = vsel %vm5073, %v4996, %v5028
  %v5100 = vsel %vm5073, %v4998, %v5030
  %v5101 = vsel %vm5073, %v5000, %v5032
  %v5102 = vsel %vm5073, %v5002, %v5034
  %v5103 = vsel %vm5073, %v5004, %v5036
  %v5104 = vsel %vm5073, %v5006, %v5038
  %v5105 = vsel %vm5073, %v5008, %v5040
  %v5106 = vsel %vm5073, %v4946, %v4978
  %v5107 = vsel %vm5073, %v4948, %v4980
  %v5108 = vsel %vm5073, %v4950, %v4982
  %v5109 = vsel %vm5073, %v4952, %v4984
  %v5110 = vsel %vm5073, %v4954, %v4986
  %v5111 = vsel %vm5073, %v4956, %v4988
  %v5112 = vsel %vm5073, %v4958, %v4990
  %v5113 = vsel %vm5073, %v4960, %v4992
  %v5114 = vsel %vm5073, %v4962, %v4994
  %v5115 = vsel %vm5073, %v4964, %v4996
  %v5116 = vsel %vm5073, %v4966, %v4998
  %v5117 = vsel %vm5073, %v4968, %v5000
  %v5118 = vsel %vm5073, %v4970, %v5002
  %v5119 = vsel %vm5073, %v4972, %v5004
  %v5120 = vsel %vm5073, %v4974, %v5006
  %v5121 = vsel %vm5073, %v4976, %v5008
  %v5122 = vsel %vm5073, %v5042, %v4946
  %v5123 = vsel %vm5073, %v5044, %v4948
  %v5124 = vsel %vm5073, %v5046, %v4950
  %v5125 = vsel %vm5073, %v5048, %v4952
  %v5126 = vsel %vm5073, %v5050, %v4954
  %v5127 = vsel %vm5073, %v5052, %v4956
  %v5128 = vsel %vm5073, %v5054, %v4958
  %v5129 = vsel %vm5073, %v5056, %v4960
  %v5130 = vsel %vm5073, %v5058, %v4962
  %v5131 = vsel %vm5073, %v5060, %v4964
  %v5132 = vsel %vm5073, %v5062, %v4966
  %v5133 = vsel %vm5073, %v5064, %v4968
  %v5134 = vsel %vm5073, %v5066, %v4970
  %v5135 = vsel %vm5073, %v5068, %v4972
  %v5136 = vsel %vm5073, %v5070, %v4974
  %v5137 = vsel %vm5073, %v5072, %v4976
  %s5138 = scalar_lea.vmem %s3, 7
  %v5139 = vld [vmem:[%s5138] ss:$8 sm:$0xf]
  %v5141 = vlaneseq
  %v5142 = vshrl.u32 %v5141, 7
  %v5143 = vsub.s32 0, %v5142
  %v5144 = vrot.slane %v5139, %v5143
  %v5145 = vlaneseq
  %v5146 = vshrl.u32 %v5145, 7
  %v5147 = vsub.s32 1, %v5146
  %v5148 = vrot.slane %v5139, %v5147
  %v5149 = vlaneseq
  %v5150 = vshrl.u32 %v5149, 7
  %v5151 = vsub.s32 2, %v5150
  %v5152 = vrot.slane %v5139, %v5151
  %v5153 = vlaneseq
  %v5154 = vshrl.u32 %v5153, 7
  %v5155 = vsub.s32 3, %v5154
  %v5156 = vrot.slane %v5139, %v5155
  %v5161 = vmul.f32 %v5106, %v5144
  %v5162 = vmul.f32 %v5090, %v5148
  %v5163 = vmul.f32 %v5074, %v5152
  %v5164 = vmul.f32 %v5122, %v5156
  %v5165 = vmul.f32 %v5107, %v5144
  %v5166 = vmul.f32 %v5091, %v5148
  %v5167 = vmul.f32 %v5075, %v5152
  %v5168 = vmul.f32 %v5123, %v5156
  %v5169 = vmul.f32 %v5108, %v5144
  %v5170 = vmul.f32 %v5092, %v5148
  %v5171 = vmul.f32 %v5076, %v5152
  %v5172 = vmul.f32 %v5124, %v5156
  %v5173 = vmul.f32 %v5109, %v5144
  %v5174 = vmul.f32 %v5093, %v5148
  %v5175 = vmul.f32 %v5077, %v5152
  %v5176 = vmul.f32 %v5125, %v5156
  %v5177 = vmul.f32 %v5110, %v5144
  %v5178 = vmul.f32 %v5094, %v5148
  %v5179 = vmul.f32 %v5078, %v5152
  %v5180 = vmul.f32 %v5126, %v5156
  %v5181 = vmul.f32 %v5111, %v5144
  %v5182 = vmul.f32 %v5095, %v5148
  %v5183 = vmul.f32 %v5079, %v5152
  %v5184 = vmul.f32 %v5127, %v5156
  %v5185 = vmul.f32 %v5112, %v5144
  %v5186 = vmul.f32 %v5096, %v5148
  %v5187 = vmul.f32 %v5080, %v5152
  %v5188 = vmul.f32 %v5128, %v5156
  %v5189 = vmul.f32 %v5113, %v5144
  %v5190 = vmul.f32 %v5097, %v5148
  %v5191 = vmul.f32 %v5081, %v5152
  %v5192 = vmul.f32 %v5129, %v5156
  %v5193 = vmul.f32 %v5114, %v5144
  %v5194 = vmul.f32 %v5098, %v5148
  %v5195 = vmul.f32 %v5082, %v5152
  %v5196 = vmul.f32 %v5130, %v5156
  %v5197 = vmul.f32 %v5115, %v5144
  %v5198 = vmul.f32 %v5099, %v5148
  %v5199 = vmul.f32 %v5083, %v5152
  %v5200 = vmul.f32 %v5131, %v5156
  %v5201 = vmul.f32 %v5116, %v5144
  %v5202 = vmul.f32 %v5100, %v5148
  %v5203 = vmul.f32 %v5084, %v5152
  %v5204 = vmul.f32 %v5132, %v5156
  %v5205 = vmul.f32 %v5117, %v5144
  %v5206 = vmul.f32 %v5101, %v5148
  %v5207 = vmul.f32 %v5085, %v5152
  %v5208 = vmul.f32 %v5133, %v5156
  %v5209 = vmul.f32 %v5118, %v5144
  %v5210 = vmul.f32 %v5102, %v5148
  %v5211 = vmul.f32 %v5086, %v5152
  %v5212 = vmul.f32 %v5134, %v5156
  %v5213 = vmul.f32 %v5119, %v5144
  %v5214 = vmul.f32 %v5103, %v5148
  %v5215 = vmul.f32 %v5087, %v5152
  %v5216 = vmul.f32 %v5135, %v5156
  %v5217 = vmul.f32 %v5120, %v5144
  %v5218 = vmul.f32 %v5104, %v5148
  %v5219 = vmul.f32 %v5088, %v5152
  %v5220 = vmul.f32 %v5136, %v5156
  %v5221 = vmul.f32 %v5121, %v5144
  %v5222 = vmul.f32 %v5105, %v5148
  %v5223 = vmul.f32 %v5089, %v5152
  %v5224 = vmul.f32 %v5137, %v5156
  %5225 = vset.pattern.permute.xlu0 8
  %5226 = vperm.xlu0 %5225, %v1480
  %v5227 = vpop.permute.xlu0 %5226
  %5229 = vset.pattern.permute.xlu0 8
  %5230 = vperm.xlu0 %5229, %v1481
  %v5231 = vpop.permute.xlu0 %5230
  %5233 = vset.pattern.permute.xlu0 8
  %5234 = vperm.xlu0 %5233, %v1482
  %v5235 = vpop.permute.xlu0 %5234
  %5237 = vset.pattern.permute.xlu0 8
  %5238 = vperm.xlu0 %5237, %v1483
  %v5239 = vpop.permute.xlu0 %5238
  %5241 = vset.pattern.permute.xlu0 8
  %5242 = vperm.xlu0 %5241, %v1484
  %v5243 = vpop.permute.xlu0 %5242
  %5245 = vset.pattern.permute.xlu0 8
  %5246 = vperm.xlu0 %5245, %v1485
  %v5247 = vpop.permute.xlu0 %5246
  %5249 = vset.pattern.permute.xlu0 8
  %5250 = vperm.xlu0 %5249, %v1486
  %v5251 = vpop.permute.xlu0 %5250
  %5253 = vset.pattern.permute.xlu0 8
  %5254 = vperm.xlu0 %5253, %v1487
  %v5255 = vpop.permute.xlu0 %5254
  %5257 = vset.pattern.permute.xlu0 8
  %5258 = vperm.xlu0 %5257, %v1488
  %v5259 = vpop.permute.xlu0 %5258
  %5261 = vset.pattern.permute.xlu0 8
  %5262 = vperm.xlu0 %5261, %v1489
  %v5263 = vpop.permute.xlu0 %5262
  %5265 = vset.pattern.permute.xlu0 8
  %5266 = vperm.xlu0 %5265, %v1490
  %v5267 = vpop.permute.xlu0 %5266
  %5269 = vset.pattern.permute.xlu0 8
  %5270 = vperm.xlu0 %5269, %v1491
  %v5271 = vpop.permute.xlu0 %5270
  %5273 = vset.pattern.permute.xlu0 8
  %5274 = vperm.xlu0 %5273, %v1492
  %v5275 = vpop.permute.xlu0 %5274
  %5277 = vset.pattern.permute.xlu0 8
  %5278 = vperm.xlu0 %5277, %v1493
  %v5279 = vpop.permute.xlu0 %5278
  %5281 = vset.pattern.permute.xlu0 8
  %5282 = vperm.xlu0 %5281, %v1494
  %v5283 = vpop.permute.xlu0 %5282
  %5285 = vset.pattern.permute.xlu0 8
  %5286 = vperm.xlu0 %5285, %v1495
  %v5287 = vpop.permute.xlu0 %5286
  %v5289 = vmul.f32 %v5161, %v5227
  %v5290 = vmul.f32 %v5162, %v5227
  %v5291 = vmul.f32 %v5163, %v5227
  %v5292 = vmul.f32 %v5164, %v5227
  %v5293 = vmul.f32 %v5165, %v5231
  %v5294 = vmul.f32 %v5166, %v5231
  %v5295 = vmul.f32 %v5167, %v5231
  %v5296 = vmul.f32 %v5168, %v5231
  %v5297 = vmul.f32 %v5169, %v5235
  %v5298 = vmul.f32 %v5170, %v5235
  %v5299 = vmul.f32 %v5171, %v5235
  %v5300 = vmul.f32 %v5172, %v5235
  %v5301 = vmul.f32 %v5173, %v5239
  %v5302 = vmul.f32 %v5174, %v5239
  %v5303 = vmul.f32 %v5175, %v5239
  %v5304 = vmul.f32 %v5176, %v5239
  %v5305 = vmul.f32 %v5177, %v5243
  %v5306 = vmul.f32 %v5178, %v5243
  %v5307 = vmul.f32 %v5179, %v5243
  %v5308 = vmul.f32 %v5180, %v5243
  %v5309 = vmul.f32 %v5181, %v5247
  %v5310 = vmul.f32 %v5182, %v5247
  %v5311 = vmul.f32 %v5183, %v5247
  %v5312 = vmul.f32 %v5184, %v5247
  %v5313 = vmul.f32 %v5185, %v5251
  %v5314 = vmul.f32 %v5186, %v5251
  %v5315 = vmul.f32 %v5187, %v5251
  %v5316 = vmul.f32 %v5188, %v5251
  %v5317 = vmul.f32 %v5189, %v5255
  %v5318 = vmul.f32 %v5190, %v5255
  %v5319 = vmul.f32 %v5191, %v5255
  %v5320 = vmul.f32 %v5192, %v5255
  %v5321 = vmul.f32 %v5193, %v5259
  %v5322 = vmul.f32 %v5194, %v5259
  %v5323 = vmul.f32 %v5195, %v5259
  %v5324 = vmul.f32 %v5196, %v5259
  %v5325 = vmul.f32 %v5197, %v5263
  %v5326 = vmul.f32 %v5198, %v5263
  %v5327 = vmul.f32 %v5199, %v5263
  %v5328 = vmul.f32 %v5200, %v5263
  %v5329 = vmul.f32 %v5201, %v5267
  %v5330 = vmul.f32 %v5202, %v5267
  %v5331 = vmul.f32 %v5203, %v5267
  %v5332 = vmul.f32 %v5204, %v5267
  %v5333 = vmul.f32 %v5205, %v5271
  %v5334 = vmul.f32 %v5206, %v5271
  %v5335 = vmul.f32 %v5207, %v5271
  %v5336 = vmul.f32 %v5208, %v5271
  %v5337 = vmul.f32 %v5209, %v5275
  %v5338 = vmul.f32 %v5210, %v5275
  %v5339 = vmul.f32 %v5211, %v5275
  %v5340 = vmul.f32 %v5212, %v5275
  %v5341 = vmul.f32 %v5213, %v5279
  %v5342 = vmul.f32 %v5214, %v5279
  %v5343 = vmul.f32 %v5215, %v5279
  %v5344 = vmul.f32 %v5216, %v5279
  %v5345 = vmul.f32 %v5217, %v5283
  %v5346 = vmul.f32 %v5218, %v5283
  %v5347 = vmul.f32 %v5219, %v5283
  %v5348 = vmul.f32 %v5220, %v5283
  %v5349 = vmul.f32 %v5221, %v5287
  %v5350 = vmul.f32 %v5222, %v5287
  %v5351 = vmul.f32 %v5223, %v5287
  %v5352 = vmul.f32 %v5224, %v5287
  %v5353 = vadd.f32 %v4881, %v5289
  %v5354 = vadd.f32 %v4882, %v5290
  %v5355 = vadd.f32 %v4883, %v5291
  %v5356 = vadd.f32 %v4884, %v5292
  %v5357 = vadd.f32 %v4885, %v5293
  %v5358 = vadd.f32 %v4886, %v5294
  %v5359 = vadd.f32 %v4887, %v5295
  %v5360 = vadd.f32 %v4888, %v5296
  %v5361 = vadd.f32 %v4889, %v5297
  %v5362 = vadd.f32 %v4890, %v5298
  %v5363 = vadd.f32 %v4891, %v5299
  %v5364 = vadd.f32 %v4892, %v5300
  %v5365 = vadd.f32 %v4893, %v5301
  %v5366 = vadd.f32 %v4894, %v5302
  %v5367 = vadd.f32 %v4895, %v5303
  %v5368 = vadd.f32 %v4896, %v5304
  %v5369 = vadd.f32 %v4897, %v5305
  %v5370 = vadd.f32 %v4898, %v5306
  %v5371 = vadd.f32 %v4899, %v5307
  %v5372 = vadd.f32 %v4900, %v5308
  %v5373 = vadd.f32 %v4901, %v5309
  %v5374 = vadd.f32 %v4902, %v5310
  %v5375 = vadd.f32 %v4903, %v5311
  %v5376 = vadd.f32 %v4904, %v5312
  %v5377 = vadd.f32 %v4905, %v5313
  %v5378 = vadd.f32 %v4906, %v5314
  %v5379 = vadd.f32 %v4907, %v5315
  %v5380 = vadd.f32 %v4908, %v5316
  %v5381 = vadd.f32 %v4909, %v5317
  %v5382 = vadd.f32 %v4910, %v5318
  %v5383 = vadd.f32 %v4911, %v5319
  %v5384 = vadd.f32 %v4912, %v5320
  %v5385 = vadd.f32 %v4913, %v5321
  %v5386 = vadd.f32 %v4914, %v5322
  %v5387 = vadd.f32 %v4915, %v5323
  %v5388 = vadd.f32 %v4916, %v5324
  %v5389 = vadd.f32 %v4917, %v5325
  %v5390 = vadd.f32 %v4918, %v5326
  %v5391 = vadd.f32 %v4919, %v5327
  %v5392 = vadd.f32 %v4920, %v5328
  %v5393 = vadd.f32 %v4921, %v5329
  %v5394 = vadd.f32 %v4922, %v5330
  %v5395 = vadd.f32 %v4923, %v5331
  %v5396 = vadd.f32 %v4924, %v5332
  %v5397 = vadd.f32 %v4925, %v5333
  %v5398 = vadd.f32 %v4926, %v5334
  %v5399 = vadd.f32 %v4927, %v5335
  %v5400 = vadd.f32 %v4928, %v5336
  %v5401 = vadd.f32 %v4929, %v5337
  %v5402 = vadd.f32 %v4930, %v5338
  %v5403 = vadd.f32 %v4931, %v5339
  %v5404 = vadd.f32 %v4932, %v5340
  %v5405 = vadd.f32 %v4933, %v5341
  %v5406 = vadd.f32 %v4934, %v5342
  %v5407 = vadd.f32 %v4935, %v5343
  %v5408 = vadd.f32 %v4936, %v5344
  %v5409 = vadd.f32 %v4937, %v5345
  %v5410 = vadd.f32 %v4938, %v5346
  %v5411 = vadd.f32 %v4939, %v5347
  %v5412 = vadd.f32 %v4940, %v5348
  %v5413 = vadd.f32 %v4941, %v5349
  %v5414 = vadd.f32 %v4942, %v5350
  %v5415 = vadd.f32 %v4943, %v5351
  %v5416 = vadd.f32 %v4944, %v5352
  %v5417 = vadd.f32 %v5353, %v5354
  %v5418 = vadd.f32 %v5417, %v5355
  %v5419 = vadd.f32 %v5418, %v5356
  %5420 = vadd.xlane.f32.xlu0 %v5419
  %v5421 = vpop.xlane.xlu0 %5420
  %v5422 = vadd.f32 %v5357, %v5358
  %v5423 = vadd.f32 %v5422, %v5359
  %v5424 = vadd.f32 %v5423, %v5360
  %5425 = vadd.xlane.f32.xlu0 %v5424
  %v5426 = vpop.xlane.xlu0 %5425
  %v5427 = vadd.f32 %v5361, %v5362
  %v5428 = vadd.f32 %v5427, %v5363
  %v5429 = vadd.f32 %v5428, %v5364
  %5430 = vadd.xlane.f32.xlu0 %v5429
  %v5431 = vpop.xlane.xlu0 %5430
  %v5432 = vadd.f32 %v5365, %v5366
  %v5433 = vadd.f32 %v5432, %v5367
  %v5434 = vadd.f32 %v5433, %v5368
  %5435 = vadd.xlane.f32.xlu0 %v5434
  %v5436 = vpop.xlane.xlu0 %5435
  %v5437 = vadd.f32 %v5369, %v5370
  %v5438 = vadd.f32 %v5437, %v5371
  %v5439 = vadd.f32 %v5438, %v5372
  %5440 = vadd.xlane.f32.xlu0 %v5439
  %v5441 = vpop.xlane.xlu0 %5440
  %v5442 = vadd.f32 %v5373, %v5374
  %v5443 = vadd.f32 %v5442, %v5375
  %v5444 = vadd.f32 %v5443, %v5376
  %5445 = vadd.xlane.f32.xlu0 %v5444
  %v5446 = vpop.xlane.xlu0 %5445
  %v5447 = vadd.f32 %v5377, %v5378
  %v5448 = vadd.f32 %v5447, %v5379
  %v5449 = vadd.f32 %v5448, %v5380
  %5450 = vadd.xlane.f32.xlu0 %v5449
  %v5451 = vpop.xlane.xlu0 %5450
  %v5452 = vadd.f32 %v5381, %v5382
  %v5453 = vadd.f32 %v5452, %v5383
  %v5454 = vadd.f32 %v5453, %v5384
  %5455 = vadd.xlane.f32.xlu0 %v5454
  %v5456 = vpop.xlane.xlu0 %5455
  %v5457 = vadd.f32 %v5385, %v5386
  %v5458 = vadd.f32 %v5457, %v5387
  %v5459 = vadd.f32 %v5458, %v5388
  %5460 = vadd.xlane.f32.xlu0 %v5459
  %v5461 = vpop.xlane.xlu0 %5460
  %v5462 = vadd.f32 %v5389, %v5390
  %v5463 = vadd.f32 %v5462, %v5391
  %v5464 = vadd.f32 %v5463, %v5392
  %5465 = vadd.xlane.f32.xlu0 %v5464
  %v5466 = vpop.xlane.xlu0 %5465
  %v5467 = vadd.f32 %v5393, %v5394
  %v5468 = vadd.f32 %v5467, %v5395
  %v5469 = vadd.f32 %v5468, %v5396
  %5470 = vadd.xlane.f32.xlu0 %v5469
  %v5471 = vpop.xlane.xlu0 %5470
  %v5472 = vadd.f32 %v5397, %v5398
  %v5473 = vadd.f32 %v5472, %v5399
  %v5474 = vadd.f32 %v5473, %v5400
  %5475 = vadd.xlane.f32.xlu0 %v5474
  %v5476 = vpop.xlane.xlu0 %5475
  %v5477 = vadd.f32 %v5401, %v5402
  %v5478 = vadd.f32 %v5477, %v5403
  %v5479 = vadd.f32 %v5478, %v5404
  %5480 = vadd.xlane.f32.xlu0 %v5479
  %v5481 = vpop.xlane.xlu0 %5480
  %v5482 = vadd.f32 %v5405, %v5406
  %v5483 = vadd.f32 %v5482, %v5407
  %v5484 = vadd.f32 %v5483, %v5408
  %5485 = vadd.xlane.f32.xlu0 %v5484
  %v5486 = vpop.xlane.xlu0 %5485
  %v5487 = vadd.f32 %v5409, %v5410
  %v5488 = vadd.f32 %v5487, %v5411
  %v5489 = vadd.f32 %v5488, %v5412
  %5490 = vadd.xlane.f32.xlu0 %v5489
  %v5491 = vpop.xlane.xlu0 %5490
  %v5492 = vadd.f32 %v5413, %v5414
  %v5493 = vadd.f32 %v5492, %v5415
  %v5494 = vadd.f32 %v5493, %v5416
  %5495 = vadd.xlane.f32.xlu0 %v5494
  %v5496 = vpop.xlane.xlu0 %5495
  %v5497 = vmul.f32 %v5421, 0.001953125
  %v5498 = vmul.f32 %v5426, 0.001953125
  %v5499 = vmul.f32 %v5431, 0.001953125
  %v5500 = vmul.f32 %v5436, 0.001953125
  %v5501 = vmul.f32 %v5441, 0.001953125
  %v5502 = vmul.f32 %v5446, 0.001953125
  %v5503 = vmul.f32 %v5451, 0.001953125
  %v5504 = vmul.f32 %v5456, 0.001953125
  %v5505 = vmul.f32 %v5461, 0.001953125
  %v5506 = vmul.f32 %v5466, 0.001953125
  %v5507 = vmul.f32 %v5471, 0.001953125
  %v5508 = vmul.f32 %v5476, 0.001953125
  %v5509 = vmul.f32 %v5481, 0.001953125
  %v5510 = vmul.f32 %v5486, 0.001953125
  %v5511 = vmul.f32 %v5491, 0.001953125
  %v5512 = vmul.f32 %v5496, 0.001953125
  %v5513 = vmul.f32 %v5353, %v5353
  %v5514 = vmul.f32 %v5354, %v5354
  %v5515 = vmul.f32 %v5355, %v5355
  %v5516 = vmul.f32 %v5356, %v5356
  %v5517 = vmul.f32 %v5357, %v5357
  %v5518 = vmul.f32 %v5358, %v5358
  %v5519 = vmul.f32 %v5359, %v5359
  %v5520 = vmul.f32 %v5360, %v5360
  %v5521 = vmul.f32 %v5361, %v5361
  %v5522 = vmul.f32 %v5362, %v5362
  %v5523 = vmul.f32 %v5363, %v5363
  %v5524 = vmul.f32 %v5364, %v5364
  %v5525 = vmul.f32 %v5365, %v5365
  %v5526 = vmul.f32 %v5366, %v5366
  %v5527 = vmul.f32 %v5367, %v5367
  %v5528 = vmul.f32 %v5368, %v5368
  %v5529 = vmul.f32 %v5369, %v5369
  %v5530 = vmul.f32 %v5370, %v5370
  %v5531 = vmul.f32 %v5371, %v5371
  %v5532 = vmul.f32 %v5372, %v5372
  %v5533 = vmul.f32 %v5373, %v5373
  %v5534 = vmul.f32 %v5374, %v5374
  %v5535 = vmul.f32 %v5375, %v5375
  %v5536 = vmul.f32 %v5376, %v5376
  %v5537 = vmul.f32 %v5377, %v5377
  %v5538 = vmul.f32 %v5378, %v5378
  %v5539 = vmul.f32 %v5379, %v5379
  %v5540 = vmul.f32 %v5380, %v5380
  %v5541 = vmul.f32 %v5381, %v5381
  %v5542 = vmul.f32 %v5382, %v5382
  %v5543 = vmul.f32 %v5383, %v5383
  %v5544 = vmul.f32 %v5384, %v5384
  %v5545 = vmul.f32 %v5385, %v5385
  %v5546 = vmul.f32 %v5386, %v5386
  %v5547 = vmul.f32 %v5387, %v5387
  %v5548 = vmul.f32 %v5388, %v5388
  %v5549 = vmul.f32 %v5389, %v5389
  %v5550 = vmul.f32 %v5390, %v5390
  %v5551 = vmul.f32 %v5391, %v5391
  %v5552 = vmul.f32 %v5392, %v5392
  %v5553 = vmul.f32 %v5393, %v5393
  %v5554 = vmul.f32 %v5394, %v5394
  %v5555 = vmul.f32 %v5395, %v5395
  %v5556 = vmul.f32 %v5396, %v5396
  %v5557 = vmul.f32 %v5397, %v5397
  %v5558 = vmul.f32 %v5398, %v5398
  %v5559 = vmul.f32 %v5399, %v5399
  %v5560 = vmul.f32 %v5400, %v5400
  %v5561 = vmul.f32 %v5401, %v5401
  %v5562 = vmul.f32 %v5402, %v5402
  %v5563 = vmul.f32 %v5403, %v5403
  %v5564 = vmul.f32 %v5404, %v5404
  %v5565 = vmul.f32 %v5405, %v5405
  %v5566 = vmul.f32 %v5406, %v5406
  %v5567 = vmul.f32 %v5407, %v5407
  %v5568 = vmul.f32 %v5408, %v5408
  %v5569 = vmul.f32 %v5409, %v5409
  %v5570 = vmul.f32 %v5410, %v5410
  %v5571 = vmul.f32 %v5411, %v5411
  %v5572 = vmul.f32 %v5412, %v5412
  %v5573 = vmul.f32 %v5413, %v5413
  %v5574 = vmul.f32 %v5414, %v5414
  %v5575 = vmul.f32 %v5415, %v5415
  %v5576 = vmul.f32 %v5416, %v5416
  %v5577 = vadd.f32 %v5513, %v5514
  %v5578 = vadd.f32 %v5577, %v5515
  %v5579 = vadd.f32 %v5578, %v5516
  %5580 = vadd.xlane.f32.xlu0 %v5579
  %v5581 = vpop.xlane.xlu0 %5580
  %v5582 = vadd.f32 %v5517, %v5518
  %v5583 = vadd.f32 %v5582, %v5519
  %v5584 = vadd.f32 %v5583, %v5520
  %5585 = vadd.xlane.f32.xlu0 %v5584
  %v5586 = vpop.xlane.xlu0 %5585
  %v5587 = vadd.f32 %v5521, %v5522
  %v5588 = vadd.f32 %v5587, %v5523
  %v5589 = vadd.f32 %v5588, %v5524
  %5590 = vadd.xlane.f32.xlu0 %v5589
  %v5591 = vpop.xlane.xlu0 %5590
  %v5592 = vadd.f32 %v5525, %v5526
  %v5593 = vadd.f32 %v5592, %v5527
  %v5594 = vadd.f32 %v5593, %v5528
  %5595 = vadd.xlane.f32.xlu0 %v5594
  %v5596 = vpop.xlane.xlu0 %5595
  %v5597 = vadd.f32 %v5529, %v5530
  %v5598 = vadd.f32 %v5597, %v5531
  %v5599 = vadd.f32 %v5598, %v5532
  %5600 = vadd.xlane.f32.xlu0 %v5599
  %v5601 = vpop.xlane.xlu0 %5600
  %v5602 = vadd.f32 %v5533, %v5534
  %v5603 = vadd.f32 %v5602, %v5535
  %v5604 = vadd.f32 %v5603, %v5536
  %5605 = vadd.xlane.f32.xlu0 %v5604
  %v5606 = vpop.xlane.xlu0 %5605
  %v5607 = vadd.f32 %v5537, %v5538
  %v5608 = vadd.f32 %v5607, %v5539
  %v5609 = vadd.f32 %v5608, %v5540
  %5610 = vadd.xlane.f32.xlu0 %v5609
  %v5611 = vpop.xlane.xlu0 %5610
  %v5612 = vadd.f32 %v5541, %v5542
  %v5613 = vadd.f32 %v5612, %v5543
  %v5614 = vadd.f32 %v5613, %v5544
  %5615 = vadd.xlane.f32.xlu0 %v5614
  %v5616 = vpop.xlane.xlu0 %5615
  %v5617 = vadd.f32 %v5545, %v5546
  %v5618 = vadd.f32 %v5617, %v5547
  %v5619 = vadd.f32 %v5618, %v5548
  %5620 = vadd.xlane.f32.xlu0 %v5619
  %v5621 = vpop.xlane.xlu0 %5620
  %v5622 = vadd.f32 %v5549, %v5550
  %v5623 = vadd.f32 %v5622, %v5551
  %v5624 = vadd.f32 %v5623, %v5552
  %5625 = vadd.xlane.f32.xlu0 %v5624
  %v5626 = vpop.xlane.xlu0 %5625
  %v5627 = vadd.f32 %v5553, %v5554
  %v5628 = vadd.f32 %v5627, %v5555
  %v5629 = vadd.f32 %v5628, %v5556
  %5630 = vadd.xlane.f32.xlu0 %v5629
  %v5631 = vpop.xlane.xlu0 %5630
  %v5632 = vadd.f32 %v5557, %v5558
  %v5633 = vadd.f32 %v5632, %v5559
  %v5634 = vadd.f32 %v5633, %v5560
  %5635 = vadd.xlane.f32.xlu0 %v5634
  %v5636 = vpop.xlane.xlu0 %5635
  %v5637 = vadd.f32 %v5561, %v5562
  %v5638 = vadd.f32 %v5637, %v5563
  %v5639 = vadd.f32 %v5638, %v5564
  %5640 = vadd.xlane.f32.xlu0 %v5639
  %v5641 = vpop.xlane.xlu0 %5640
  %v5642 = vadd.f32 %v5565, %v5566
  %v5643 = vadd.f32 %v5642, %v5567
  %v5644 = vadd.f32 %v5643, %v5568
  %5645 = vadd.xlane.f32.xlu0 %v5644
  %v5646 = vpop.xlane.xlu0 %5645
  %v5647 = vadd.f32 %v5569, %v5570
  %v5648 = vadd.f32 %v5647, %v5571
  %v5649 = vadd.f32 %v5648, %v5572
  %5650 = vadd.xlane.f32.xlu0 %v5649
  %v5651 = vpop.xlane.xlu0 %5650
  %v5652 = vadd.f32 %v5573, %v5574
  %v5653 = vadd.f32 %v5652, %v5575
  %v5654 = vadd.f32 %v5653, %v5576
  %5655 = vadd.xlane.f32.xlu0 %v5654
  %v5656 = vpop.xlane.xlu0 %5655
  %v5657 = vmul.f32 %v5581, 0.001953125
  %v5658 = vmul.f32 %v5586, 0.001953125
  %v5659 = vmul.f32 %v5591, 0.001953125
  %v5660 = vmul.f32 %v5596, 0.001953125
  %v5661 = vmul.f32 %v5601, 0.001953125
  %v5662 = vmul.f32 %v5606, 0.001953125
  %v5663 = vmul.f32 %v5611, 0.001953125
  %v5664 = vmul.f32 %v5616, 0.001953125
  %v5665 = vmul.f32 %v5621, 0.001953125
  %v5666 = vmul.f32 %v5626, 0.001953125
  %v5667 = vmul.f32 %v5631, 0.001953125
  %v5668 = vmul.f32 %v5636, 0.001953125
  %v5669 = vmul.f32 %v5641, 0.001953125
  %v5670 = vmul.f32 %v5646, 0.001953125
  %v5671 = vmul.f32 %v5651, 0.001953125
  %v5672 = vmul.f32 %v5656, 0.001953125
  %v5673 = vmul.f32 %v5497, %v5497
  %v5674 = vmul.f32 %v5498, %v5498
  %v5675 = vmul.f32 %v5499, %v5499
  %v5676 = vmul.f32 %v5500, %v5500
  %v5677 = vmul.f32 %v5501, %v5501
  %v5678 = vmul.f32 %v5502, %v5502
  %v5679 = vmul.f32 %v5503, %v5503
  %v5680 = vmul.f32 %v5504, %v5504
  %v5681 = vmul.f32 %v5505, %v5505
  %v5682 = vmul.f32 %v5506, %v5506
  %v5683 = vmul.f32 %v5507, %v5507
  %v5684 = vmul.f32 %v5508, %v5508
  %v5685 = vmul.f32 %v5509, %v5509
  %v5686 = vmul.f32 %v5510, %v5510
  %v5687 = vmul.f32 %v5511, %v5511
  %v5688 = vmul.f32 %v5512, %v5512
  %v5689 = vsub.f32 %v5657, %v5673
  %v5690 = vsub.f32 %v5658, %v5674
  %v5691 = vsub.f32 %v5659, %v5675
  %v5692 = vsub.f32 %v5660, %v5676
  %v5693 = vsub.f32 %v5661, %v5677
  %v5694 = vsub.f32 %v5662, %v5678
  %v5695 = vsub.f32 %v5663, %v5679
  %v5696 = vsub.f32 %v5664, %v5680
  %v5697 = vsub.f32 %v5665, %v5681
  %v5698 = vsub.f32 %v5666, %v5682
  %v5699 = vsub.f32 %v5667, %v5683
  %v5700 = vsub.f32 %v5668, %v5684
  %v5701 = vsub.f32 %v5669, %v5685
  %v5702 = vsub.f32 %v5670, %v5686
  %v5703 = vsub.f32 %v5671, %v5687
  %v5704 = vsub.f32 %v5672, %v5688
  %v5705 = vsub.f32 %v5353, %v5497
  %v5706 = vsub.f32 %v5354, %v5497
  %v5707 = vsub.f32 %v5355, %v5497
  %v5708 = vsub.f32 %v5356, %v5497
  %v5709 = vsub.f32 %v5357, %v5498
  %v5710 = vsub.f32 %v5358, %v5498
  %v5711 = vsub.f32 %v5359, %v5498
  %v5712 = vsub.f32 %v5360, %v5498
  %v5713 = vsub.f32 %v5361, %v5499
  %v5714 = vsub.f32 %v5362, %v5499
  %v5715 = vsub.f32 %v5363, %v5499
  %v5716 = vsub.f32 %v5364, %v5499
  %v5717 = vsub.f32 %v5365, %v5500
  %v5718 = vsub.f32 %v5366, %v5500
  %v5719 = vsub.f32 %v5367, %v5500
  %v5720 = vsub.f32 %v5368, %v5500
  %v5721 = vsub.f32 %v5369, %v5501
  %v5722 = vsub.f32 %v5370, %v5501
  %v5723 = vsub.f32 %v5371, %v5501
  %v5724 = vsub.f32 %v5372, %v5501
  %v5725 = vsub.f32 %v5373, %v5502
  %v5726 = vsub.f32 %v5374, %v5502
  %v5727 = vsub.f32 %v5375, %v5502
  %v5728 = vsub.f32 %v5376, %v5502
  %v5729 = vsub.f32 %v5377, %v5503
  %v5730 = vsub.f32 %v5378, %v5503
  %v5731 = vsub.f32 %v5379, %v5503
  %v5732 = vsub.f32 %v5380, %v5503
  %v5733 = vsub.f32 %v5381, %v5504
  %v5734 = vsub.f32 %v5382, %v5504
  %v5735 = vsub.f32 %v5383, %v5504
  %v5736 = vsub.f32 %v5384, %v5504
  %v5737 = vsub.f32 %v5385, %v5505
  %v5738 = vsub.f32 %v5386, %v5505
  %v5739 = vsub.f32 %v5387, %v5505
  %v5740 = vsub.f32 %v5388, %v5505
  %v5741 = vsub.f32 %v5389, %v5506
  %v5742 = vsub.f32 %v5390, %v5506
  %v5743 = vsub.f32 %v5391, %v5506
  %v5744 = vsub.f32 %v5392, %v5506
  %v5745 = vsub.f32 %v5393, %v5507
  %v5746 = vsub.f32 %v5394, %v5507
  %v5747 = vsub.f32 %v5395, %v5507
  %v5748 = vsub.f32 %v5396, %v5507
  %v5749 = vsub.f32 %v5397, %v5508
  %v5750 = vsub.f32 %v5398, %v5508
  %v5751 = vsub.f32 %v5399, %v5508
  %v5752 = vsub.f32 %v5400, %v5508
  %v5753 = vsub.f32 %v5401, %v5509
  %v5754 = vsub.f32 %v5402, %v5509
  %v5755 = vsub.f32 %v5403, %v5509
  %v5756 = vsub.f32 %v5404, %v5509
  %v5757 = vsub.f32 %v5405, %v5510
  %v5758 = vsub.f32 %v5406, %v5510
  %v5759 = vsub.f32 %v5407, %v5510
  %v5760 = vsub.f32 %v5408, %v5510
  %v5761 = vsub.f32 %v5409, %v5511
  %v5762 = vsub.f32 %v5410, %v5511
  %v5763 = vsub.f32 %v5411, %v5511
  %v5764 = vsub.f32 %v5412, %v5511
  %v5765 = vsub.f32 %v5413, %v5512
  %v5766 = vsub.f32 %v5414, %v5512
  %v5767 = vsub.f32 %v5415, %v5512
  %v5768 = vsub.f32 %v5416, %v5512
  %v5769 = vadd.f32 %v5689, 1e-05
  %v5770 = vadd.f32 %v5690, 1e-05
  %v5771 = vadd.f32 %v5691, 1e-05
  %v5772 = vadd.f32 %v5692, 1e-05
  %v5773 = vadd.f32 %v5693, 1e-05
  %v5774 = vadd.f32 %v5694, 1e-05
  %v5775 = vadd.f32 %v5695, 1e-05
  %v5776 = vadd.f32 %v5696, 1e-05
  %v5777 = vadd.f32 %v5697, 1e-05
  %v5778 = vadd.f32 %v5698, 1e-05
  %v5779 = vadd.f32 %v5699, 1e-05
  %v5780 = vadd.f32 %v5700, 1e-05
  %v5781 = vadd.f32 %v5701, 1e-05
  %v5782 = vadd.f32 %v5702, 1e-05
  %v5783 = vadd.f32 %v5703, 1e-05
  %v5784 = vadd.f32 %v5704, 1e-05
  %v5785 = vrsqrt.pop %v5769
  %v5786 = vrsqrt.pop %v5770
  %v5787 = vrsqrt.pop %v5771
  %v5788 = vrsqrt.pop %v5772
  %v5789 = vrsqrt.pop %v5773
  %v5790 = vrsqrt.pop %v5774
  %v5791 = vrsqrt.pop %v5775
  %v5792 = vrsqrt.pop %v5776
  %v5793 = vrsqrt.pop %v5777
  %v5794 = vrsqrt.pop %v5778
  %v5795 = vrsqrt.pop %v5779
  %v5796 = vrsqrt.pop %v5780
  %v5797 = vrsqrt.pop %v5781
  %v5798 = vrsqrt.pop %v5782
  %v5799 = vrsqrt.pop %v5783
  %v5800 = vrsqrt.pop %v5784
  %v5801 = vmul.f32 %v5705, %v5785
  %v5802 = vmul.f32 %v5706, %v5785
  %v5803 = vmul.f32 %v5707, %v5785
  %v5804 = vmul.f32 %v5708, %v5785
  %v5805 = vmul.f32 %v5709, %v5786
  %v5806 = vmul.f32 %v5710, %v5786
  %v5807 = vmul.f32 %v5711, %v5786
  %v5808 = vmul.f32 %v5712, %v5786
  %v5809 = vmul.f32 %v5713, %v5787
  %v5810 = vmul.f32 %v5714, %v5787
  %v5811 = vmul.f32 %v5715, %v5787
  %v5812 = vmul.f32 %v5716, %v5787
  %v5813 = vmul.f32 %v5717, %v5788
  %v5814 = vmul.f32 %v5718, %v5788
  %v5815 = vmul.f32 %v5719, %v5788
  %v5816 = vmul.f32 %v5720, %v5788
  %v5817 = vmul.f32 %v5721, %v5789
  %v5818 = vmul.f32 %v5722, %v5789
  %v5819 = vmul.f32 %v5723, %v5789
  %v5820 = vmul.f32 %v5724, %v5789
  %v5821 = vmul.f32 %v5725, %v5790
  %v5822 = vmul.f32 %v5726, %v5790
  %v5823 = vmul.f32 %v5727, %v5790
  %v5824 = vmul.f32 %v5728, %v5790
  %v5825 = vmul.f32 %v5729, %v5791
  %v5826 = vmul.f32 %v5730, %v5791
  %v5827 = vmul.f32 %v5731, %v5791
  %v5828 = vmul.f32 %v5732, %v5791
  %v5829 = vmul.f32 %v5733, %v5792
  %v5830 = vmul.f32 %v5734, %v5792
  %v5831 = vmul.f32 %v5735, %v5792
  %v5832 = vmul.f32 %v5736, %v5792
  %v5833 = vmul.f32 %v5737, %v5793
  %v5834 = vmul.f32 %v5738, %v5793
  %v5835 = vmul.f32 %v5739, %v5793
  %v5836 = vmul.f32 %v5740, %v5793
  %v5837 = vmul.f32 %v5741, %v5794
  %v5838 = vmul.f32 %v5742, %v5794
  %v5839 = vmul.f32 %v5743, %v5794
  %v5840 = vmul.f32 %v5744, %v5794
  %v5841 = vmul.f32 %v5745, %v5795
  %v5842 = vmul.f32 %v5746, %v5795
  %v5843 = vmul.f32 %v5747, %v5795
  %v5844 = vmul.f32 %v5748, %v5795
  %v5845 = vmul.f32 %v5749, %v5796
  %v5846 = vmul.f32 %v5750, %v5796
  %v5847 = vmul.f32 %v5751, %v5796
  %v5848 = vmul.f32 %v5752, %v5796
  %v5849 = vmul.f32 %v5753, %v5797
  %v5850 = vmul.f32 %v5754, %v5797
  %v5851 = vmul.f32 %v5755, %v5797
  %v5852 = vmul.f32 %v5756, %v5797
  %v5853 = vmul.f32 %v5757, %v5798
  %v5854 = vmul.f32 %v5758, %v5798
  %v5855 = vmul.f32 %v5759, %v5798
  %v5856 = vmul.f32 %v5760, %v5798
  %v5857 = vmul.f32 %v5761, %v5799
  %v5858 = vmul.f32 %v5762, %v5799
  %v5859 = vmul.f32 %v5763, %v5799
  %v5860 = vmul.f32 %v5764, %v5799
  %v5861 = vmul.f32 %v5765, %v5800
  %v5862 = vmul.f32 %v5766, %v5800
  %v5863 = vmul.f32 %v5767, %v5800
  %v5864 = vmul.f32 %v5768, %v5800
  %v5865 = vmax.f32 %v5801, 0.0
  %v5866 = vmax.f32 %v5802, 0.0
  %v5867 = vmax.f32 %v5803, 0.0
  %v5868 = vmax.f32 %v5804, 0.0
  %v5869 = vmax.f32 %v5805, 0.0
  %v5870 = vmax.f32 %v5806, 0.0
  %v5871 = vmax.f32 %v5807, 0.0
  %v5872 = vmax.f32 %v5808, 0.0
  %v5873 = vmax.f32 %v5809, 0.0
  %v5874 = vmax.f32 %v5810, 0.0
  %v5875 = vmax.f32 %v5811, 0.0
  %v5876 = vmax.f32 %v5812, 0.0
  %v5877 = vmax.f32 %v5813, 0.0
  %v5878 = vmax.f32 %v5814, 0.0
  %v5879 = vmax.f32 %v5815, 0.0
  %v5880 = vmax.f32 %v5816, 0.0
  %v5881 = vmax.f32 %v5817, 0.0
  %v5882 = vmax.f32 %v5818, 0.0
  %v5883 = vmax.f32 %v5819, 0.0
  %v5884 = vmax.f32 %v5820, 0.0
  %v5885 = vmax.f32 %v5821, 0.0
  %v5886 = vmax.f32 %v5822, 0.0
  %v5887 = vmax.f32 %v5823, 0.0
  %v5888 = vmax.f32 %v5824, 0.0
  %v5889 = vmax.f32 %v5825, 0.0
  %v5890 = vmax.f32 %v5826, 0.0
  %v5891 = vmax.f32 %v5827, 0.0
  %v5892 = vmax.f32 %v5828, 0.0
  %v5893 = vmax.f32 %v5829, 0.0
  %v5894 = vmax.f32 %v5830, 0.0
  %v5895 = vmax.f32 %v5831, 0.0
  %v5896 = vmax.f32 %v5832, 0.0
  %v5897 = vmax.f32 %v5833, 0.0
  %v5898 = vmax.f32 %v5834, 0.0
  %v5899 = vmax.f32 %v5835, 0.0
  %v5900 = vmax.f32 %v5836, 0.0
  %v5901 = vmax.f32 %v5837, 0.0
  %v5902 = vmax.f32 %v5838, 0.0
  %v5903 = vmax.f32 %v5839, 0.0
  %v5904 = vmax.f32 %v5840, 0.0
  %v5905 = vmax.f32 %v5841, 0.0
  %v5906 = vmax.f32 %v5842, 0.0
  %v5907 = vmax.f32 %v5843, 0.0
  %v5908 = vmax.f32 %v5844, 0.0
  %v5909 = vmax.f32 %v5845, 0.0
  %v5910 = vmax.f32 %v5846, 0.0
  %v5911 = vmax.f32 %v5847, 0.0
  %v5912 = vmax.f32 %v5848, 0.0
  %v5913 = vmax.f32 %v5849, 0.0
  %v5914 = vmax.f32 %v5850, 0.0
  %v5915 = vmax.f32 %v5851, 0.0
  %v5916 = vmax.f32 %v5852, 0.0
  %v5917 = vmax.f32 %v5853, 0.0
  %v5918 = vmax.f32 %v5854, 0.0
  %v5919 = vmax.f32 %v5855, 0.0
  %v5920 = vmax.f32 %v5856, 0.0
  %v5921 = vmax.f32 %v5857, 0.0
  %v5922 = vmax.f32 %v5858, 0.0
  %v5923 = vmax.f32 %v5859, 0.0
  %v5924 = vmax.f32 %v5860, 0.0
  %v5925 = vmax.f32 %v5861, 0.0
  %v5926 = vmax.f32 %v5862, 0.0
  %v5927 = vmax.f32 %v5863, 0.0
  %v5928 = vmax.f32 %v5864, 0.0
  %v5929 = vmin.f32 %v5865, 6.0
  %v5930 = vmin.f32 %v5866, 6.0
  %v5931 = vmin.f32 %v5867, 6.0
  %v5932 = vmin.f32 %v5868, 6.0
  %v5933 = vmin.f32 %v5869, 6.0
  %v5934 = vmin.f32 %v5870, 6.0
  %v5935 = vmin.f32 %v5871, 6.0
  %v5936 = vmin.f32 %v5872, 6.0
  %v5937 = vmin.f32 %v5873, 6.0
  %v5938 = vmin.f32 %v5874, 6.0
  %v5939 = vmin.f32 %v5875, 6.0
  %v5940 = vmin.f32 %v5876, 6.0
  %v5941 = vmin.f32 %v5877, 6.0
  %v5942 = vmin.f32 %v5878, 6.0
  %v5943 = vmin.f32 %v5879, 6.0
  %v5944 = vmin.f32 %v5880, 6.0
  %v5945 = vmin.f32 %v5881, 6.0
  %v5946 = vmin.f32 %v5882, 6.0
  %v5947 = vmin.f32 %v5883, 6.0
  %v5948 = vmin.f32 %v5884, 6.0
  %v5949 = vmin.f32 %v5885, 6.0
  %v5950 = vmin.f32 %v5886, 6.0
  %v5951 = vmin.f32 %v5887, 6.0
  %v5952 = vmin.f32 %v5888, 6.0
  %v5953 = vmin.f32 %v5889, 6.0
  %v5954 = vmin.f32 %v5890, 6.0
  %v5955 = vmin.f32 %v5891, 6.0
  %v5956 = vmin.f32 %v5892, 6.0
  %v5957 = vmin.f32 %v5893, 6.0
  %v5958 = vmin.f32 %v5894, 6.0
  %v5959 = vmin.f32 %v5895, 6.0
  %v5960 = vmin.f32 %v5896, 6.0
  %v5961 = vmin.f32 %v5897, 6.0
  %v5962 = vmin.f32 %v5898, 6.0
  %v5963 = vmin.f32 %v5899, 6.0
  %v5964 = vmin.f32 %v5900, 6.0
  %v5965 = vmin.f32 %v5901, 6.0
  %v5966 = vmin.f32 %v5902, 6.0
  %v5967 = vmin.f32 %v5903, 6.0
  %v5968 = vmin.f32 %v5904, 6.0
  %v5969 = vmin.f32 %v5905, 6.0
  %v5970 = vmin.f32 %v5906, 6.0
  %v5971 = vmin.f32 %v5907, 6.0
  %v5972 = vmin.f32 %v5908, 6.0
  %v5973 = vmin.f32 %v5909, 6.0
  %v5974 = vmin.f32 %v5910, 6.0
  %v5975 = vmin.f32 %v5911, 6.0
  %v5976 = vmin.f32 %v5912, 6.0
  %v5977 = vmin.f32 %v5913, 6.0
  %v5978 = vmin.f32 %v5914, 6.0
  %v5979 = vmin.f32 %v5915, 6.0
  %v5980 = vmin.f32 %v5916, 6.0
  %v5981 = vmin.f32 %v5917, 6.0
  %v5982 = vmin.f32 %v5918, 6.0
  %v5983 = vmin.f32 %v5919, 6.0
  %v5984 = vmin.f32 %v5920, 6.0
  %v5985 = vmin.f32 %v5921, 6.0
  %v5986 = vmin.f32 %v5922, 6.0
  %v5987 = vmin.f32 %v5923, 6.0
  %v5988 = vmin.f32 %v5924, 6.0
  %v5989 = vmin.f32 %v5925, 6.0
  %v5990 = vmin.f32 %v5926, 6.0
  %v5991 = vmin.f32 %v5927, 6.0
  %v5992 = vmin.f32 %v5928, 6.0
  %v5993 = vld [vmem:[%s4] sm:$0xff]
  %v5994 = vld [vmem:[%s4 + $0x8] sm:$0xff]
  %v5995 = vld [vmem:[%s4 + $0x10] sm:$0xff]
  %v5996 = vld [vmem:[%s4 + $0x18] sm:$0xff]
  %5997 = vmatprep.subr.mxu0 %v5990
  %5998 = vmatpush1.msra.mxu0 %v5989
  %5999 = vmatprep.subr.mxu0 %v5986
  %6000 = vmatpush1.msra.mxu0 %v5985
  %6001 = vmatprep.subr.mxu0 %v5982
  %6002 = vmatpush1.msra.mxu0 %v5981
  %6003 = vmatprep.subr.mxu0 %v5978
  %6004 = vmatpush1.msra.mxu0 %v5977
  %6005 = vmatprep.subr.mxu0 %v5974
  %6006 = vmatpush1.msra.mxu0 %v5973
  %6007 = vmatprep.subr.mxu0 %v5970
  %6008 = vmatpush1.msra.mxu0 %v5969
  %6009 = vmatprep.subr.mxu0 %v5966
  %6010 = vmatpush1.msra.mxu0 %v5965
  %6011 = vmatprep.subr.mxu0 %v5962
  %6012 = vmatpush1.msra.mxu0 %v5961
  %6013 = vmatprep.subr.mxu0 %v5958
  %6014 = vmatpush1.msra.mxu0 %v5957
  %6015 = vmatprep.subr.mxu0 %v5954
  %6016 = vmatpush1.msra.mxu0 %v5953
  %6017 = vmatprep.subr.mxu0 %v5950
  %6018 = vmatpush1.msra.mxu0 %v5949
  %6019 = vmatprep.subr.mxu0 %v5946
  %6020 = vmatpush1.msra.mxu0 %v5945
  %6021 = vmatprep.subr.mxu0 %v5942
  %6022 = vmatpush1.msra.mxu0 %v5941
  %6023 = vmatprep.subr.mxu0 %v5938
  %6024 = vmatpush1.msra.mxu0 %v5937
  %6025 = vmatprep.subr.mxu0 %v5934
  %6026 = vmatpush1.msra.mxu0 %v5933
  %6027 = vmatprep.subr.mxu0 %v5930
  %6028 = vmatpush1.msra.mxu0 %v5929
  %6029 = vmatprep.subr.mxu0 0.0
  %6030 = vmatpush2.msra.mxu0 0.0
  %6031 = vmatprep.subr.mxu0 0.0
  %6032 = vmatpush2.msra.mxu0 0.0
  %6033 = vmatprep.subr.mxu0 0.0
  %6034 = vmatpush2.msra.mxu0 0.0
  %6035 = vmatprep.subr.mxu0 0.0
  %6036 = vmatpush2.msra.mxu0 0.0
  %6037 = vmatprep.subr.mxu0 0.0
  %6038 = vmatpush2.msra.mxu0 0.0
  %6039 = vmatprep.subr.mxu0 0.0
  %6040 = vmatpush2.msra.mxu0 0.0
  %6041 = vmatprep.subr.mxu0 0.0
  %6042 = vmatpush2.msra.mxu0 0.0
  %6043 = vmatprep.subr.mxu0 0.0
  %6044 = vmatpush2.msra.mxu0 0.0
  %6045 = vmatprep.subr.mxu0 0.0
  %6046 = vmatpush2.msra.mxu0 0.0
  %6047 = vmatprep.subr.mxu0 0.0
  %6048 = vmatpush2.msra.mxu0 0.0
  %6049 = vmatprep.subr.mxu0 0.0
  %6050 = vmatpush2.msra.mxu0 0.0
  %6051 = vmatprep.subr.mxu0 0.0
  %6052 = vmatpush2.msra.mxu0 0.0
  %6053 = vmatprep.subr.mxu0 0.0
  %6054 = vmatpush2.msra.mxu0 0.0
  %6055 = vmatprep.subr.mxu0 0.0
  %6056 = vmatpush2.msra.mxu0 0.0
  %6057 = vmatprep.subr.mxu0 0.0
  %6058 = vmatpush2.msra.mxu0 0.0
  %6059 = vmatprep.subr.mxu0 0.0
  %6060 = vmatpush2.msra.mxu0 0.0
  %6061 = vmatprep.mubr.f32.mxu0 0.0
  %6062 = vmatmul.mubr.f32.gmra.mxu0 %v5993
  %v6063 = vpop.f32.mrf.mxu0
  %v6064 = vadd.f32 0.0, %v6063
  %v6065 = vpop.f32.mrf.mxu0
  %v6066 = vadd.f32 0.0, %v6065
  %6067 = vmatprep.mubr.f32.mxu0 0.0
  %6068 = vmatmul.mubr.f32.gmra.mxu0 %v5994
  %v6069 = vpop.f32.mrf.mxu0
  %v6070 = vadd.f32 0.0, %v6069
  %v6071 = vpop.f32.mrf.mxu0
  %v6072 = vadd.f32 0.0, %v6071
  %6073 = vmatprep.mubr.f32.mxu0 0.0
  %6074 = vmatmul.mubr.f32.gmra.mxu0 %v5995
  %v6075 = vpop.f32.mrf.mxu0
  %v6076 = vadd.f32 0.0, %v6075
  %v6077 = vpop.f32.mrf.mxu0
  %v6078 = vadd.f32 0.0, %v6077
  %6079 = vmatprep.mubr.f32.mxu0 0.0
  %6080 = vmatmul.mubr.f32.gmra.mxu0 %v5996
  %v6081 = vpop.f32.mrf.mxu0
  %v6082 = vadd.f32 0.0, %v6081
  %v6083 = vpop.f32.mrf.mxu0
  %v6084 = vadd.f32 0.0, %v6083
  %6085 = vdwg.mxu0
  %6086 = vmatprep.subr.mxu0 %v5992
  %6087 = vmatpush1.msra.mxu0 %v5991
  %6088 = vmatprep.subr.mxu0 %v5988
  %6089 = vmatpush1.msra.mxu0 %v5987
  %6090 = vmatprep.subr.mxu0 %v5984
  %6091 = vmatpush1.msra.mxu0 %v5983
  %6092 = vmatprep.subr.mxu0 %v5980
  %6093 = vmatpush1.msra.mxu0 %v5979
  %6094 = vmatprep.subr.mxu0 %v5976
  %6095 = vmatpush1.msra.mxu0 %v5975
  %6096 = vmatprep.subr.mxu0 %v5972
  %6097 = vmatpush1.msra.mxu0 %v5971
  %6098 = vmatprep.subr.mxu0 %v5968
  %6099 = vmatpush1.msra.mxu0 %v5967
  %6100 = vmatprep.subr.mxu0 %v5964
  %6101 = vmatpush1.msra.mxu0 %v5963
  %6102 = vmatprep.subr.mxu0 %v5960
  %6103 = vmatpush1.msra.mxu0 %v5959
  %6104 = vmatprep.subr.mxu0 %v5956
  %6105 = vmatpush1.msra.mxu0 %v5955
  %6106 = vmatprep.subr.mxu0 %v5952
  %6107 = vmatpush1.msra.mxu0 %v5951
  %6108 = vmatprep.subr.mxu0 %v5948
  %6109 = vmatpush1.msra.mxu0 %v5947
  %6110 = vmatprep.subr.mxu0 %v5944
  %6111 = vmatpush1.msra.mxu0 %v5943
  %6112 = vmatprep.subr.mxu0 %v5940
  %6113 = vmatpush1.msra.mxu0 %v5939
  %6114 = vmatprep.subr.mxu0 %v5936
  %6115 = vmatpush1.msra.mxu0 %v5935
  %6116 = vmatprep.subr.mxu0 %v5932
  %6117 = vmatpush1.msra.mxu0 %v5931
  %6118 = vmatprep.subr.mxu0 0.0
  %6119 = vmatpush2.msra.mxu0 0.0
  %6120 = vmatprep.subr.mxu0 0.0
  %6121 = vmatpush2.msra.mxu0 0.0
  %6122 = vmatprep.subr.mxu0 0.0
  %6123 = vmatpush2.msra.mxu0 0.0
  %6124 = vmatprep.subr.mxu0 0.0
  %6125 = vmatpush2.msra.mxu0 0.0
  %6126 = vmatprep.subr.mxu0 0.0
  %6127 = vmatpush2.msra.mxu0 0.0
  %6128 = vmatprep.subr.mxu0 0.0
  %6129 = vmatpush2.msra.mxu0 0.0
  %6130 = vmatprep.subr.mxu0 0.0
  %6131 = vmatpush2.msra.mxu0 0.0
  %6132 = vmatprep.subr.mxu0 0.0
  %6133 = vmatpush2.msra.mxu0 0.0
  %6134 = vmatprep.subr.mxu0 0.0
  %6135 = vmatpush2.msra.mxu0 0.0
  %6136 = vmatprep.subr.mxu0 0.0
  %6137 = vmatpush2.msra.mxu0 0.0
  %6138 = vmatprep.subr.mxu0 0.0
  %6139 = vmatpush2.msra.mxu0 0.0
  %6140 = vmatprep.subr.mxu0 0.0
  %6141 = vmatpush2.msra.mxu0 0.0
  %6142 = vmatprep.subr.mxu0 0.0
  %6143 = vmatpush2.msra.mxu0 0.0
  %6144 = vmatprep.subr.mxu0 0.0
  %6145 = vmatpush2.msra.mxu0 0.0
  %6146 = vmatprep.subr.mxu0 0.0
  %6147 = vmatpush2.msra.mxu0 0.0
  %6148 = vmatprep.subr.mxu0 0.0
  %6149 = vmatpush2.msra.mxu0 0.0
  %6150 = vmatprep.mubr.f32.mxu0 0.0
  %6151 = vmatmul.mubr.f32.gmra.mxu0 %v5993
  %v6152 = vpop.f32.mrf.mxu0
  %v6153 = vadd.f32 0.0, %v6152
  %v6154 = vpop.f32.mrf.mxu0
  %v6155 = vadd.f32 0.0, %v6154
  %6156 = vmatprep.mubr.f32.mxu0 0.0
  %6157 = vmatmul.mubr.f32.gmra.mxu0 %v5994
  %v6158 = vpop.f32.mrf.mxu0
  %v6159 = vadd.f32 0.0, %v6158
  %v6160 = vpop.f32.mrf.mxu0
  %v6161 = vadd.f32 0.0, %v6160
  %6162 = vmatprep.mubr.f32.mxu0 0.0
  %6163 = vmatmul.mubr.f32.gmra.mxu0 %v5995
  %v6164 = vpop.f32.mrf.mxu0
  %v6165 = vadd.f32 0.0, %v6164
  %v6166 = vpop.f32.mrf.mxu0
  %v6167 = vadd.f32 0.0, %v6166
  %6168 = vmatprep.mubr.f32.mxu0 0.0
  %6169 = vmatmul.mubr.f32.gmra.mxu0 %v5996
  %v6170 = vpop.f32.mrf.mxu0
  %v6171 = vadd.f32 0.0, %v6170
  %v6172 = vpop.f32.mrf.mxu0
  %v6173 = vadd.f32 0.0, %v6172
  %6174 = vdwg.mxu0
  %v6175 = vadd.f32 %v6064, %v6066
  %v6176 = vadd.f32 %v6175, %v6153
  %v6177 = vadd.f32 %v6176, %v6155
  %6178 = vadd.xlane.f32.xlu0 %v6177
  %v6179 = vpop.xlane.xlu0 %6178
  %v6180 = vadd.f32 %v6070, %v6072
  %v6181 = vadd.f32 %v6180, %v6159
  %v6182 = vadd.f32 %v6181, %v6161
  %6183 = vadd.xlane.f32.xlu0 %v6182
  %v6184 = vpop.xlane.xlu0 %6183
  %v6185 = vadd.f32 %v6076, %v6078
  %v6186 = vadd.f32 %v6185, %v6165
  %v6187 = vadd.f32 %v6186, %v6167
  %6188 = vadd.xlane.f32.xlu0 %v6187
  %v6189 = vpop.xlane.xlu0 %6188
  %v6190 = vadd.f32 %v6082, %v6084
  %v6191 = vadd.f32 %v6190, %v6171
  %v6192 = vadd.f32 %v6191, %v6173
  %6193 = vadd.xlane.f32.xlu0 %v6192
  %v6194 = vpop.xlane.xlu0 %6193
  %v6195 = vmul.f32 %v6179, 0.001953125
  %v6196 = vmul.f32 %v6184, 0.001953125
  %v6197 = vmul.f32 %v6189, 0.001953125
  %v6198 = vmul.f32 %v6194, 0.001953125
  %v6199 = vmul.f32 %v6064, %v6064
  %v6200 = vmul.f32 %v6066, %v6066
  %v6201 = vmul.f32 %v6153, %v6153
  %v6202 = vmul.f32 %v6155, %v6155
  %v6203 = vmul.f32 %v6070, %v6070
  %v6204 = vmul.f32 %v6072, %v6072
  %v6205 = vmul.f32 %v6159, %v6159
  %v6206 = vmul.f32 %v6161, %v6161
  %v6207 = vmul.f32 %v6076, %v6076
  %v6208 = vmul.f32 %v6078, %v6078
  %v6209 = vmul.f32 %v6165, %v6165
  %v6210 = vmul.f32 %v6167, %v6167
  %v6211 = vmul.f32 %v6082, %v6082
  %v6212 = vmul.f32 %v6084, %v6084
  %v6213 = vmul.f32 %v6171, %v6171
  %v6214 = vmul.f32 %v6173, %v6173
  %v6215 = vadd.f32 %v6199, %v6200
  %v6216 = vadd.f32 %v6215, %v6201
  %v6217 = vadd.f32 %v6216, %v6202
  %6218 = vadd.xlane.f32.xlu0 %v6217
  %v6219 = vpop.xlane.xlu0 %6218
  %v6220 = vadd.f32 %v6203, %v6204
  %v6221 = vadd.f32 %v6220, %v6205
  %v6222 = vadd.f32 %v6221, %v6206
  %6223 = vadd.xlane.f32.xlu0 %v6222
  %v6224 = vpop.xlane.xlu0 %6223
  %v6225 = vadd.f32 %v6207, %v6208
  %v6226 = vadd.f32 %v6225, %v6209
  %v6227 = vadd.f32 %v6226, %v6210
  %6228 = vadd.xlane.f32.xlu0 %v6227
  %v6229 = vpop.xlane.xlu0 %6228
  %v6230 = vadd.f32 %v6211, %v6212
  %v6231 = vadd.f32 %v6230, %v6213
  %v6232 = vadd.f32 %v6231, %v6214
  %6233 = vadd.xlane.f32.xlu0 %v6232
  %v6234 = vpop.xlane.xlu0 %6233
  %v6235 = vmul.f32 %v6219, 0.001953125
  %v6236 = vmul.f32 %v6224, 0.001953125
  %v6237 = vmul.f32 %v6229, 0.001953125
  %v6238 = vmul.f32 %v6234, 0.001953125
  %v6239 = vmul.f32 %v6195, %v6195
  %v6240 = vmul.f32 %v6196, %v6196
  %v6241 = vmul.f32 %v6197, %v6197
  %v6242 = vmul.f32 %v6198, %v6198
  %v6243 = vsub.f32 %v6235, %v6239
  %v6244 = vsub.f32 %v6236, %v6240
  %v6245 = vsub.f32 %v6237, %v6241
  %v6246 = vsub.f32 %v6238, %v6242
  %v6247 = vsub.f32 %v6064, %v6195
  %v6248 = vsub.f32 %v6066, %v6195
  %v6249 = vsub.f32 %v6153, %v6195
  %v6250 = vsub.f32 %v6155, %v6195
  %v6251 = vsub.f32 %v6070, %v6196
  %v6252 = vsub.f32 %v6072, %v6196
  %v6253 = vsub.f32 %v6159, %v6196
  %v6254 = vsub.f32 %v6161, %v6196
  %v6255 = vsub.f32 %v6076, %v6197
  %v6256 = vsub.f32 %v6078, %v6197
  %v6257 = vsub.f32 %v6165, %v6197
  %v6258 = vsub.f32 %v6167, %v6197
  %v6259 = vsub.f32 %v6082, %v6198
  %v6260 = vsub.f32 %v6084, %v6198
  %v6261 = vsub.f32 %v6171, %v6198
  %v6262 = vsub.f32 %v6173, %v6198
  %v6263 = vadd.f32 %v6243, 1e-05
  %v6264 = vadd.f32 %v6244, 1e-05
  %v6265 = vadd.f32 %v6245, 1e-05
  %v6266 = vadd.f32 %v6246, 1e-05
  %v6267 = vrsqrt.pop %v6263
  %v6268 = vrsqrt.pop %v6264
  %v6269 = vrsqrt.pop %v6265
  %v6270 = vrsqrt.pop %v6266
  %v6271 = vmul.f32 %v6247, %v6267
  %v6272 = vmul.f32 %v6248, %v6267
  %v6273 = vmul.f32 %v6249, %v6267
  %v6274 = vmul.f32 %v6250, %v6267
  %v6275 = vmul.f32 %v6251, %v6268
  %v6276 = vmul.f32 %v6252, %v6268
  %v6277 = vmul.f32 %v6253, %v6268
  %v6278 = vmul.f32 %v6254, %v6268
  %v6279 = vmul.f32 %v6255, %v6269
  %v6280 = vmul.f32 %v6256, %v6269
  %v6281 = vmul.f32 %v6257, %v6269
  %v6282 = vmul.f32 %v6258, %v6269
  %v6283 = vmul.f32 %v6259, %v6270
  %v6284 = vmul.f32 %v6260, %v6270
  %v6285 = vmul.f32 %v6261, %v6270
  %v6286 = vmul.f32 %v6262, %v6270
  %v6287 = vmax.f32 %v6271, 0.0
  %v6288 = vmax.f32 %v6272, 0.0
  %v6289 = vmax.f32 %v6273, 0.0
  %v6290 = vmax.f32 %v6274, 0.0
  %v6291 = vmax.f32 %v6275, 0.0
  %v6292 = vmax.f32 %v6276, 0.0
  %v6293 = vmax.f32 %v6277, 0.0
  %v6294 = vmax.f32 %v6278, 0.0
  %v6295 = vmax.f32 %v6279, 0.0
  %v6296 = vmax.f32 %v6280, 0.0
  %v6297 = vmax.f32 %v6281, 0.0
  %v6298 = vmax.f32 %v6282, 0.0
  %v6299 = vmax.f32 %v6283, 0.0
  %v6300 = vmax.f32 %v6284, 0.0
  %v6301 = vmax.f32 %v6285, 0.0
  %v6302 = vmax.f32 %v6286, 0.0
  %v6303 = vmin.f32 %v6287, 6.0
  %v6304 = vmin.f32 %v6288, 6.0
  %v6305 = vmin.f32 %v6289, 6.0
  %v6306 = vmin.f32 %v6290, 6.0
  %v6307 = vmin.f32 %v6291, 6.0
  %v6308 = vmin.f32 %v6292, 6.0
  %v6309 = vmin.f32 %v6293, 6.0
  %v6310 = vmin.f32 %v6294, 6.0
  %v6311 = vmin.f32 %v6295, 6.0
  %v6312 = vmin.f32 %v6296, 6.0
  %v6313 = vmin.f32 %v6297, 6.0
  %v6314 = vmin.f32 %v6298, 6.0
  %v6315 = vmin.f32 %v6299, 6.0
  %v6316 = vmin.f32 %v6300, 6.0
  %v6317 = vmin.f32 %v6301, 6.0
  %v6318 = vmin.f32 %v6302, 6.0
  %6319 = vst [vmem:[%s5] sm:$0xff] %v6303
  %6320 = vst [vmem:[%s5 + $0x8] sm:$0xff] %v6304
  %6321 = vst [vmem:[%s5 + $0x10] sm:$0xff] %v6305
  %6322 = vst [vmem:[%s5 + $0x18] sm:$0xff] %v6306
  %6323 = vst [vmem:[%s5 + $0x20] sm:$0xff] %v6307
  %6324 = vst [vmem:[%s5 + $0x28] sm:$0xff] %v6308
  %6325 = vst [vmem:[%s5 + $0x30] sm:$0xff] %v6309
  %6326 = vst [vmem:[%s5 + $0x38] sm:$0xff] %v6310
  %6327 = vst [vmem:[%s5 + $0x40] sm:$0xff] %v6311
  %6328 = vst [vmem:[%s5 + $0x48] sm:$0xff] %v6312
  %6329 = vst [vmem:[%s5 + $0x50] sm:$0xff] %v6313
  %6330 = vst [vmem:[%s5 + $0x58] sm:$0xff] %v6314
  %6331 = vst [vmem:[%s5 + $0x60] sm:$0xff] %v6315
  %6332 = vst [vmem:[%s5 + $0x68] sm:$0xff] %v6316
  %6333 = vst [vmem:[%s5 + $0x70] sm:$0xff] %v6317
  %6334 = vst [vmem:[%s5 + $0x78] sm:$0xff] %v6318
  // Predicated region
  $region22: #{new_features_forward.1} parent=0 // pred_check
    _
  $region23: #{new_features_forward.1} parent=0 // pred_check_branch
    %6336 = sbr.rel (0) target = $region25
  $region24: #{new_features_forward.1} parent=0 // pred_region
    _
  $region25: #{new_features_forward.1} parent=0 // pred_fallthru
    _
  // Predicated region
  $region26: #{new_features_forward.1} parent=0 // pred_check
    _
  $region27: #{new_features_forward.1} parent=0 // pred_check_branch
    %6338 = sbr.rel (0) target = $region29
  $region28: #{new_features_forward.1} parent=0 // pred_region
    _
  $region29: #{new_features_forward.1} parent=0 // pred_fallthru
    _

</llo_original>
